<compile_context>
chip_gen: v7x
topology: tpu7x:2x2x1
jax: 0.10.0
libtpu: 0.0.40
codegen_flags: <defaults>
</compile_context>

<pallas_src>
import numpy as np
import jax
import jax.numpy as jnp
from jax.experimental import pallas as pl
from jax.experimental.pallas import tpu as pltpu


def build_index_offset(min_range, max_range):
    """Replicates TorchGrouper.__init__: (O, 4) float32 offsets, columns [0, ox, oy, oz]."""
    neg = np.arange(-max_range, -min_range)
    pos = np.arange(min_range, max_range)
    r = np.concatenate([neg, pos]).astype(np.float32)
    p = r.shape[0]
    rx = np.broadcast_to(r.reshape(1, 1, p), (p, p, p))
    ry = np.broadcast_to(r.reshape(1, p, 1), (p, p, p))
    rz = np.broadcast_to(r.reshape(p, 1, 1), (p, p, p))
    off = np.stack([np.zeros_like(rx), rx, ry, rz], axis=3).reshape(-1, 4)
    return off.astype(np.float32)  # (O, 4)


def _round_up(x, m):
    return (x + m - 1) // m * m


def torch_grouper_forward(voxel_maps, grid_positions, features, index_offset,
                          *, tile_g=32, tile_v=512):
    N, Z, Y, X = voxel_maps.shape
    G = grid_positions.shape[0]
    O = index_offset.shape[0]
    M, C = features.shape
    V = N * Z * Y * X

    assert G % tile_g == 0, "grid count must be divisible by tile_g"
    TGO = tile_g * O
    assert TGO % 128 == 0, "tile_g * offset_num must be a multiple of 128 (lane-dense)"
    assert tile_v % 128 == 0, "tile_v must be a multiple of 128"
    Vpad = _round_up(V, tile_v)         # padded / tiled voxel count (matmul K)
    CR = _round_up(C + 1, 8)            # C feature rows + 1 idx row, padded to 8 sublanes
    f32 = jnp.float32

    # ---------- wrapper-side precompute (plain JAX / XLA): HBM gather + layout plumbing ----------
    vox_p1 = voxel_maps.reshape(-1).astype(jnp.int32) + 1                               # (V,)
    feats_pad = jnp.concatenate([jnp.zeros((1, C), f32), features.astype(f32)], axis=0)  # (M+1, C)
    feat_vox = feats_pad[vox_p1].T                                                      # (C, V)
    feat_ext = jnp.concatenate([feat_vox, vox_p1.astype(f32)[None, :]], axis=0)         # (C+1, V)
    feat_ext = jnp.pad(feat_ext, ((0, CR - (C + 1)), (0, Vpad - V)))                    # (CR, Vpad)

    off_t = jnp.asarray(index_offset, f32).T                                            # (4, O)
    off_tiled = jnp.tile(off_t, (1, tile_g))                                            # (4, TGO)
    # grid positions expanded to the per-(grid, offset) column layout: column j = g*O + o
    gp_expand = jnp.repeat(grid_positions.astype(f32), O, axis=0).T                     # (4, G*O)

    def kernel(gp_ref, off_ref, feat_ref, sf_ref, pf_ref):
        v = pl.program_id(1)

        # float positions for this g-tile, column layout (4, TGO)
        pos = gp_ref[...] + off_ref[...]
        # trunc-toward-zero (== torch .long()) + clamp spatial dims.
        # (batch row is also clamped to [0, N-1] so the flat index is always in range)
        i0 = jnp.clip(pos[0:1, :].astype(jnp.int32), 0, N - 1)
        i1 = jnp.clip(pos[1:2, :].astype(jnp.int32), 0, Z - 1)
        i2 = jnp.clip(pos[2:3, :].astype(jnp.int32), 0, Y - 1)
        i3 = jnp.clip(pos[3:4, :].astype(jnp.int32), 0, X - 1)
        flat = ((i0 * Z + i1) * Y + i2) * X + i3              # (1, TGO) flat voxel index

        # one-hot over this V tile; columns whose hit lies in another tile contribute 0
        flat_local = flat - v * tile_v
        iota_v = jax.lax.broadcasted_iota(jnp.int32, (tile_v, TGO), 0)
        onehot = (iota_v == flat_local).astype(f32)           # (tile_v, TGO)

        # single fused MXU matmul: features + idx+1 row, all tile_g*O columns at once
        contrib = jnp.dot(feat_ref[...], onehot, preferred_element_type=f32)  # (CR, TGO)

        @pl.when(v == 0)
        def _():
            sf_ref[...] = jnp.zeros_like(sf_ref)
            # position feature: frac(pos[1:4]) + index_offset columns 0..2 (quirk of the
            # original module, reproduced exactly); computed once per g-tile, lane-dense.
            frac = pos[1:4, :] - pos[1:4, :].astype(jnp.int32).astype(f32)
            pf_ref[...] = frac + off_ref[0:3, :]

        sf_ref[...] += contrib

    grid_spec = pltpu.PrefetchScalarGridSpec(
        num_scalar_prefetch=0,
        grid=(G // tile_g, Vpad // tile_v),                   # reduction (V) axis last
        in_specs=[
            pl.BlockSpec((4, TGO), lambda g, v: (0, g)),      # expanded grid positions
            pl.BlockSpec((4, TGO), lambda g, v: (0, 0)),      # tiled index offsets (grid-invariant)
            pl.BlockSpec((CR, tile_v), lambda g, v: (0, v)),  # gathered features (+ idx row)
        ],
        out_specs=[
            pl.BlockSpec((CR, TGO), lambda g, v: (0, g)),     # sampled features + idx row
            pl.BlockSpec((3, TGO), lambda g, v: (0, g)),      # position feature (3 rows)
        ],
    )
    sf_full, pf_full = pl.pallas_call(
        kernel,
        out_shape=(jax.ShapeDtypeStruct((CR, G * O), f32),
                   jax.ShapeDtypeStruct((3, G * O), f32)),
        grid_spec=grid_spec,
        compiler_params=pltpu.CompilerParams(
            dimension_semantics=("parallel", "arbitrary"),
            vmem_limit_bytes=64 * 1024 * 1024),
    )(gp_expand, off_tiled, feat_ext)

    sampled_features = sf_full[:C].reshape(1, C, G, O)
    grid_positions_feature = pf_full.reshape(1, 3, G, O)
    idxp1 = sf_full[C].reshape(G, O)                          # exact small integers in f32
    # max==0 is equivalent to the reference sum==0 (idx+1 >= 0) and cannot overflow.
    empty_mask = jnp.max(idxp1, axis=1) == 0.0
    return sampled_features, grid_positions_feature, empty_mask


def reference_forward(voxel_maps, grid_positions, features, index_offset):
    """Pure-JAX mirror of the PyTorch forward (for verification)."""
    N, Z, Y, X = voxel_maps.shape
    M, C = features.shape
    pos = grid_positions[:, None, :].astype(jnp.float32) + index_offset[None, :, :]  # (G,O,4)
    ipos = pos.astype(jnp.int32)
    i0 = ipos[..., 0]
    i1 = jnp.clip(ipos[..., 1], 0, Z - 1)
    i2 = jnp.clip(ipos[..., 2], 0, Y - 1)
    i3 = jnp.clip(ipos[..., 3], 0, X - 1)
    sampled_idx = voxel_maps[i0, i1, i2, i3]                                          # (G,O)
    feats_pad = jnp.concatenate([jnp.zeros((1, C), features.dtype), features], axis=0)
    sf = feats_pad[sampled_idx + 1]                                                   # (G,O,C)
    sampled_features = jnp.transpose(sf, (2, 0, 1))[None]                             # (1,C,G,O)
    pf = pos[..., 1:]
    pf = pf - pf.astype(jnp.int32).astype(pf.dtype)
    pf = pf + index_offset[None, :, :3]
    grid_positions_feature = jnp.transpose(pf, (2, 0, 1))[None]                       # (1,3,G,O)
    empty_mask = jnp.sum(sampled_idx + 1, axis=1) == 0
    return sampled_features, grid_positions_feature, empty_mask


if __name__ == "__main__":
    key = jax.random.PRNGKey(0)
    min_range, max_range = 0, 2            # per_dim = 4, O = 64 offsets
    N, Z, Y, X = 2, 8, 8, 8                # voxel map -> V = 1024
    G, M, C = 64, 64, 32                   # grid points, feature rows, channels

    k1, k2, k3, k4 = jax.random.split(key, 4)
    voxel_maps = jax.random.randint(k1, (N, Z, Y, X), -1, M, dtype=jnp.int32)
    grid_batch = jax.random.randint(k2, (G, 1), 0, N).astype(jnp.float32)
    grid_zyx = jax.random.uniform(k3, (G, 3), minval=0.0, maxval=7.0, dtype=jnp.float32)
    grid_positions = jnp.concatenate([grid_batch, grid_zyx], axis=1)      # (G, 4)
    features = jax.random.normal(k4, (M, C), dtype=jnp.float32)

    index_offset = jnp.asarray(build_index_offset(min_range, max_range))  # (O, 4)

    out = torch_grouper_forward(voxel_maps, grid_positions, features, index_offset,
                                tile_g=32, tile_v=512)
    out = jax.block_until_ready(out)
    sf, gpf, mask = out

    ref_sf, ref_gpf, ref_mask = reference_forward(voxel_maps, grid_positions, features,
                                                  index_offset)
    np.testing.assert_allclose(np.asarray(sf), np.asarray(ref_sf), rtol=1e-5, atol=1e-5)
    np.testing.assert_allclose(np.asarray(gpf), np.asarray(ref_gpf), rtol=1e-5, atol=1e-5)
    assert np.array_equal(np.asarray(mask), np.asarray(ref_mask))

    print("KERNEL_OK")
</pallas_src>

<mosaic_0001>
module attributes {stable_mosaic.version = 11 : i64} {
  func.func @kernel(%arg0: i32, %arg1: i32, %arg2: memref<4x2048xf32, #tpu.memory_space<vmem>>, %arg3: memref<4x2048xf32, #tpu.memory_space<vmem>>, %arg4: memref<40x512xf32, #tpu.memory_space<vmem>>, %arg5: memref<40x2048xf32, #tpu.memory_space<vmem>>, %arg6: memref<3x2048xf32, #tpu.memory_space<vmem>>) attributes {dimension_semantics = [#tpu.dimension_semantics<parallel>, #tpu.dimension_semantics<arbitrary>], iteration_bounds = array<i64: 2, 2>, scalar_prefetch = 0 : i64, scratch_operands = 0 : i64, tpu.core_type = #tpu.core_type<tc>, window_params = [{transform_indices = @transform_0, window_bounds = array<i64: 4, 2048>}, {pipeline_mode = #tpu.pipeline_mode<synchronous>, transform_indices = @transform_1, window_bounds = array<i64: 4, 2048>}, {transform_indices = @transform_2, window_bounds = array<i64: 40, 512>}, {transform_indices = @transform_3, window_bounds = array<i64: 40, 2048>}, {transform_indices = @transform_4, window_bounds = array<i64: 3, 2048>}]} {
    %c0 = arith.constant 0 : index
    %c0_0 = arith.constant 0 : index
    %0 = vector.load %arg2[%c0, %c0_0] : memref<4x2048xf32, #tpu.memory_space<vmem>>, vector<4x2048xf32>
    %c0_1 = arith.constant 0 : index
    %c0_2 = arith.constant 0 : index
    %1 = vector.load %arg3[%c0_1, %c0_2] : memref<4x2048xf32, #tpu.memory_space<vmem>>, vector<4x2048xf32>
    %2 = arith.addf %0, %1 : vector<4x2048xf32>
    %3 = vector.extract_strided_slice %2 {offsets = [0, 0], sizes = [1, 2048], strides = [1, 1]} : vector<4x2048xf32> to vector<1x2048xf32>
    %4 = arith.fptosi %3 : vector<1x2048xf32> to vector<1x2048xi32>
    %c0_i32 = arith.constant 0 : i32
    %c1_i32 = arith.constant 1 : i32
    %5 = vector.broadcast %c0_i32 : i32 to vector<1x2048xi32>
    %6 = arith.maxsi %5, %4 : vector<1x2048xi32>
    %7 = vector.broadcast %c1_i32 : i32 to vector<1x2048xi32>
    %8 = arith.minsi %7, %6 : vector<1x2048xi32>
    %9 = vector.extract_strided_slice %2 {offsets = [1, 0], sizes = [1, 2048], strides = [1, 1]} : vector<4x2048xf32> to vector<1x2048xf32>
    %10 = arith.fptosi %9 : vector<1x2048xf32> to vector<1x2048xi32>
    %c0_i32_3 = arith.constant 0 : i32
    %c7_i32 = arith.constant 7 : i32
    %11 = vector.broadcast %c0_i32_3 : i32 to vector<1x2048xi32>
    %12 = arith.maxsi %11, %10 : vector<1x2048xi32>
    %13 = vector.broadcast %c7_i32 : i32 to vector<1x2048xi32>
    %14 = arith.minsi %13, %12 : vector<1x2048xi32>
    %15 = vector.extract_strided_slice %2 {offsets = [2, 0], sizes = [1, 2048], strides = [1, 1]} : vector<4x2048xf32> to vector<1x2048xf32>
    %16 = arith.fptosi %15 : vector<1x2048xf32> to vector<1x2048xi32>
    %c0_i32_4 = arith.constant 0 : i32
    %c7_i32_5 = arith.constant 7 : i32
    %17 = vector.broadcast %c0_i32_4 : i32 to vector<1x2048xi32>
    %18 = arith.maxsi %17, %16 : vector<1x2048xi32>
    %19 = vector.broadcast %c7_i32_5 : i32 to vector<1x2048xi32>
    %20 = arith.minsi %19, %18 : vector<1x2048xi32>
    %21 = vector.extract_strided_slice %2 {offsets = [3, 0], sizes = [1, 2048], strides = [1, 1]} : vector<4x2048xf32> to vector<1x2048xf32>
    %22 = arith.fptosi %21 : vector<1x2048xf32> to vector<1x2048xi32>
    %c0_i32_6 = arith.constant 0 : i32
    %c7_i32_7 = arith.constant 7 : i32
    %23 = vector.broadcast %c0_i32_6 : i32 to vector<1x2048xi32>
    %24 = arith.maxsi %23, %22 : vector<1x2048xi32>
    %25 = vector.broadcast %c7_i32_7 : i32 to vector<1x2048xi32>
    %26 = arith.minsi %25, %24 : vector<1x2048xi32>
    %c8_i32 = arith.constant 8 : i32
    %27 = vector.broadcast %c8_i32 : i32 to vector<1x2048xi32>
    %28 = arith.muli %8, %27 : vector<1x2048xi32>
    %29 = arith.addi %28, %14 : vector<1x2048xi32>
    %c8_i32_8 = arith.constant 8 : i32
    %30 = vector.broadcast %c8_i32_8 : i32 to vector<1x2048xi32>
    %31 = arith.muli %29, %30 : vector<1x2048xi32>
    %32 = arith.addi %31, %20 : vector<1x2048xi32>
    %c8_i32_9 = arith.constant 8 : i32
    %33 = vector.broadcast %c8_i32_9 : i32 to vector<1x2048xi32>
    %34 = arith.muli %32, %33 : vector<1x2048xi32>
    %35 = arith.addi %34, %26 : vector<1x2048xi32>
    %c512_i32 = arith.constant 512 : i32
    %36 = arith.muli %arg1, %c512_i32 : i32
    %37 = vector.broadcast %36 : i32 to vector<1x2048xi32>
    %38 = arith.subi %35, %37 : vector<1x2048xi32>
    %39 = tpu.iota {dimensions = array<i32: 0>} : vector<512x2048xi32>
    %40 = vector.broadcast %38 : vector<1x2048xi32> to vector<512x2048xi32>
    %41 = arith.cmpi eq, %39, %40 : vector<512x2048xi32>
    %42 = arith.extui %41 : vector<512x2048xi1> to vector<512x2048xi32>
    %43 = arith.sitofp %42 : vector<512x2048xi32> to vector<512x2048xf32>
    %c0_10 = arith.constant 0 : index
    %c0_11 = arith.constant 0 : index
    %44 = vector.load %arg4[%c0_10, %c0_11] : memref<40x512xf32, #tpu.memory_space<vmem>>, vector<40x512xf32>
    %cst = arith.constant dense<0.000000e+00> : vector<40x2048xf32>
    %45 = tpu.matmul %44, %43, %cst {dimension_numbers = #tpu.dot_dimension_numbers<[1], [0], [0], [1], [0, 0, 1, 1], [], []>} : vector<40x512xf32>, vector<512x2048xf32>, vector<40x2048xf32> -> vector<40x2048xf32>
    %c0_i32_12 = arith.constant 0 : i32
    %46 = arith.cmpi eq, %arg1, %c0_i32_12 : i32
    %47 = arith.extui %46 : i1 to i32
    %c0_i32_13 = arith.constant 0 : i32
    %48 = arith.cmpi ne, %47, %c0_i32_13 : i32
    scf.if %48 {
      %cst_18 = arith.constant 0.000000e+00 : f32
      %52 = vector.broadcast %cst_18 : f32 to vector<40x2048xf32>
      %c0_19 = arith.constant 0 : index
      %c0_20 = arith.constant 0 : index
      %53 = vector.load %arg5[%c0_19, %c0_20] : memref<40x2048xf32, #tpu.memory_space<vmem>>, vector<40x2048xf32>
      tpu.vector_store %arg5[%c0_19, %c0_20], %52 {strides = array<i32>} : memref<40x2048xf32, #tpu.memory_space<vmem>>, vector<40x2048xf32>,
      %54 = vector.extract_strided_slice %2 {offsets = [1, 0], sizes = [3, 2048], strides = [1, 1]} : vector<4x2048xf32> to vector<3x2048xf32>
      %55 = vector.extract_strided_slice %2 {offsets = [1, 0], sizes = [3, 2048], strides = [1, 1]} : vector<4x2048xf32> to vector<3x2048xf32>
      %56 = arith.fptosi %55 : vector<3x2048xf32> to vector<3x2048xi32>
      %57 = arith.sitofp %56 : vector<3x2048xi32> to vector<3x2048xf32>
      %58 = arith.subf %54, %57 : vector<3x2048xf32>
      %c0_21 = arith.constant 0 : index
      %c0_22 = arith.constant 0 : index
      %59 = vector.load %arg3[%c0_21, %c0_22] : memref<4x2048xf32, #tpu.memory_space<vmem>>, vector<3x2048xf32>
      %60 = arith.addf %58, %59 : vector<3x2048xf32>
      %c0_23 = arith.constant 0 : index
      %c0_24 = arith.constant 0 : index
      %61 = vector.load %arg6[%c0_23, %c0_24] : memref<3x2048xf32, #tpu.memory_space<vmem>>, vector<3x2048xf32>
      tpu.vector_store %arg6[%c0_23, %c0_24], %60 {strides = array<i32>} : memref<3x2048xf32, #tpu.memory_space<vmem>>, vector<3x2048xf32>,
    } else {
    }
    %c0_14 = arith.constant 0 : index
    %c0_15 = arith.constant 0 : index
    %49 = vector.load %arg5[%c0_14, %c0_15] : memref<40x2048xf32, #tpu.memory_space<vmem>>, vector<40x2048xf32>
    %50 = arith.addf %49, %45 : vector<40x2048xf32>
    %c0_16 = arith.constant 0 : index
    %c0_17 = arith.constant 0 : index
    %51 = vector.load %arg5[%c0_16, %c0_17] : memref<40x2048xf32, #tpu.memory_space<vmem>>, vector<40x2048xf32>
    tpu.vector_store %arg5[%c0_16, %c0_17], %50 {strides = array<i32>} : memref<40x2048xf32, #tpu.memory_space<vmem>>, vector<40x2048xf32>,
    return
  }
  func.func @transform_0(%arg0: i32, %arg1: i32) -> (i32, i32) {
    %c0_i32 = arith.constant 0 : i32
    %c0_i32_0 = arith.constant 0 : i32
    return %c0_i32, %arg0 : i32, i32
  }
  func.func @transform_1(%arg0: i32, %arg1: i32) -> (i32, i32) {
    %c0_i32 = arith.constant 0 : i32
    %c0_i32_0 = arith.constant 0 : i32
    %c0_i32_1 = arith.constant 0 : i32
    return %c0_i32, %c0_i32_0 : i32, i32
  }
  func.func @transform_2(%arg0: i32, %arg1: i32) -> (i32, i32) {
    %c0_i32 = arith.constant 0 : i32
    %c0_i32_0 = arith.constant 0 : i32
    return %c0_i32, %arg1 : i32, i32
  }
  func.func @transform_3(%arg0: i32, %arg1: i32) -> (i32, i32) {
    %c0_i32 = arith.constant 0 : i32
    %c0_i32_0 = arith.constant 0 : i32
    return %c0_i32, %arg0 : i32, i32
  }
  func.func @transform_4(%arg0: i32, %arg1: i32) -> (i32, i32) {
    %c0_i32 = arith.constant 0 : i32
    %c0_i32_0 = arith.constant 0 : i32
    return %c0_i32, %arg0 : i32, i32
  }
}

</mosaic_0001>

<llo_original>
// kernel: tpu_custom_call.1
$region0: #{tpu_custom_call.1}
  #allocation0 [shape = 'u32[]', space=smem, size = 0x4, offset = 0x4, fixed_abs, tag = 'smem constant byte address 0x4 - core index']
  #allocation1 [shape = 'u32[144,128]{1,0:T(1,128)}', space=vmem, size = 0x12000, scoped, tag = 'internal scratch']
  %s0 = inlined_call_operand.hbm [shape: f32[4,4096], index: 0, kind: input, shape index: {}]
  %s1 = inlined_call_operand.hbm [shape: f32[4,2048], index: 1, kind: input, shape index: {}]
  %s2 = inlined_call_operand.hbm [shape: f32[40,1024], index: 2, kind: input, shape index: {}]
  %s3 = inlined_call_operand.hbm [shape: f32[40,4096], index: 3, kind: output, shape index: {0}]
  %s4 = inlined_call_operand.hbm [shape: f32[3,4096], index: 4, kind: output, shape index: {1}]
  %5 = xla_tuple %s3, %s4
  %s6 = sld [smem:[#allocation0]]
  $region69: #{tpu_custom_call.1} parent=0
    _
  %s8 = ssub.s32 1, %s6
  %s9 = scalar_select 0, %s8, %s6
  $region1: #{tpu_custom_call.1} parent=0
    #allocation2 [shape = 'u8[65536]{0}', space=vmem, size = 0x10000, scoped, tag = 'input window, operand 0']
    #allocation3 [shape = 's32[2]{0}', space=sflag, size = 0x8, scoped, tag = 'scoped memory for tpu_custom_call.1']
    #allocation4 [shape = 's32[2]{0}', space=sflag, size = 0x8, scoped, tag = 'scoped memory for tpu_custom_call.1']
    #allocation5 [shape = 'u8[32768]{0}', space=vmem, size = 0x8000, scoped, tag = 'input window, operand 1, single buffered']
    #allocation6 [shape = 's32[1]{0}', space=sflag, size = 0x4, scoped, tag = 'scoped memory for tpu_custom_call.1']
    #allocation7 [shape = 'u8[163840]{0}', space=vmem, size = 0x28000, scoped, tag = 'input window, operand 2']
    #allocation8 [shape = 'u8[655360]{0}', space=vmem, size = 0xa0000, scoped, tag = 'output window, operand 0']
    #allocation9 [shape = 'u8[65536]{0}', space=vmem, size = 0x10000, scoped, tag = 'output window, operand 1']
    #allocation10 [shape = 's32[2]{0}', space=sflag, size = 0x8, scoped, tag = 'scoped memory for tpu_custom_call.1']
    %10 = vsyncpa [#allocation3], 0
    %s11 = scalar_lea.sflag [#allocation3], 1
    %12 = vsyncpa %s11, 0
    %13 = vsyncpa [#allocation6], 0
    %14 = vsyncpa [#allocation4], 0
    %s15 = scalar_lea.sflag [#allocation4], 1
    %16 = vsyncpa %s15, 0
    %17 = vsyncpa [#allocation10], 0
    %s18 = scalar_lea.sflag [#allocation10], 1
    %19 = vsyncpa %s18, 0
    loop: start=0, step=1, limit=6
    $region2: #{tpu_custom_call.1} parent=1 // loop_pre_header
      _
    $region3: #{tpu_custom_call.1} parent=1 // loop_header
      %s21 = sphi 0, %s25
      %p22 = scmp.ge.s32.totalorder %s21, 6
      %s28 = sphi 0, %s40
      %s29 = sphi 0, %s36
      %s30 = sphi 0, %s28
      %s31 = sphi 0, %s29
      %s32 = sphi 0, %s30
      %s33 = sphi 0, %s31
      %s43 = sphi 0, %s45
      %s46 = sphi 0, %s43
      %s47 = sphi 0, %s46
      %s63 = sphi 0, %s47
      %s67 = sphi 0, %s67
      %s69 = sphi 0, %s67
      %s70 = sphi 0, %s69
      %s84 = sphi 0, %s70
      %s90 = sphi 0, %s92
      %s93 = sphi 0, %s90
      %s94 = sphi 0, %s93
      %s110 = sphi 0, %s94
      %s116 = sphi 0, %s118
      %s119 = sphi 0, %s116
      %s120 = sphi 0, %s119
      %s136 = sphi 0, %s120
      %s142 = sphi 0, %s144
      %s145 = sphi 0, %s142
      %s146 = sphi 0, %s145
      %s162 = sphi 0, %s146
    $region4: #{tpu_custom_call.1} parent=1 // loop_header_branch
      %24 = sbr.rel (%p22) target = $region8
    $region5: #{tpu_custom_call.1} parent=1 // loop_body
      %s26 = ssub.s32 %s21, 1
      %s27 = ssub.s32 %s21, 2
      %s34 = sadd.s32 1, %s29
      %p35 = scmp.ge.s32.totalorder %s34, 2
      %s36 = scalar_select %p35, 0, %s34
      %s37 = sadd.s32 1, %s28
      %s38 = scalar_select %p35, %s37, %s28
      %p39 = scmp.ge.s32.totalorder %s38, 2
      %s40 = scalar_select %p39, 0, %s38
      %s41 = ssub.s32 %s28, %s40
      %p42 = scmp.eq.s32.totalorder %s41, 0
      %s44 = sadd.s32 %s43, 1
      %s45 = scalar_select %p42, %s43, %s44
      %p48 = pneg %p42
      %p49 = scmp.eq.s32.totalorder %s21, 3
      %p50 = por %p48, %p49
      %p51 = scmp.ne.s32.totalorder %s43, %s46
      %p52 = scmp.eq.s32.totalorder %s21, 0
      %p53 = por %p51, %p52
      %p54 = scmp.ne.s32.totalorder %s43, %s46
      %p55 = scmp.eq.s32.totalorder %s26, 3
      %p56 = por %p54, %p55
      %p57 = scmp.ne.s32.totalorder %s46, %s47
      %p58 = scmp.eq.s32.totalorder %s26, 0
      %p59 = por %p57, %p58
      %p60 = scmp.ne.s32.totalorder %s46, %s47
      %p61 = scmp.eq.s32.totalorder %s27, 3
      %p62 = por %p60, %p61
      %p64 = scmp.ne.s32.totalorder %s47, %s63
      %p65 = scmp.eq.s32.totalorder %s27, 0
      %p66 = por %p64, %p65
      %s68 = sadd.s32 %s67, 1
      %p71 = scmp.eq.s32.totalorder %s21, 3
      %p72 = scmp.ne.s32.totalorder %s67, %s69
      %p73 = scmp.eq.s32.totalorder %s21, 0
      %p74 = por %p72, %p73
      %p75 = scmp.ne.s32.totalorder %s67, %s69
      %p76 = scmp.eq.s32.totalorder %s26, 3
      %p77 = por %p75, %p76
      %p78 = scmp.ne.s32.totalorder %s69, %s70
      %p79 = scmp.eq.s32.totalorder %s26, 0
      %p80 = por %p78, %p79
      %p81 = scmp.ne.s32.totalorder %s69, %s70
      %p82 = scmp.eq.s32.totalorder %s27, 3
      %p83 = por %p81, %p82
      %p85 = scmp.ne.s32.totalorder %s70, %s84
      %p86 = scmp.eq.s32.totalorder %s27, 0
      %p87 = por %p85, %p86
      %s88 = ssub.s32 %s29, %s36
      %p89 = scmp.eq.s32.totalorder %s88, 0
      %s91 = sadd.s32 %s90, 1
      %s92 = scalar_select %p89, %s90, %s91
      %p95 = pneg %p89
      %p96 = scmp.eq.s32.totalorder %s21, 3
      %p97 = por %p95, %p96
      %p98 = scmp.ne.s32.totalorder %s90, %s93
      %p99 = scmp.eq.s32.totalorder %s21, 0
      %p100 = por %p98, %p99
      %p101 = scmp.ne.s32.totalorder %s90, %s93
      %p102 = scmp.eq.s32.totalorder %s26, 3
      %p103 = por %p101, %p102
      %p104 = scmp.ne.s32.totalorder %s93, %s94
      %p105 = scmp.eq.s32.totalorder %s26, 0
      %p106 = por %p104, %p105
      %p107 = scmp.ne.s32.totalorder %s93, %s94
      %p108 = scmp.eq.s32.totalorder %s27, 3
      %p109 = por %p107, %p108
      %p111 = scmp.ne.s32.totalorder %s94, %s110
      %p112 = scmp.eq.s32.totalorder %s27, 0
      %p113 = por %p111, %p112
      %s114 = ssub.s32 %s28, %s40
      %p115 = scmp.eq.s32.totalorder %s114, 0
      %s117 = sadd.s32 %s116, 1
      %s118 = scalar_select %p115, %s116, %s117
      %p121 = pneg %p115
      %p122 = scmp.eq.s32.totalorder %s21, 3
      %p123 = por %p121, %p122
      %p124 = scmp.ne.s32.totalorder %s116, %s119
      %p125 = scmp.eq.s32.totalorder %s21, 0
      %p126 = por %p124, %p125
      %p127 = scmp.ne.s32.totalorder %s116, %s119
      %p128 = scmp.eq.s32.totalorder %s26, 3
      %p129 = por %p127, %p128
      %p130 = scmp.ne.s32.totalorder %s119, %s120
      %p131 = scmp.eq.s32.totalorder %s26, 0
      %p132 = por %p130, %p131
      %p133 = scmp.ne.s32.totalorder %s119, %s120
      %p134 = scmp.eq.s32.totalorder %s27, 3
      %p135 = por %p133, %p134
      %p137 = scmp.ne.s32.totalorder %s120, %s136
      %p138 = scmp.eq.s32.totalorder %s27, 0
      %p139 = por %p137, %p138
      %s140 = ssub.s32 %s28, %s40
      %p141 = scmp.eq.s32.totalorder %s140, 0
      %s143 = sadd.s32 %s142, 1
      %s144 = scalar_select %p141, %s142, %s143
      %p147 = pneg %p141
      %p148 = scmp.eq.s32.totalorder %s21, 3
      %p149 = por %p147, %p148
      %p150 = scmp.ne.s32.totalorder %s142, %s145
      %p151 = scmp.eq.s32.totalorder %s21, 0
      %p152 = por %p150, %p151
      %p153 = scmp.ne.s32.totalorder %s142, %s145
      %p154 = scmp.eq.s32.totalorder %s26, 3
      %p155 = por %p153, %p154
      %p156 = scmp.ne.s32.totalorder %s145, %s146
      %p157 = scmp.eq.s32.totalorder %s26, 0
      %p158 = por %p156, %p157
      %p159 = scmp.ne.s32.totalorder %s145, %s146
      %p160 = scmp.eq.s32.totalorder %s27, 3
      %p161 = por %p159, %p160
      %p163 = scmp.ne.s32.totalorder %s146, %s162
      %p164 = scmp.eq.s32.totalorder %s27, 0
      %p165 = por %p163, %p164
      %p166 = scmp.le.s32.totalorder 1, %s21
      %p167 = scmp.lt.s32.totalorder %s21, 5
      %p168 = pnand %p166, %p167
      %p169 = pneg %p168
      // Predicated region
      $region9: #{tpu_custom_call.1} parent=5 // pred_check
        _
      $region10: #{tpu_custom_call.1} parent=5 // pred_check_branch
        %171 = sbr.rel (%p168) target = $region12
      $region11: #{tpu_custom_call.1} parent=5 // pred_region
        %s172 = ssub.s32 %s21, 1
        // Predicated region
        $region13: #{tpu_custom_call.1} parent=11 // pred_check
          %p173 = pneg %p80
        $region14: #{tpu_custom_call.1} parent=11 // pred_check_branch
          %175 = sbr.rel (%p173) target = $region16
        $region15: #{tpu_custom_call.1} parent=11 // pred_region
          %s177 = ssub.s32 1024, 1024
          %178 = vsyncadd [#allocation6], %s177
          %s180 = sshll.u32 [#allocation5], 4
          %s181 = int_to_ptr.vmem [resolvable:$true] %s180
          %183 = dma.hbm_to_vmem [thread:$0]  %s1, 1024, %s181, [#allocation6]
        $region16: #{tpu_custom_call.1} parent=11 // pred_fallthru
          _
      $region12: #{tpu_custom_call.1} parent=5 // pred_fallthru
        _
      %p184 = scmp.lt.s32.totalorder %s21, 4
      // Predicated region
      $region17: #{tpu_custom_call.1} parent=5 // pred_check
        %p185 = pneg %p184
      $region18: #{tpu_custom_call.1} parent=5 // pred_check_branch
        %187 = sbr.rel (%p185) target = $region20
      $region19: #{tpu_custom_call.1} parent=5 // pred_region
        // Predicated region
        $region21: #{tpu_custom_call.1} parent=19 // pred_check
          %p188 = pneg %p53
        $region22: #{tpu_custom_call.1} parent=19 // pred_check_branch
          %190 = sbr.rel (%p188) target = $region24
        $region23: #{tpu_custom_call.1} parent=19 // pred_region
          %s191 = sand.u32 %s21, 1
          %s192 = scalar_lea.sflag [#allocation3], %s191
          %s193 = sand.u32 %s43, 1
          %s194 = smul.addr %s193, 64
          %s195 = scalar_lea.vmem [#allocation2], %s194
          %s196 = smul.u32 16, %s28
          %s198 = ssub.s32 1024, 1024
          %199 = vsyncadd %s192, %s198
          %s200 = smul.addr %s196, 64
          %s201 = scalar_lea.hbm %s0, %s200
          %s203 = sshll.u32 %s195, 4
          %s204 = int_to_ptr.vmem [resolvable:$true] %s203
          %206 = dma.hbm_to_vmem [thread:$0]  %s201, 1024, %s204, %s192
        $region24: #{tpu_custom_call.1} parent=19 // pred_fallthru
          _
        // Predicated region
        $region25: #{tpu_custom_call.1} parent=19 // pred_check
          %p207 = pneg %p100
        $region26: #{tpu_custom_call.1} parent=19 // pred_check_branch
          %209 = sbr.rel (%p207) target = $region28
        $region27: #{tpu_custom_call.1} parent=19 // pred_region
          %s210 = sand.u32 %s21, 1
          %s211 = scalar_lea.sflag [#allocation3], %s210
          %s212 = sand.u32 %s90, 1
          %s213 = smul.addr %s212, 160
          %s214 = scalar_lea.vmem [#allocation7], %s213
          %s215 = smul.u32 4, %s29
          %s217 = ssub.s32 2560, 2560
          %218 = vsyncadd %s211, %s217
          %s219 = smul.addr %s215, 128
          %s220 = scalar_lea.hbm %s2, %s219
          %s221 = sshll.u32 %s214, 4
          %s222 = int_to_ptr.vmem [resolvable:$true] %s221
          %227 = dma.hbm_to_vmem [thread:$0]  %s220, 2560, %s222, %s211, 1024, 512, 32
        $region28: #{tpu_custom_call.1} parent=19 // pred_fallthru
          _
      $region20: #{tpu_custom_call.1} parent=5 // pred_fallthru
        _
      %p228 = scmp.le.s32.totalorder 1, %s21
      %p229 = scmp.lt.s32.totalorder %s21, 5
      %p230 = pnand %p228, %p229
      %p231 = pneg %p230
      // Predicated region
      $region29: #{tpu_custom_call.1} parent=5 // pred_check
        _
      $region30: #{tpu_custom_call.1} parent=5 // pred_check_branch
        %233 = sbr.rel (%p230) target = $region32
      $region31: #{tpu_custom_call.1} parent=5 // pred_region
        %s234 = ssub.s32 %s21, 1
        %s235 = sand.u32 %s26, 1
        %s236 = scalar_lea.sflag [#allocation3], %s235
        %s237 = sand.u32 %s46, 1
        %s238 = smul.addr %s237, 64
        %s239 = scalar_lea.vmem [#allocation2], %s238
        // Predicated region
        $region33: #{tpu_custom_call.1} parent=31 // pred_check
          %p240 = pneg %p59
        $region34: #{tpu_custom_call.1} parent=31 // pred_check_branch
          %242 = sbr.rel (%p240) target = $region36
        $region35: #{tpu_custom_call.1} parent=31 // pred_region
          %243 = dma.done %s236, 1024
        $region36: #{tpu_custom_call.1} parent=31 // pred_fallthru
          _
        // Predicated region
        $region37: #{tpu_custom_call.1} parent=31 // pred_check
          %p244 = pneg %p80
        $region38: #{tpu_custom_call.1} parent=31 // pred_check_branch
          %246 = sbr.rel (%p244) target = $region40
        $region39: #{tpu_custom_call.1} parent=31 // pred_region
          %247 = dma.done [#allocation6], 1024
        $region40: #{tpu_custom_call.1} parent=31 // pred_fallthru
          _
        %s248 = sand.u32 %s26, 1
        %s249 = scalar_lea.sflag [#allocation3], %s248
        %s250 = sand.u32 %s93, 1
        %s251 = smul.addr %s250, 160
        %s252 = scalar_lea.vmem [#allocation7], %s251
        // Predicated region
        $region41: #{tpu_custom_call.1} parent=31 // pred_check
          %p253 = pneg %p106
        $region42: #{tpu_custom_call.1} parent=31 // pred_check_branch
          %255 = sbr.rel (%p253) target = $region44
        $region43: #{tpu_custom_call.1} parent=31 // pred_region
          %256 = dma.done %s249, 2560
        $region44: #{tpu_custom_call.1} parent=31 // pred_fallthru
          _
        %s257 = sand.u32 %s26, 1
        %s258 = scalar_lea.sflag [#allocation3], %s257
        %s259 = sand.u32 %s46, 1
        %s260 = smul.addr %s259, 64
        %s261 = scalar_lea.vmem [#allocation2], %s260
        %p262 = pneg %p59
        %p263 = pneg %p56
        %p264 = pneg %p80
        %p265 = pneg %p77
        %s266 = sand.u32 %s26, 1
        %s267 = scalar_lea.sflag [#allocation3], %s266
        %s268 = sand.u32 %s93, 1
        %s269 = smul.addr %s268, 160
        %s270 = scalar_lea.vmem [#allocation7], %s269
        %p271 = pneg %p106
        %p272 = pneg %p103
        %p273 = pneg %p132
        %p274 = pneg %p129
        %s275 = sand.u32 %s119, 1
        %s276 = scalar_lea.sflag [#allocation4], %s275
        %s277 = sand.u32 %s119, 1
        %s278 = smul.addr %s277, 640
        %s279 = scalar_lea.vmem [#allocation8], %s278
        %p280 = pneg %p158
        %p281 = pneg %p155
        %s282 = sand.u32 %s145, 1
        %s283 = scalar_lea.sflag [#allocation10], %s282
        %s284 = sand.u32 %s145, 1
        %s285 = smul.addr %s284, 64
        %s286 = scalar_lea.vmem [#allocation9], %s285
        %s287 = smul.u32 16, %s30
        %s288 = smul.u32 4, %s31
        %s289 = smul.u32 16, %s30
        %s290 = smul.u32 16, %s30
        %v291 = vld [vmem:[%s239] sm:$0xff]
        %v292 = vld [vmem:[%s239 + $0x8] sm:$0xff]
        %v293 = vld [vmem:[%s239 + $0x10] sm:$0xff]
        %v294 = vld [vmem:[%s239 + $0x18] sm:$0xff]
        %v295 = vld [vmem:[%s239 + $0x20] sm:$0xff]
        %v296 = vld [vmem:[%s239 + $0x28] sm:$0xff]
        %v297 = vld [vmem:[%s239 + $0x30] sm:$0xff]
        %v298 = vld [vmem:[%s239 + $0x38] sm:$0xff]
        %v299 = vld [vmem:[#allocation5] sm:$0xff]
        %v300 = vld [vmem:[#allocation5 + $0x8] sm:$0xff]
        %v301 = vld [vmem:[#allocation5 + $0x10] sm:$0xff]
        %v302 = vld [vmem:[#allocation5 + $0x18] sm:$0xff]
        %v303 = vld [vmem:[#allocation5 + $0x20] sm:$0xff]
        %v304 = vld [vmem:[#allocation5 + $0x28] sm:$0xff]
        %v305 = vld [vmem:[#allocation5 + $0x30] sm:$0xff]
        %v306 = vld [vmem:[#allocation5 + $0x38] sm:$0xff]
        %v307 = vadd.f32 %v291, %v299
        %v308 = vadd.f32 %v292, %v300
        %v309 = vadd.f32 %v293, %v301
        %v310 = vadd.f32 %v294, %v302
        %v311 = vadd.f32 %v295, %v303
        %v312 = vadd.f32 %v296, %v304
        %v313 = vadd.f32 %v297, %v305
        %v314 = vadd.f32 %v298, %v306
        %v315 = vcvt.f32.s32.to.zero.pseudo %v307
        %v316 = vcvt.f32.s32.to.zero.pseudo %v308
        %v317 = vcvt.f32.s32.to.zero.pseudo %v309
        %v318 = vcvt.f32.s32.to.zero.pseudo %v310
        %v319 = vcvt.f32.s32.to.zero.pseudo %v311
        %v320 = vcvt.f32.s32.to.zero.pseudo %v312
        %v321 = vcvt.f32.s32.to.zero.pseudo %v313
        %v322 = vcvt.f32.s32.to.zero.pseudo %v314
        %vm323 = vcmp.gt.s32.totalorder %v315, 0
        %v324 = vsel %vm323, %v315, 0
        %vm325 = vcmp.gt.s32.totalorder %v316, 0
        %v326 = vsel %vm325, %v316, 0
        %vm327 = vcmp.gt.s32.totalorder %v317, 0
        %v328 = vsel %vm327, %v317, 0
        %vm329 = vcmp.gt.s32.totalorder %v318, 0
        %v330 = vsel %vm329, %v318, 0
        %vm331 = vcmp.gt.s32.totalorder %v319, 0
        %v332 = vsel %vm331, %v319, 0
        %vm333 = vcmp.gt.s32.totalorder %v320, 0
        %v334 = vsel %vm333, %v320, 0
        %vm335 = vcmp.gt.s32.totalorder %v321, 0
        %v336 = vsel %vm335, %v321, 0
        %vm337 = vcmp.gt.s32.totalorder %v322, 0
        %v338 = vsel %vm337, %v322, 0
        %vm339 = vcmp.lt.s32.totalorder %v324, 1
        %v340 = vsel %vm339, %v324, 1
        %vm341 = vcmp.lt.s32.totalorder %v326, 1
        %v342 = vsel %vm341, %v326, 1
        %vm343 = vcmp.lt.s32.totalorder %v328, 1
        %v344 = vsel %vm343, %v328, 1
        %vm345 = vcmp.lt.s32.totalorder %v330, 1
        %v346 = vsel %vm345, %v330, 1
        %vm347 = vcmp.lt.s32.totalorder %v332, 1
        %v348 = vsel %vm347, %v332, 1
        %vm349 = vcmp.lt.s32.totalorder %v334, 1
        %v350 = vsel %vm349, %v334, 1
        %vm351 = vcmp.lt.s32.totalorder %v336, 1
        %v352 = vsel %vm351, %v336, 1
        %vm353 = vcmp.lt.s32.totalorder %v338, 1
        %v354 = vsel %vm353, %v338, 1
        %vm355 = vcmp.lt.s32.totalorder %v324, 7
        %v356 = vsel %vm355, %v324, 7
        %vm357 = vcmp.lt.s32.totalorder %v326, 7
        %v358 = vsel %vm357, %v326, 7
        %vm359 = vcmp.lt.s32.totalorder %v328, 7
        %v360 = vsel %vm359, %v328, 7
        %vm361 = vcmp.lt.s32.totalorder %v330, 7
        %v362 = vsel %vm361, %v330, 7
        %vm363 = vcmp.lt.s32.totalorder %v332, 7
        %v364 = vsel %vm363, %v332, 7
        %vm365 = vcmp.lt.s32.totalorder %v334, 7
        %v366 = vsel %vm365, %v334, 7
        %vm367 = vcmp.lt.s32.totalorder %v336, 7
        %v368 = vsel %vm367, %v336, 7
        %vm369 = vcmp.lt.s32.totalorder %v338, 7
        %v370 = vsel %vm369, %v338, 7
        %v371 = vmul.u32 %v340, 8
        %v372 = vmul.u32 %v342, 8
        %v373 = vmul.u32 %v344, 8
        %v374 = vmul.u32 %v346, 8
        %v375 = vmul.u32 %v348, 8
        %v376 = vmul.u32 %v350, 8
        %v377 = vmul.u32 %v352, 8
        %v378 = vmul.u32 %v354, 8
        %v379 = vrot.slane %v356, 5
        %v380 = vrot.slane %v379, 4
        %v381 = vrot.slane %v358, 5
        %v382 = vrot.slane %v381, 4
        %v383 = vrot.slane %v360, 5
        %v384 = vrot.slane %v383, 4
        %v385 = vrot.slane %v362, 5
        %v386 = vrot.slane %v385, 4
        %v387 = vrot.slane %v364, 5
        %v388 = vrot.slane %v387, 4
        %v389 = vrot.slane %v366, 5
        %v390 = vrot.slane %v389, 4
        %v391 = vrot.slane %v368, 5
        %v392 = vrot.slane %v391, 4
        %v393 = vrot.slane %v370, 5
        %v394 = vrot.slane %v393, 4
        %v395 = vadd.s32 %v371, %v380
        %v396 = vadd.s32 %v372, %v382
        %v397 = vadd.s32 %v373, %v384
        %v398 = vadd.s32 %v374, %v386
        %v399 = vadd.s32 %v375, %v388
        %v400 = vadd.s32 %v376, %v390
        %v401 = vadd.s32 %v377, %v392
        %v402 = vadd.s32 %v378, %v394
        %v403 = vmul.u32 %v395, 8
        %v404 = vmul.u32 %v396, 8
        %v405 = vmul.u32 %v397, 8
        %v406 = vmul.u32 %v398, 8
        %v407 = vmul.u32 %v399, 8
        %v408 = vmul.u32 %v400, 8
        %v409 = vmul.u32 %v401, 8
        %v410 = vmul.u32 %v402, 8
        %v411 = vrot.slane %v356, 6
        %v412 = vrot.slane %v411, 4
        %v413 = vrot.slane %v358, 6
        %v414 = vrot.slane %v413, 4
        %v415 = vrot.slane %v360, 6
        %v416 = vrot.slane %v415, 4
        %v417 = vrot.slane %v362, 6
        %v418 = vrot.slane %v417, 4
        %v419 = vrot.slane %v364, 6
        %v420 = vrot.slane %v419, 4
        %v421 = vrot.slane %v366, 6
        %v422 = vrot.slane %v421, 4
        %v423 = vrot.slane %v368, 6
        %v424 = vrot.slane %v423, 4
        %v425 = vrot.slane %v370, 6
        %v426 = vrot.slane %v425, 4
        %v427 = vadd.s32 %v403, %v412
        %v428 = vadd.s32 %v404, %v414
        %v429 = vadd.s32 %v405, %v416
        %v430 = vadd.s32 %v406, %v418
        %v431 = vadd.s32 %v407, %v420
        %v432 = vadd.s32 %v408, %v422
        %v433 = vadd.s32 %v409, %v424
        %v434 = vadd.s32 %v410, %v426
        %v435 = vmul.u32 %v427, 8
        %v436 = vmul.u32 %v428, 8
        %v437 = vmul.u32 %v429, 8
        %v438 = vmul.u32 %v430, 8
        %v439 = vmul.u32 %v431, 8
        %v440 = vmul.u32 %v432, 8
        %v441 = vmul.u32 %v433, 8
        %v442 = vmul.u32 %v434, 8
        %v443 = vrot.slane %v356, 7
        %v444 = vrot.slane %v443, 4
        %v445 = vrot.slane %v358, 7
        %v446 = vrot.slane %v445, 4
        %v447 = vrot.slane %v360, 7
        %v448 = vrot.slane %v447, 4
        %v449 = vrot.slane %v362, 7
        %v450 = vrot.slane %v449, 4
        %v451 = vrot.slane %v364, 7
        %v452 = vrot.slane %v451, 4
        %v453 = vrot.slane %v366, 7
        %v454 = vrot.slane %v453, 4
        %v455 = vrot.slane %v368, 7
        %v456 = vrot.slane %v455, 4
        %v457 = vrot.slane %v370, 7
        %v458 = vrot.slane %v457, 4
        %v459 = vadd.s32 %v435, %v444
        %v460 = vadd.s32 %v436, %v446
        %v461 = vadd.s32 %v437, %v448
        %v462 = vadd.s32 %v438, %v450
        %v463 = vadd.s32 %v439, %v452
        %v464 = vadd.s32 %v440, %v454
        %v465 = vadd.s32 %v441, %v456
        %v466 = vadd.s32 %v442, %v458
        %s467 = smul.u32 %s31, 512
        %v468 = vstv %s467
        %v469 = vsub.s32 %v459, %v468
        %v470 = vsub.s32 %v460, %v468
        %v471 = vsub.s32 %v461, %v468
        %v472 = vsub.s32 %v462, %v468
        %v473 = vsub.s32 %v463, %v468
        %v474 = vsub.s32 %v464, %v468
        %v475 = vsub.s32 %v465, %v468
        %v476 = vsub.s32 %v466, %v468
        %v477 = vlaneseq
        %v478 = vshrl.u32 %v477, 7
        %v479 = vadd.s32 %v478, 8
        %v480 = vadd.s32 %v478, 16
        %v481 = vadd.s32 %v478, 24
        %v482 = vadd.s32 %v478, 32
        %v483 = vadd.s32 %v478, 40
        %v484 = vadd.s32 %v478, 48
        %v485 = vadd.s32 %v478, 56
        %v486 = vadd.s32 %v478, 64
        %v487 = vadd.s32 %v478, 72
        %v488 = vadd.s32 %v478, 80
        %v489 = vadd.s32 %v478, 88
        %v490 = vadd.s32 %v478, 96
        %v491 = vadd.s32 %v478, 104
        %v492 = vadd.s32 %v478, 112
        %v493 = vadd.s32 %v478, 120
        %v494 = vadd.s32 %v478, 128
        %v495 = vadd.s32 %v478, 136
        %v496 = vadd.s32 %v478, 144
        %v497 = vadd.s32 %v478, 152
        %v498 = vadd.s32 %v478, 160
        %v499 = vadd.s32 %v478, 168
        %v500 = vadd.s32 %v478, 176
        %v501 = vadd.s32 %v478, 184
        %v502 = vadd.s32 %v478, 192
        %v503 = vadd.s32 %v478, 200
        %v504 = vadd.s32 %v478, 208
        %v505 = vadd.s32 %v478, 216
        %v506 = vadd.s32 %v478, 224
        %v507 = vadd.s32 %v478, 232
        %v508 = vadd.s32 %v478, 240
        %v509 = vadd.s32 %v478, 248
        %v510 = vadd.s32 %v478, 256
        %v511 = vadd.s32 %v478, 264
        %v512 = vadd.s32 %v478, 272
        %v513 = vadd.s32 %v478, 280
        %v514 = vadd.s32 %v478, 288
        %v515 = vadd.s32 %v478, 296
        %v516 = vadd.s32 %v478, 304
        %v517 = vadd.s32 %v478, 312
        %v518 = vadd.s32 %v478, 320
        %v519 = vadd.s32 %v478, 328
        %v520 = vadd.s32 %v478, 336
        %v521 = vadd.s32 %v478, 344
        %v522 = vadd.s32 %v478, 352
        %v523 = vadd.s32 %v478, 360
        %v524 = vadd.s32 %v478, 368
        %v525 = vadd.s32 %v478, 376
        %v526 = vadd.s32 %v478, 384
        %v527 = vadd.s32 %v478, 392
        %v528 = vadd.s32 %v478, 400
        %v529 = vadd.s32 %v478, 408
        %v530 = vadd.s32 %v478, 416
        %v531 = vadd.s32 %v478, 424
        %v532 = vadd.s32 %v478, 432
        %v533 = vadd.s32 %v478, 440
        %v534 = vadd.s32 %v478, 448
        %v535 = vadd.s32 %v478, 456
        %v536 = vadd.s32 %v478, 464
        %v537 = vadd.s32 %v478, 472
        %v538 = vadd.s32 %v478, 480
        %v539 = vadd.s32 %v478, 488
        %v540 = vadd.s32 %v478, 496
        %v541 = vadd.s32 %v478, 504
        %v542 = vlaneseq
        %v543 = vshrl.u32 %v542, 7
        %v544 = vsub.s32 0, %v543
        %v545 = vrot.slane %v469, %v544
        %v546 = vlaneseq
        %v547 = vshrl.u32 %v546, 7
        %v548 = vsub.s32 4, %v547
        %v549 = vrot.slane %v469, %v548
        %v550 = vlaneseq
        %v551 = vshrl.u32 %v550, 7
        %v552 = vsub.s32 0, %v551
        %v553 = vrot.slane %v470, %v552
        %v554 = vlaneseq
        %v555 = vshrl.u32 %v554, 7
        %v556 = vsub.s32 4, %v555
        %v557 = vrot.slane %v470, %v556
        %v558 = vlaneseq
        %v559 = vshrl.u32 %v558, 7
        %v560 = vsub.s32 0, %v559
        %v561 = vrot.slane %v471, %v560
        %v562 = vlaneseq
        %v563 = vshrl.u32 %v562, 7
        %v564 = vsub.s32 4, %v563
        %v565 = vrot.slane %v471, %v564
        %v566 = vlaneseq
        %v567 = vshrl.u32 %v566, 7
        %v568 = vsub.s32 0, %v567
        %v569 = vrot.slane %v472, %v568
        %v570 = vlaneseq
        %v571 = vshrl.u32 %v570, 7
        %v572 = vsub.s32 4, %v571
        %v573 = vrot.slane %v472, %v572
        %v574 = vlaneseq
        %v575 = vshrl.u32 %v574, 7
        %v576 = vsub.s32 0, %v575
        %v577 = vrot.slane %v473, %v576
        %v578 = vlaneseq
        %v579 = vshrl.u32 %v578, 7
        %v580 = vsub.s32 4, %v579
        %v581 = vrot.slane %v473, %v580
        %v582 = vlaneseq
        %v583 = vshrl.u32 %v582, 7
        %v584 = vsub.s32 0, %v583
        %v585 = vrot.slane %v474, %v584
        %v586 = vlaneseq
        %v587 = vshrl.u32 %v586, 7
        %v588 = vsub.s32 4, %v587
        %v589 = vrot.slane %v474, %v588
        %v590 = vlaneseq
        %v591 = vshrl.u32 %v590, 7
        %v592 = vsub.s32 0, %v591
        %v593 = vrot.slane %v475, %v592
        %v594 = vlaneseq
        %v595 = vshrl.u32 %v594, 7
        %v596 = vsub.s32 4, %v595
        %v597 = vrot.slane %v475, %v596
        %v598 = vlaneseq
        %v599 = vshrl.u32 %v598, 7
        %v600 = vsub.s32 0, %v599
        %v601 = vrot.slane %v476, %v600
        %v602 = vlaneseq
        %v603 = vshrl.u32 %v602, 7
        %v604 = vsub.s32 4, %v603
        %v605 = vrot.slane %v476, %v604
        %v606 = vlaneseq
        %v607 = vshrl.u32 %v606, 7
        %v608 = vsub.s32 0, %v607
        %v609 = vrot.slane %v545, %v608
        %v610 = vlaneseq
        %v611 = vshrl.u32 %v610, 7
        %v612 = vsub.s32 0, %v611
        %v613 = vrot.slane %v549, %v612
        %v614 = vlaneseq
        %v615 = vshrl.u32 %v614, 7
        %v616 = vsub.s32 0, %v615
        %v617 = vrot.slane %v553, %v616
        %v618 = vlaneseq
        %v619 = vshrl.u32 %v618, 7
        %v620 = vsub.s32 0, %v619
        %v621 = vrot.slane %v557, %v620
        %v622 = vlaneseq
        %v623 = vshrl.u32 %v622, 7
        %v624 = vsub.s32 0, %v623
        %v625 = vrot.slane %v561, %v624
        %v626 = vlaneseq
        %v627 = vshrl.u32 %v626, 7
        %v628 = vsub.s32 0, %v627
        %v629 = vrot.slane %v565, %v628
        %v630 = vlaneseq
        %v631 = vshrl.u32 %v630, 7
        %v632 = vsub.s32 0, %v631
        %v633 = vrot.slane %v569, %v632
        %v634 = vlaneseq
        %v635 = vshrl.u32 %v634, 7
        %v636 = vsub.s32 0, %v635
        %v637 = vrot.slane %v573, %v636
        %v638 = vlaneseq
        %v639 = vshrl.u32 %v638, 7
        %v640 = vsub.s32 0, %v639
        %v641 = vrot.slane %v577, %v640
        %v642 = vlaneseq
        %v643 = vshrl.u32 %v642, 7
        %v644 = vsub.s32 0, %v643
        %v645 = vrot.slane %v581, %v644
        %v646 = vlaneseq
        %v647 = vshrl.u32 %v646, 7
        %v648 = vsub.s32 0, %v647
        %v649 = vrot.slane %v585, %v648
        %v650 = vlaneseq
        %v651 = vshrl.u32 %v650, 7
        %v652 = vsub.s32 0, %v651
        %v653 = vrot.slane %v589, %v652
        %v654 = vlaneseq
        %v655 = vshrl.u32 %v654, 7
        %v656 = vsub.s32 0, %v655
        %v657 = vrot.slane %v593, %v656
        %v658 = vlaneseq
        %v659 = vshrl.u32 %v658, 7
        %v660 = vsub.s32 0, %v659
        %v661 = vrot.slane %v597, %v660
        %v662 = vlaneseq
        %v663 = vshrl.u32 %v662, 7
        %v664 = vsub.s32 0, %v663
        %v665 = vrot.slane %v601, %v664
        %v666 = vlaneseq
        %v667 = vshrl.u32 %v666, 7
        %v668 = vsub.s32 0, %v667
        %v669 = vrot.slane %v605, %v668
        %vm670 = vcmp.eq.s32.totalorder %v478, %v609
        %vm671 = vcmp.eq.s32.totalorder %v478, %v613
        %vm672 = vcmp.eq.s32.totalorder %v478, %v617
        %vm673 = vcmp.eq.s32.totalorder %v478, %v621
        %vm674 = vcmp.eq.s32.totalorder %v478, %v625
        %vm675 = vcmp.eq.s32.totalorder %v478, %v629
        %vm676 = vcmp.eq.s32.totalorder %v478, %v633
        %vm677 = vcmp.eq.s32.totalorder %v478, %v637
        %vm678 = vcmp.eq.s32.totalorder %v478, %v641
        %vm679 = vcmp.eq.s32.totalorder %v478, %v645
        %vm680 = vcmp.eq.s32.totalorder %v478, %v649
        %vm681 = vcmp.eq.s32.totalorder %v478, %v653
        %vm682 = vcmp.eq.s32.totalorder %v478, %v657
        %vm683 = vcmp.eq.s32.totalorder %v478, %v661
        %vm684 = vcmp.eq.s32.totalorder %v478, %v665
        %vm685 = vcmp.eq.s32.totalorder %v478, %v669
        %vm686 = vcmp.eq.s32.totalorder %v479, %v609
        %vm687 = vcmp.eq.s32.totalorder %v479, %v613
        %vm688 = vcmp.eq.s32.totalorder %v479, %v617
        %vm689 = vcmp.eq.s32.totalorder %v479, %v621
        %vm690 = vcmp.eq.s32.totalorder %v479, %v625
        %vm691 = vcmp.eq.s32.totalorder %v479, %v629
        %vm692 = vcmp.eq.s32.totalorder %v479, %v633
        %vm693 = vcmp.eq.s32.totalorder %v479, %v637
        %vm694 = vcmp.eq.s32.totalorder %v479, %v641
        %vm695 = vcmp.eq.s32.totalorder %v479, %v645
        %vm696 = vcmp.eq.s32.totalorder %v479, %v649
        %vm697 = vcmp.eq.s32.totalorder %v479, %v653
        %vm698 = vcmp.eq.s32.totalorder %v479, %v657
        %vm699 = vcmp.eq.s32.totalorder %v479, %v661
        %vm700 = vcmp.eq.s32.totalorder %v479, %v665
        %vm701 = vcmp.eq.s32.totalorder %v479, %v669
        %vm702 = vcmp.eq.s32.totalorder %v480, %v609
        %vm703 = vcmp.eq.s32.totalorder %v480, %v613
        %vm704 = vcmp.eq.s32.totalorder %v480, %v617
        %vm705 = vcmp.eq.s32.totalorder %v480, %v621
        %vm706 = vcmp.eq.s32.totalorder %v480, %v625
        %vm707 = vcmp.eq.s32.totalorder %v480, %v629
        %vm708 = vcmp.eq.s32.totalorder %v480, %v633
        %vm709 = vcmp.eq.s32.totalorder %v480, %v637
        %vm710 = vcmp.eq.s32.totalorder %v480, %v641
        %vm711 = vcmp.eq.s32.totalorder %v480, %v645
        %vm712 = vcmp.eq.s32.totalorder %v480, %v649
        %vm713 = vcmp.eq.s32.totalorder %v480, %v653
        %vm714 = vcmp.eq.s32.totalorder %v480, %v657
        %vm715 = vcmp.eq.s32.totalorder %v480, %v661
        %vm716 = vcmp.eq.s32.totalorder %v480, %v665
        %vm717 = vcmp.eq.s32.totalorder %v480, %v669
        %vm718 = vcmp.eq.s32.totalorder %v481, %v609
        %vm719 = vcmp.eq.s32.totalorder %v481, %v613
        %vm720 = vcmp.eq.s32.totalorder %v481, %v617
        %vm721 = vcmp.eq.s32.totalorder %v481, %v621
        %vm722 = vcmp.eq.s32.totalorder %v481, %v625
        %vm723 = vcmp.eq.s32.totalorder %v481, %v629
        %vm724 = vcmp.eq.s32.totalorder %v481, %v633
        %vm725 = vcmp.eq.s32.totalorder %v481, %v637
        %vm726 = vcmp.eq.s32.totalorder %v481, %v641
        %vm727 = vcmp.eq.s32.totalorder %v481, %v645
        %vm728 = vcmp.eq.s32.totalorder %v481, %v649
        %vm729 = vcmp.eq.s32.totalorder %v481, %v653
        %vm730 = vcmp.eq.s32.totalorder %v481, %v657
        %vm731 = vcmp.eq.s32.totalorder %v481, %v661
        %vm732 = vcmp.eq.s32.totalorder %v481, %v665
        %vm733 = vcmp.eq.s32.totalorder %v481, %v669
        %vm734 = vcmp.eq.s32.totalorder %v482, %v609
        %vm735 = vcmp.eq.s32.totalorder %v482, %v613
        %vm736 = vcmp.eq.s32.totalorder %v482, %v617
        %vm737 = vcmp.eq.s32.totalorder %v482, %v621
        %vm738 = vcmp.eq.s32.totalorder %v482, %v625
        %vm739 = vcmp.eq.s32.totalorder %v482, %v629
        %vm740 = vcmp.eq.s32.totalorder %v482, %v633
        %vm741 = vcmp.eq.s32.totalorder %v482, %v637
        %vm742 = vcmp.eq.s32.totalorder %v482, %v641
        %vm743 = vcmp.eq.s32.totalorder %v482, %v645
        %vm744 = vcmp.eq.s32.totalorder %v482, %v649
        %vm745 = vcmp.eq.s32.totalorder %v482, %v653
        %vm746 = vcmp.eq.s32.totalorder %v482, %v657
        %vm747 = vcmp.eq.s32.totalorder %v482, %v661
        %vm748 = vcmp.eq.s32.totalorder %v482, %v665
        %vm749 = vcmp.eq.s32.totalorder %v482, %v669
        %vm750 = vcmp.eq.s32.totalorder %v483, %v609
        %vm751 = vcmp.eq.s32.totalorder %v483, %v613
        %vm752 = vcmp.eq.s32.totalorder %v483, %v617
        %vm753 = vcmp.eq.s32.totalorder %v483, %v621
        %vm754 = vcmp.eq.s32.totalorder %v483, %v625
        %vm755 = vcmp.eq.s32.totalorder %v483, %v629
        %vm756 = vcmp.eq.s32.totalorder %v483, %v633
        %vm757 = vcmp.eq.s32.totalorder %v483, %v637
        %vm758 = vcmp.eq.s32.totalorder %v483, %v641
        %vm759 = vcmp.eq.s32.totalorder %v483, %v645
        %vm760 = vcmp.eq.s32.totalorder %v483, %v649
        %vm761 = vcmp.eq.s32.totalorder %v483, %v653
        %vm762 = vcmp.eq.s32.totalorder %v483, %v657
        %vm763 = vcmp.eq.s32.totalorder %v483, %v661
        %vm764 = vcmp.eq.s32.totalorder %v483, %v665
        %vm765 = vcmp.eq.s32.totalorder %v483, %v669
        %vm766 = vcmp.eq.s32.totalorder %v484, %v609
        %vm767 = vcmp.eq.s32.totalorder %v484, %v613
        %vm768 = vcmp.eq.s32.totalorder %v484, %v617
        %vm769 = vcmp.eq.s32.totalorder %v484, %v621
        %vm770 = vcmp.eq.s32.totalorder %v484, %v625
        %vm771 = vcmp.eq.s32.totalorder %v484, %v629
        %vm772 = vcmp.eq.s32.totalorder %v484, %v633
        %vm773 = vcmp.eq.s32.totalorder %v484, %v637
        %vm774 = vcmp.eq.s32.totalorder %v484, %v641
        %vm775 = vcmp.eq.s32.totalorder %v484, %v645
        %vm776 = vcmp.eq.s32.totalorder %v484, %v649
        %vm777 = vcmp.eq.s32.totalorder %v484, %v653
        %vm778 = vcmp.eq.s32.totalorder %v484, %v657
        %vm779 = vcmp.eq.s32.totalorder %v484, %v661
        %vm780 = vcmp.eq.s32.totalorder %v484, %v665
        %vm781 = vcmp.eq.s32.totalorder %v484, %v669
        %vm782 = vcmp.eq.s32.totalorder %v485, %v609
        %vm783 = vcmp.eq.s32.totalorder %v485, %v613
        %vm784 = vcmp.eq.s32.totalorder %v485, %v617
        %vm785 = vcmp.eq.s32.totalorder %v485, %v621
        %vm786 = vcmp.eq.s32.totalorder %v485, %v625
        %vm787 = vcmp.eq.s32.totalorder %v485, %v629
        %vm788 = vcmp.eq.s32.totalorder %v485, %v633
        %vm789 = vcmp.eq.s32.totalorder %v485, %v637
        %vm790 = vcmp.eq.s32.totalorder %v485, %v641
        %vm791 = vcmp.eq.s32.totalorder %v485, %v645
        %vm792 = vcmp.eq.s32.totalorder %v485, %v649
        %vm793 = vcmp.eq.s32.totalorder %v485, %v653
        %vm794 = vcmp.eq.s32.totalorder %v485, %v657
        %vm795 = vcmp.eq.s32.totalorder %v485, %v661
        %vm796 = vcmp.eq.s32.totalorder %v485, %v665
        %vm797 = vcmp.eq.s32.totalorder %v485, %v669
        %vm798 = vcmp.eq.s32.totalorder %v486, %v609
        %vm799 = vcmp.eq.s32.totalorder %v486, %v613
        %vm800 = vcmp.eq.s32.totalorder %v486, %v617
        %vm801 = vcmp.eq.s32.totalorder %v486, %v621
        %vm802 = vcmp.eq.s32.totalorder %v486, %v625
        %vm803 = vcmp.eq.s32.totalorder %v486, %v629
        %vm804 = vcmp.eq.s32.totalorder %v486, %v633
        %vm805 = vcmp.eq.s32.totalorder %v486, %v637
        %vm806 = vcmp.eq.s32.totalorder %v486, %v641
        %vm807 = vcmp.eq.s32.totalorder %v486, %v645
        %vm808 = vcmp.eq.s32.totalorder %v486, %v649
        %vm809 = vcmp.eq.s32.totalorder %v486, %v653
        %vm810 = vcmp.eq.s32.totalorder %v486, %v657
        %vm811 = vcmp.eq.s32.totalorder %v486, %v661
        %vm812 = vcmp.eq.s32.totalorder %v486, %v665
        %vm813 = vcmp.eq.s32.totalorder %v486, %v669
        %vm814 = vcmp.eq.s32.totalorder %v487, %v609
        %vm815 = vcmp.eq.s32.totalorder %v487, %v613
        %vm816 = vcmp.eq.s32.totalorder %v487, %v617
        %vm817 = vcmp.eq.s32.totalorder %v487, %v621
        %vm818 = vcmp.eq.s32.totalorder %v487, %v625
        %vm819 = vcmp.eq.s32.totalorder %v487, %v629
        %vm820 = vcmp.eq.s32.totalorder %v487, %v633
        %vm821 = vcmp.eq.s32.totalorder %v487, %v637
        %vm822 = vcmp.eq.s32.totalorder %v487, %v641
        %vm823 = vcmp.eq.s32.totalorder %v487, %v645
        %vm824 = vcmp.eq.s32.totalorder %v487, %v649
        %vm825 = vcmp.eq.s32.totalorder %v487, %v653
        %vm826 = vcmp.eq.s32.totalorder %v487, %v657
        %vm827 = vcmp.eq.s32.totalorder %v487, %v661
        %vm828 = vcmp.eq.s32.totalorder %v487, %v665
        %vm829 = vcmp.eq.s32.totalorder %v487, %v669
        %vm830 = vcmp.eq.s32.totalorder %v488, %v609
        %vm831 = vcmp.eq.s32.totalorder %v488, %v613
        %vm832 = vcmp.eq.s32.totalorder %v488, %v617
        %vm833 = vcmp.eq.s32.totalorder %v488, %v621
        %vm834 = vcmp.eq.s32.totalorder %v488, %v625
        %vm835 = vcmp.eq.s32.totalorder %v488, %v629
        %vm836 = vcmp.eq.s32.totalorder %v488, %v633
        %vm837 = vcmp.eq.s32.totalorder %v488, %v637
        %vm838 = vcmp.eq.s32.totalorder %v488, %v641
        %vm839 = vcmp.eq.s32.totalorder %v488, %v645
        %vm840 = vcmp.eq.s32.totalorder %v488, %v649
        %vm841 = vcmp.eq.s32.totalorder %v488, %v653
        %vm842 = vcmp.eq.s32.totalorder %v488, %v657
        %vm843 = vcmp.eq.s32.totalorder %v488, %v661
        %vm844 = vcmp.eq.s32.totalorder %v488, %v665
        %vm845 = vcmp.eq.s32.totalorder %v488, %v669
        %vm846 = vcmp.eq.s32.totalorder %v489, %v609
        %vm847 = vcmp.eq.s32.totalorder %v489, %v613
        %vm848 = vcmp.eq.s32.totalorder %v489, %v617
        %vm849 = vcmp.eq.s32.totalorder %v489, %v621
        %vm850 = vcmp.eq.s32.totalorder %v489, %v625
        %vm851 = vcmp.eq.s32.totalorder %v489, %v629
        %vm852 = vcmp.eq.s32.totalorder %v489, %v633
        %vm853 = vcmp.eq.s32.totalorder %v489, %v637
        %vm854 = vcmp.eq.s32.totalorder %v489, %v641
        %vm855 = vcmp.eq.s32.totalorder %v489, %v645
        %vm856 = vcmp.eq.s32.totalorder %v489, %v649
        %vm857 = vcmp.eq.s32.totalorder %v489, %v653
        %vm858 = vcmp.eq.s32.totalorder %v489, %v657
        %vm859 = vcmp.eq.s32.totalorder %v489, %v661
        %vm860 = vcmp.eq.s32.totalorder %v489, %v665
        %vm861 = vcmp.eq.s32.totalorder %v489, %v669
        %vm862 = vcmp.eq.s32.totalorder %v490, %v609
        %vm863 = vcmp.eq.s32.totalorder %v490, %v613
        %vm864 = vcmp.eq.s32.totalorder %v490, %v617
        %vm865 = vcmp.eq.s32.totalorder %v490, %v621
        %vm866 = vcmp.eq.s32.totalorder %v490, %v625
        %vm867 = vcmp.eq.s32.totalorder %v490, %v629
        %vm868 = vcmp.eq.s32.totalorder %v490, %v633
        %vm869 = vcmp.eq.s32.totalorder %v490, %v637
        %vm870 = vcmp.eq.s32.totalorder %v490, %v641
        %vm871 = vcmp.eq.s32.totalorder %v490, %v645
        %vm872 = vcmp.eq.s32.totalorder %v490, %v649
        %vm873 = vcmp.eq.s32.totalorder %v490, %v653
        %vm874 = vcmp.eq.s32.totalorder %v490, %v657
        %vm875 = vcmp.eq.s32.totalorder %v490, %v661
        %vm876 = vcmp.eq.s32.totalorder %v490, %v665
        %vm877 = vcmp.eq.s32.totalorder %v490, %v669
        %vm878 = vcmp.eq.s32.totalorder %v491, %v609
        %vm879 = vcmp.eq.s32.totalorder %v491, %v613
        %vm880 = vcmp.eq.s32.totalorder %v491, %v617
        %vm881 = vcmp.eq.s32.totalorder %v491, %v621
        %vm882 = vcmp.eq.s32.totalorder %v491, %v625
        %vm883 = vcmp.eq.s32.totalorder %v491, %v629
        %vm884 = vcmp.eq.s32.totalorder %v491, %v633
        %vm885 = vcmp.eq.s32.totalorder %v491, %v637
        %vm886 = vcmp.eq.s32.totalorder %v491, %v641
        %vm887 = vcmp.eq.s32.totalorder %v491, %v645
        %vm888 = vcmp.eq.s32.totalorder %v491, %v649
        %vm889 = vcmp.eq.s32.totalorder %v491, %v653
        %vm890 = vcmp.eq.s32.totalorder %v491, %v657
        %vm891 = vcmp.eq.s32.totalorder %v491, %v661
        %vm892 = vcmp.eq.s32.totalorder %v491, %v665
        %vm893 = vcmp.eq.s32.totalorder %v491, %v669
        %vm894 = vcmp.eq.s32.totalorder %v492, %v609
        %vm895 = vcmp.eq.s32.totalorder %v492, %v613
        %vm896 = vcmp.eq.s32.totalorder %v492, %v617
        %vm897 = vcmp.eq.s32.totalorder %v492, %v621
        %vm898 = vcmp.eq.s32.totalorder %v492, %v625
        %vm899 = vcmp.eq.s32.totalorder %v492, %v629
        %vm900 = vcmp.eq.s32.totalorder %v492, %v633
        %vm901 = vcmp.eq.s32.totalorder %v492, %v637
        %vm902 = vcmp.eq.s32.totalorder %v492, %v641
        %vm903 = vcmp.eq.s32.totalorder %v492, %v645
        %vm904 = vcmp.eq.s32.totalorder %v492, %v649
        %vm905 = vcmp.eq.s32.totalorder %v492, %v653
        %vm906 = vcmp.eq.s32.totalorder %v492, %v657
        %vm907 = vcmp.eq.s32.totalorder %v492, %v661
        %vm908 = vcmp.eq.s32.totalorder %v492, %v665
        %vm909 = vcmp.eq.s32.totalorder %v492, %v669
        %vm910 = vcmp.eq.s32.totalorder %v493, %v609
        %vm911 = vcmp.eq.s32.totalorder %v493, %v613
        %vm912 = vcmp.eq.s32.totalorder %v493, %v617
        %vm913 = vcmp.eq.s32.totalorder %v493, %v621
        %vm914 = vcmp.eq.s32.totalorder %v493, %v625
        %vm915 = vcmp.eq.s32.totalorder %v493, %v629
        %vm916 = vcmp.eq.s32.totalorder %v493, %v633
        %vm917 = vcmp.eq.s32.totalorder %v493, %v637
        %vm918 = vcmp.eq.s32.totalorder %v493, %v641
        %vm919 = vcmp.eq.s32.totalorder %v493, %v645
        %vm920 = vcmp.eq.s32.totalorder %v493, %v649
        %vm921 = vcmp.eq.s32.totalorder %v493, %v653
        %vm922 = vcmp.eq.s32.totalorder %v493, %v657
        %vm923 = vcmp.eq.s32.totalorder %v493, %v661
        %vm924 = vcmp.eq.s32.totalorder %v493, %v665
        %vm925 = vcmp.eq.s32.totalorder %v493, %v669
        %vm926 = vcmp.eq.s32.totalorder %v494, %v609
        %vm927 = vcmp.eq.s32.totalorder %v494, %v613
        %vm928 = vcmp.eq.s32.totalorder %v494, %v617
        %vm929 = vcmp.eq.s32.totalorder %v494, %v621
        %vm930 = vcmp.eq.s32.totalorder %v494, %v625
        %vm931 = vcmp.eq.s32.totalorder %v494, %v629
        %vm932 = vcmp.eq.s32.totalorder %v494, %v633
        %vm933 = vcmp.eq.s32.totalorder %v494, %v637
        %vm934 = vcmp.eq.s32.totalorder %v494, %v641
        %vm935 = vcmp.eq.s32.totalorder %v494, %v645
        %vm936 = vcmp.eq.s32.totalorder %v494, %v649
        %vm937 = vcmp.eq.s32.totalorder %v494, %v653
        %vm938 = vcmp.eq.s32.totalorder %v494, %v657
        %vm939 = vcmp.eq.s32.totalorder %v494, %v661
        %vm940 = vcmp.eq.s32.totalorder %v494, %v665
        %vm941 = vcmp.eq.s32.totalorder %v494, %v669
        %vm942 = vcmp.eq.s32.totalorder %v495, %v609
        %vm943 = vcmp.eq.s32.totalorder %v495, %v613
        %vm944 = vcmp.eq.s32.totalorder %v495, %v617
        %vm945 = vcmp.eq.s32.totalorder %v495, %v621
        %vm946 = vcmp.eq.s32.totalorder %v495, %v625
        %vm947 = vcmp.eq.s32.totalorder %v495, %v629
        %vm948 = vcmp.eq.s32.totalorder %v495, %v633
        %vm949 = vcmp.eq.s32.totalorder %v495, %v637
        %vm950 = vcmp.eq.s32.totalorder %v495, %v641
        %vm951 = vcmp.eq.s32.totalorder %v495, %v645
        %vm952 = vcmp.eq.s32.totalorder %v495, %v649
        %vm953 = vcmp.eq.s32.totalorder %v495, %v653
        %vm954 = vcmp.eq.s32.totalorder %v495, %v657
        %vm955 = vcmp.eq.s32.totalorder %v495, %v661
        %vm956 = vcmp.eq.s32.totalorder %v495, %v665
        %vm957 = vcmp.eq.s32.totalorder %v495, %v669
        %vm958 = vcmp.eq.s32.totalorder %v496, %v609
        %vm959 = vcmp.eq.s32.totalorder %v496, %v613
        %vm960 = vcmp.eq.s32.totalorder %v496, %v617
        %vm961 = vcmp.eq.s32.totalorder %v496, %v621
        %vm962 = vcmp.eq.s32.totalorder %v496, %v625
        %vm963 = vcmp.eq.s32.totalorder %v496, %v629
        %vm964 = vcmp.eq.s32.totalorder %v496, %v633
        %vm965 = vcmp.eq.s32.totalorder %v496, %v637
        %vm966 = vcmp.eq.s32.totalorder %v496, %v641
        %vm967 = vcmp.eq.s32.totalorder %v496, %v645
        %vm968 = vcmp.eq.s32.totalorder %v496, %v649
        %vm969 = vcmp.eq.s32.totalorder %v496, %v653
        %vm970 = vcmp.eq.s32.totalorder %v496, %v657
        %vm971 = vcmp.eq.s32.totalorder %v496, %v661
        %vm972 = vcmp.eq.s32.totalorder %v496, %v665
        %vm973 = vcmp.eq.s32.totalorder %v496, %v669
        %vm974 = vcmp.eq.s32.totalorder %v497, %v609
        %vm975 = vcmp.eq.s32.totalorder %v497, %v613
        %vm976 = vcmp.eq.s32.totalorder %v497, %v617
        %vm977 = vcmp.eq.s32.totalorder %v497, %v621
        %vm978 = vcmp.eq.s32.totalorder %v497, %v625
        %vm979 = vcmp.eq.s32.totalorder %v497, %v629
        %vm980 = vcmp.eq.s32.totalorder %v497, %v633
        %vm981 = vcmp.eq.s32.totalorder %v497, %v637
        %vm982 = vcmp.eq.s32.totalorder %v497, %v641
        %vm983 = vcmp.eq.s32.totalorder %v497, %v645
        %vm984 = vcmp.eq.s32.totalorder %v497, %v649
        %vm985 = vcmp.eq.s32.totalorder %v497, %v653
        %vm986 = vcmp.eq.s32.totalorder %v497, %v657
        %vm987 = vcmp.eq.s32.totalorder %v497, %v661
        %vm988 = vcmp.eq.s32.totalorder %v497, %v665
        %vm989 = vcmp.eq.s32.totalorder %v497, %v669
        %vm990 = vcmp.eq.s32.totalorder %v498, %v609
        %vm991 = vcmp.eq.s32.totalorder %v498, %v613
        %vm992 = vcmp.eq.s32.totalorder %v498, %v617
        %vm993 = vcmp.eq.s32.totalorder %v498, %v621
        %vm994 = vcmp.eq.s32.totalorder %v498, %v625
        %vm995 = vcmp.eq.s32.totalorder %v498, %v629
        %vm996 = vcmp.eq.s32.totalorder %v498, %v633
        %vm997 = vcmp.eq.s32.totalorder %v498, %v637
        %vm998 = vcmp.eq.s32.totalorder %v498, %v641
        %vm999 = vcmp.eq.s32.totalorder %v498, %v645
        %vm1000 = vcmp.eq.s32.totalorder %v498, %v649
        %vm1001 = vcmp.eq.s32.totalorder %v498, %v653
        %vm1002 = vcmp.eq.s32.totalorder %v498, %v657
        %vm1003 = vcmp.eq.s32.totalorder %v498, %v661
        %vm1004 = vcmp.eq.s32.totalorder %v498, %v665
        %vm1005 = vcmp.eq.s32.totalorder %v498, %v669
        %vm1006 = vcmp.eq.s32.totalorder %v499, %v609
        %vm1007 = vcmp.eq.s32.totalorder %v499, %v613
        %vm1008 = vcmp.eq.s32.totalorder %v499, %v617
        %vm1009 = vcmp.eq.s32.totalorder %v499, %v621
        %vm1010 = vcmp.eq.s32.totalorder %v499, %v625
        %vm1011 = vcmp.eq.s32.totalorder %v499, %v629
        %vm1012 = vcmp.eq.s32.totalorder %v499, %v633
        %vm1013 = vcmp.eq.s32.totalorder %v499, %v637
        %vm1014 = vcmp.eq.s32.totalorder %v499, %v641
        %vm1015 = vcmp.eq.s32.totalorder %v499, %v645
        %vm1016 = vcmp.eq.s32.totalorder %v499, %v649
        %vm1017 = vcmp.eq.s32.totalorder %v499, %v653
        %vm1018 = vcmp.eq.s32.totalorder %v499, %v657
        %vm1019 = vcmp.eq.s32.totalorder %v499, %v661
        %vm1020 = vcmp.eq.s32.totalorder %v499, %v665
        %vm1021 = vcmp.eq.s32.totalorder %v499, %v669
        %vm1022 = vcmp.eq.s32.totalorder %v500, %v609
        %vm1023 = vcmp.eq.s32.totalorder %v500, %v613
        %vm1024 = vcmp.eq.s32.totalorder %v500, %v617
        %vm1025 = vcmp.eq.s32.totalorder %v500, %v621
        %vm1026 = vcmp.eq.s32.totalorder %v500, %v625
        %vm1027 = vcmp.eq.s32.totalorder %v500, %v629
        %vm1028 = vcmp.eq.s32.totalorder %v500, %v633
        %vm1029 = vcmp.eq.s32.totalorder %v500, %v637
        %vm1030 = vcmp.eq.s32.totalorder %v500, %v641
        %vm1031 = vcmp.eq.s32.totalorder %v500, %v645
        %vm1032 = vcmp.eq.s32.totalorder %v500, %v649
        %vm1033 = vcmp.eq.s32.totalorder %v500, %v653
        %vm1034 = vcmp.eq.s32.totalorder %v500, %v657
        %vm1035 = vcmp.eq.s32.totalorder %v500, %v661
        %vm1036 = vcmp.eq.s32.totalorder %v500, %v665
        %vm1037 = vcmp.eq.s32.totalorder %v500, %v669
        %vm1038 = vcmp.eq.s32.totalorder %v501, %v609
        %vm1039 = vcmp.eq.s32.totalorder %v501, %v613
        %vm1040 = vcmp.eq.s32.totalorder %v501, %v617
        %vm1041 = vcmp.eq.s32.totalorder %v501, %v621
        %vm1042 = vcmp.eq.s32.totalorder %v501, %v625
        %vm1043 = vcmp.eq.s32.totalorder %v501, %v629
        %vm1044 = vcmp.eq.s32.totalorder %v501, %v633
        %vm1045 = vcmp.eq.s32.totalorder %v501, %v637
        %vm1046 = vcmp.eq.s32.totalorder %v501, %v641
        %vm1047 = vcmp.eq.s32.totalorder %v501, %v645
        %vm1048 = vcmp.eq.s32.totalorder %v501, %v649
        %vm1049 = vcmp.eq.s32.totalorder %v501, %v653
        %vm1050 = vcmp.eq.s32.totalorder %v501, %v657
        %vm1051 = vcmp.eq.s32.totalorder %v501, %v661
        %vm1052 = vcmp.eq.s32.totalorder %v501, %v665
        %vm1053 = vcmp.eq.s32.totalorder %v501, %v669
        %vm1054 = vcmp.eq.s32.totalorder %v502, %v609
        %vm1055 = vcmp.eq.s32.totalorder %v502, %v613
        %vm1056 = vcmp.eq.s32.totalorder %v502, %v617
        %vm1057 = vcmp.eq.s32.totalorder %v502, %v621
        %vm1058 = vcmp.eq.s32.totalorder %v502, %v625
        %vm1059 = vcmp.eq.s32.totalorder %v502, %v629
        %vm1060 = vcmp.eq.s32.totalorder %v502, %v633
        %vm1061 = vcmp.eq.s32.totalorder %v502, %v637
        %vm1062 = vcmp.eq.s32.totalorder %v502, %v641
        %vm1063 = vcmp.eq.s32.totalorder %v502, %v645
        %vm1064 = vcmp.eq.s32.totalorder %v502, %v649
        %vm1065 = vcmp.eq.s32.totalorder %v502, %v653
        %vm1066 = vcmp.eq.s32.totalorder %v502, %v657
        %vm1067 = vcmp.eq.s32.totalorder %v502, %v661
        %vm1068 = vcmp.eq.s32.totalorder %v502, %v665
        %vm1069 = vcmp.eq.s32.totalorder %v502, %v669
        %vm1070 = vcmp.eq.s32.totalorder %v503, %v609
        %vm1071 = vcmp.eq.s32.totalorder %v503, %v613
        %vm1072 = vcmp.eq.s32.totalorder %v503, %v617
        %vm1073 = vcmp.eq.s32.totalorder %v503, %v621
        %vm1074 = vcmp.eq.s32.totalorder %v503, %v625
        %vm1075 = vcmp.eq.s32.totalorder %v503, %v629
        %vm1076 = vcmp.eq.s32.totalorder %v503, %v633
        %vm1077 = vcmp.eq.s32.totalorder %v503, %v637
        %vm1078 = vcmp.eq.s32.totalorder %v503, %v641
        %vm1079 = vcmp.eq.s32.totalorder %v503, %v645
        %vm1080 = vcmp.eq.s32.totalorder %v503, %v649
        %vm1081 = vcmp.eq.s32.totalorder %v503, %v653
        %vm1082 = vcmp.eq.s32.totalorder %v503, %v657
        %vm1083 = vcmp.eq.s32.totalorder %v503, %v661
        %vm1084 = vcmp.eq.s32.totalorder %v503, %v665
        %vm1085 = vcmp.eq.s32.totalorder %v503, %v669
        %vm1086 = vcmp.eq.s32.totalorder %v504, %v609
        %vm1087 = vcmp.eq.s32.totalorder %v504, %v613
        %vm1088 = vcmp.eq.s32.totalorder %v504, %v617
        %vm1089 = vcmp.eq.s32.totalorder %v504, %v621
        %vm1090 = vcmp.eq.s32.totalorder %v504, %v625
        %vm1091 = vcmp.eq.s32.totalorder %v504, %v629
        %vm1092 = vcmp.eq.s32.totalorder %v504, %v633
        %vm1093 = vcmp.eq.s32.totalorder %v504, %v637
        %vm1094 = vcmp.eq.s32.totalorder %v504, %v641
        %vm1095 = vcmp.eq.s32.totalorder %v504, %v645
        %vm1096 = vcmp.eq.s32.totalorder %v504, %v649
        %vm1097 = vcmp.eq.s32.totalorder %v504, %v653
        %vm1098 = vcmp.eq.s32.totalorder %v504, %v657
        %vm1099 = vcmp.eq.s32.totalorder %v504, %v661
        %vm1100 = vcmp.eq.s32.totalorder %v504, %v665
        %vm1101 = vcmp.eq.s32.totalorder %v504, %v669
        %vm1102 = vcmp.eq.s32.totalorder %v505, %v609
        %vm1103 = vcmp.eq.s32.totalorder %v505, %v613
        %vm1104 = vcmp.eq.s32.totalorder %v505, %v617
        %vm1105 = vcmp.eq.s32.totalorder %v505, %v621
        %vm1106 = vcmp.eq.s32.totalorder %v505, %v625
        %vm1107 = vcmp.eq.s32.totalorder %v505, %v629
        %vm1108 = vcmp.eq.s32.totalorder %v505, %v633
        %vm1109 = vcmp.eq.s32.totalorder %v505, %v637
        %vm1110 = vcmp.eq.s32.totalorder %v505, %v641
        %vm1111 = vcmp.eq.s32.totalorder %v505, %v645
        %vm1112 = vcmp.eq.s32.totalorder %v505, %v649
        %vm1113 = vcmp.eq.s32.totalorder %v505, %v653
        %vm1114 = vcmp.eq.s32.totalorder %v505, %v657
        %vm1115 = vcmp.eq.s32.totalorder %v505, %v661
        %vm1116 = vcmp.eq.s32.totalorder %v505, %v665
        %vm1117 = vcmp.eq.s32.totalorder %v505, %v669
        %vm1118 = vcmp.eq.s32.totalorder %v506, %v609
        %vm1119 = vcmp.eq.s32.totalorder %v506, %v613
        %vm1120 = vcmp.eq.s32.totalorder %v506, %v617
        %vm1121 = vcmp.eq.s32.totalorder %v506, %v621
        %vm1122 = vcmp.eq.s32.totalorder %v506, %v625
        %vm1123 = vcmp.eq.s32.totalorder %v506, %v629
        %vm1124 = vcmp.eq.s32.totalorder %v506, %v633
        %vm1125 = vcmp.eq.s32.totalorder %v506, %v637
        %vm1126 = vcmp.eq.s32.totalorder %v506, %v641
        %vm1127 = vcmp.eq.s32.totalorder %v506, %v645
        %vm1128 = vcmp.eq.s32.totalorder %v506, %v649
        %vm1129 = vcmp.eq.s32.totalorder %v506, %v653
        %vm1130 = vcmp.eq.s32.totalorder %v506, %v657
        %vm1131 = vcmp.eq.s32.totalorder %v506, %v661
        %vm1132 = vcmp.eq.s32.totalorder %v506, %v665
        %vm1133 = vcmp.eq.s32.totalorder %v506, %v669
        %vm1134 = vcmp.eq.s32.totalorder %v507, %v609
        %vm1135 = vcmp.eq.s32.totalorder %v507, %v613
        %vm1136 = vcmp.eq.s32.totalorder %v507, %v617
        %vm1137 = vcmp.eq.s32.totalorder %v507, %v621
        %vm1138 = vcmp.eq.s32.totalorder %v507, %v625
        %vm1139 = vcmp.eq.s32.totalorder %v507, %v629
        %vm1140 = vcmp.eq.s32.totalorder %v507, %v633
        %vm1141 = vcmp.eq.s32.totalorder %v507, %v637
        %vm1142 = vcmp.eq.s32.totalorder %v507, %v641
        %vm1143 = vcmp.eq.s32.totalorder %v507, %v645
        %vm1144 = vcmp.eq.s32.totalorder %v507, %v649
        %vm1145 = vcmp.eq.s32.totalorder %v507, %v653
        %vm1146 = vcmp.eq.s32.totalorder %v507, %v657
        %vm1147 = vcmp.eq.s32.totalorder %v507, %v661
        %vm1148 = vcmp.eq.s32.totalorder %v507, %v665
        %vm1149 = vcmp.eq.s32.totalorder %v507, %v669
        %vm1150 = vcmp.eq.s32.totalorder %v508, %v609
        %vm1151 = vcmp.eq.s32.totalorder %v508, %v613
        %vm1152 = vcmp.eq.s32.totalorder %v508, %v617
        %vm1153 = vcmp.eq.s32.totalorder %v508, %v621
        %vm1154 = vcmp.eq.s32.totalorder %v508, %v625
        %vm1155 = vcmp.eq.s32.totalorder %v508, %v629
        %vm1156 = vcmp.eq.s32.totalorder %v508, %v633
        %vm1157 = vcmp.eq.s32.totalorder %v508, %v637
        %vm1158 = vcmp.eq.s32.totalorder %v508, %v641
        %vm1159 = vcmp.eq.s32.totalorder %v508, %v645
        %vm1160 = vcmp.eq.s32.totalorder %v508, %v649
        %vm1161 = vcmp.eq.s32.totalorder %v508, %v653
        %vm1162 = vcmp.eq.s32.totalorder %v508, %v657
        %vm1163 = vcmp.eq.s32.totalorder %v508, %v661
        %vm1164 = vcmp.eq.s32.totalorder %v508, %v665
        %vm1165 = vcmp.eq.s32.totalorder %v508, %v669
        %vm1166 = vcmp.eq.s32.totalorder %v509, %v609
        %vm1167 = vcmp.eq.s32.totalorder %v509, %v613
        %vm1168 = vcmp.eq.s32.totalorder %v509, %v617
        %vm1169 = vcmp.eq.s32.totalorder %v509, %v621
        %vm1170 = vcmp.eq.s32.totalorder %v509, %v625
        %vm1171 = vcmp.eq.s32.totalorder %v509, %v629
        %vm1172 = vcmp.eq.s32.totalorder %v509, %v633
        %vm1173 = vcmp.eq.s32.totalorder %v509, %v637
        %vm1174 = vcmp.eq.s32.totalorder %v509, %v641
        %vm1175 = vcmp.eq.s32.totalorder %v509, %v645
        %vm1176 = vcmp.eq.s32.totalorder %v509, %v649
        %vm1177 = vcmp.eq.s32.totalorder %v509, %v653
        %vm1178 = vcmp.eq.s32.totalorder %v509, %v657
        %vm1179 = vcmp.eq.s32.totalorder %v509, %v661
        %vm1180 = vcmp.eq.s32.totalorder %v509, %v665
        %vm1181 = vcmp.eq.s32.totalorder %v509, %v669
        %vm1182 = vcmp.eq.s32.totalorder %v510, %v609
        %vm1183 = vcmp.eq.s32.totalorder %v510, %v613
        %vm1184 = vcmp.eq.s32.totalorder %v510, %v617
        %vm1185 = vcmp.eq.s32.totalorder %v510, %v621
        %vm1186 = vcmp.eq.s32.totalorder %v510, %v625
        %vm1187 = vcmp.eq.s32.totalorder %v510, %v629
        %vm1188 = vcmp.eq.s32.totalorder %v510, %v633
        %vm1189 = vcmp.eq.s32.totalorder %v510, %v637
        %vm1190 = vcmp.eq.s32.totalorder %v510, %v641
        %vm1191 = vcmp.eq.s32.totalorder %v510, %v645
        %vm1192 = vcmp.eq.s32.totalorder %v510, %v649
        %vm1193 = vcmp.eq.s32.totalorder %v510, %v653
        %vm1194 = vcmp.eq.s32.totalorder %v510, %v657
        %vm1195 = vcmp.eq.s32.totalorder %v510, %v661
        %vm1196 = vcmp.eq.s32.totalorder %v510, %v665
        %vm1197 = vcmp.eq.s32.totalorder %v510, %v669
        %vm1198 = vcmp.eq.s32.totalorder %v511, %v609
        %vm1199 = vcmp.eq.s32.totalorder %v511, %v613
        %vm1200 = vcmp.eq.s32.totalorder %v511, %v617
        %vm1201 = vcmp.eq.s32.totalorder %v511, %v621
        %vm1202 = vcmp.eq.s32.totalorder %v511, %v625
        %vm1203 = vcmp.eq.s32.totalorder %v511, %v629
        %vm1204 = vcmp.eq.s32.totalorder %v511, %v633
        %vm1205 = vcmp.eq.s32.totalorder %v511, %v637
        %vm1206 = vcmp.eq.s32.totalorder %v511, %v641
        %vm1207 = vcmp.eq.s32.totalorder %v511, %v645
        %vm1208 = vcmp.eq.s32.totalorder %v511, %v649
        %vm1209 = vcmp.eq.s32.totalorder %v511, %v653
        %vm1210 = vcmp.eq.s32.totalorder %v511, %v657
        %vm1211 = vcmp.eq.s32.totalorder %v511, %v661
        %vm1212 = vcmp.eq.s32.totalorder %v511, %v665
        %vm1213 = vcmp.eq.s32.totalorder %v511, %v669
        %vm1214 = vcmp.eq.s32.totalorder %v512, %v609
        %vm1215 = vcmp.eq.s32.totalorder %v512, %v613
        %vm1216 = vcmp.eq.s32.totalorder %v512, %v617
        %vm1217 = vcmp.eq.s32.totalorder %v512, %v621
        %vm1218 = vcmp.eq.s32.totalorder %v512, %v625
        %vm1219 = vcmp.eq.s32.totalorder %v512, %v629
        %vm1220 = vcmp.eq.s32.totalorder %v512, %v633
        %vm1221 = vcmp.eq.s32.totalorder %v512, %v637
        %vm1222 = vcmp.eq.s32.totalorder %v512, %v641
        %vm1223 = vcmp.eq.s32.totalorder %v512, %v645
        %vm1224 = vcmp.eq.s32.totalorder %v512, %v649
        %vm1225 = vcmp.eq.s32.totalorder %v512, %v653
        %vm1226 = vcmp.eq.s32.totalorder %v512, %v657
        %vm1227 = vcmp.eq.s32.totalorder %v512, %v661
        %vm1228 = vcmp.eq.s32.totalorder %v512, %v665
        %vm1229 = vcmp.eq.s32.totalorder %v512, %v669
        %vm1230 = vcmp.eq.s32.totalorder %v513, %v609
        %vm1231 = vcmp.eq.s32.totalorder %v513, %v613
        %vm1232 = vcmp.eq.s32.totalorder %v513, %v617
        %vm1233 = vcmp.eq.s32.totalorder %v513, %v621
        %vm1234 = vcmp.eq.s32.totalorder %v513, %v625
        %vm1235 = vcmp.eq.s32.totalorder %v513, %v629
        %vm1236 = vcmp.eq.s32.totalorder %v513, %v633
        %vm1237 = vcmp.eq.s32.totalorder %v513, %v637
        %vm1238 = vcmp.eq.s32.totalorder %v513, %v641
        %vm1239 = vcmp.eq.s32.totalorder %v513, %v645
        %vm1240 = vcmp.eq.s32.totalorder %v513, %v649
        %vm1241 = vcmp.eq.s32.totalorder %v513, %v653
        %vm1242 = vcmp.eq.s32.totalorder %v513, %v657
        %vm1243 = vcmp.eq.s32.totalorder %v513, %v661
        %vm1244 = vcmp.eq.s32.totalorder %v513, %v665
        %vm1245 = vcmp.eq.s32.totalorder %v513, %v669
        %vm1246 = vcmp.eq.s32.totalorder %v514, %v609
        %vm1247 = vcmp.eq.s32.totalorder %v514, %v613
        %vm1248 = vcmp.eq.s32.totalorder %v514, %v617
        %vm1249 = vcmp.eq.s32.totalorder %v514, %v621
        %vm1250 = vcmp.eq.s32.totalorder %v514, %v625
        %vm1251 = vcmp.eq.s32.totalorder %v514, %v629
        %vm1252 = vcmp.eq.s32.totalorder %v514, %v633
        %vm1253 = vcmp.eq.s32.totalorder %v514, %v637
        %vm1254 = vcmp.eq.s32.totalorder %v514, %v641
        %vm1255 = vcmp.eq.s32.totalorder %v514, %v645
        %vm1256 = vcmp.eq.s32.totalorder %v514, %v649
        %vm1257 = vcmp.eq.s32.totalorder %v514, %v653
        %vm1258 = vcmp.eq.s32.totalorder %v514, %v657
        %vm1259 = vcmp.eq.s32.totalorder %v514, %v661
        %vm1260 = vcmp.eq.s32.totalorder %v514, %v665
        %vm1261 = vcmp.eq.s32.totalorder %v514, %v669
        %vm1262 = vcmp.eq.s32.totalorder %v515, %v609
        %vm1263 = vcmp.eq.s32.totalorder %v515, %v613
        %vm1264 = vcmp.eq.s32.totalorder %v515, %v617
        %vm1265 = vcmp.eq.s32.totalorder %v515, %v621
        %vm1266 = vcmp.eq.s32.totalorder %v515, %v625
        %vm1267 = vcmp.eq.s32.totalorder %v515, %v629
        %vm1268 = vcmp.eq.s32.totalorder %v515, %v633
        %vm1269 = vcmp.eq.s32.totalorder %v515, %v637
        %vm1270 = vcmp.eq.s32.totalorder %v515, %v641
        %vm1271 = vcmp.eq.s32.totalorder %v515, %v645
        %vm1272 = vcmp.eq.s32.totalorder %v515, %v649
        %vm1273 = vcmp.eq.s32.totalorder %v515, %v653
        %vm1274 = vcmp.eq.s32.totalorder %v515, %v657
        %vm1275 = vcmp.eq.s32.totalorder %v515, %v661
        %vm1276 = vcmp.eq.s32.totalorder %v515, %v665
        %vm1277 = vcmp.eq.s32.totalorder %v515, %v669
        %vm1278 = vcmp.eq.s32.totalorder %v516, %v609
        %vm1279 = vcmp.eq.s32.totalorder %v516, %v613
        %vm1280 = vcmp.eq.s32.totalorder %v516, %v617
        %vm1281 = vcmp.eq.s32.totalorder %v516, %v621
        %vm1282 = vcmp.eq.s32.totalorder %v516, %v625
        %vm1283 = vcmp.eq.s32.totalorder %v516, %v629
        %vm1284 = vcmp.eq.s32.totalorder %v516, %v633
        %vm1285 = vcmp.eq.s32.totalorder %v516, %v637
        %vm1286 = vcmp.eq.s32.totalorder %v516, %v641
        %vm1287 = vcmp.eq.s32.totalorder %v516, %v645
        %vm1288 = vcmp.eq.s32.totalorder %v516, %v649
        %vm1289 = vcmp.eq.s32.totalorder %v516, %v653
        %vm1290 = vcmp.eq.s32.totalorder %v516, %v657
        %vm1291 = vcmp.eq.s32.totalorder %v516, %v661
        %vm1292 = vcmp.eq.s32.totalorder %v516, %v665
        %vm1293 = vcmp.eq.s32.totalorder %v516, %v669
        %vm1294 = vcmp.eq.s32.totalorder %v517, %v609
        %vm1295 = vcmp.eq.s32.totalorder %v517, %v613
        %vm1296 = vcmp.eq.s32.totalorder %v517, %v617
        %vm1297 = vcmp.eq.s32.totalorder %v517, %v621
        %vm1298 = vcmp.eq.s32.totalorder %v517, %v625
        %vm1299 = vcmp.eq.s32.totalorder %v517, %v629
        %vm1300 = vcmp.eq.s32.totalorder %v517, %v633
        %vm1301 = vcmp.eq.s32.totalorder %v517, %v637
        %vm1302 = vcmp.eq.s32.totalorder %v517, %v641
        %vm1303 = vcmp.eq.s32.totalorder %v517, %v645
        %vm1304 = vcmp.eq.s32.totalorder %v517, %v649
        %vm1305 = vcmp.eq.s32.totalorder %v517, %v653
        %vm1306 = vcmp.eq.s32.totalorder %v517, %v657
        %vm1307 = vcmp.eq.s32.totalorder %v517, %v661
        %vm1308 = vcmp.eq.s32.totalorder %v517, %v665
        %vm1309 = vcmp.eq.s32.totalorder %v517, %v669
        %vm1310 = vcmp.eq.s32.totalorder %v518, %v609
        %vm1311 = vcmp.eq.s32.totalorder %v518, %v613
        %vm1312 = vcmp.eq.s32.totalorder %v518, %v617
        %vm1313 = vcmp.eq.s32.totalorder %v518, %v621
        %vm1314 = vcmp.eq.s32.totalorder %v518, %v625
        %vm1315 = vcmp.eq.s32.totalorder %v518, %v629
        %vm1316 = vcmp.eq.s32.totalorder %v518, %v633
        %vm1317 = vcmp.eq.s32.totalorder %v518, %v637
        %vm1318 = vcmp.eq.s32.totalorder %v518, %v641
        %vm1319 = vcmp.eq.s32.totalorder %v518, %v645
        %vm1320 = vcmp.eq.s32.totalorder %v518, %v649
        %vm1321 = vcmp.eq.s32.totalorder %v518, %v653
        %vm1322 = vcmp.eq.s32.totalorder %v518, %v657
        %vm1323 = vcmp.eq.s32.totalorder %v518, %v661
        %vm1324 = vcmp.eq.s32.totalorder %v518, %v665
        %vm1325 = vcmp.eq.s32.totalorder %v518, %v669
        %vm1326 = vcmp.eq.s32.totalorder %v519, %v609
        %vm1327 = vcmp.eq.s32.totalorder %v519, %v613
        %vm1328 = vcmp.eq.s32.totalorder %v519, %v617
        %vm1329 = vcmp.eq.s32.totalorder %v519, %v621
        %vm1330 = vcmp.eq.s32.totalorder %v519, %v625
        %vm1331 = vcmp.eq.s32.totalorder %v519, %v629
        %vm1332 = vcmp.eq.s32.totalorder %v519, %v633
        %vm1333 = vcmp.eq.s32.totalorder %v519, %v637
        %vm1334 = vcmp.eq.s32.totalorder %v519, %v641
        %vm1335 = vcmp.eq.s32.totalorder %v519, %v645
        %vm1336 = vcmp.eq.s32.totalorder %v519, %v649
        %vm1337 = vcmp.eq.s32.totalorder %v519, %v653
        %vm1338 = vcmp.eq.s32.totalorder %v519, %v657
        %vm1339 = vcmp.eq.s32.totalorder %v519, %v661
        %vm1340 = vcmp.eq.s32.totalorder %v519, %v665
        %vm1341 = vcmp.eq.s32.totalorder %v519, %v669
        %vm1342 = vcmp.eq.s32.totalorder %v520, %v609
        %vm1343 = vcmp.eq.s32.totalorder %v520, %v613
        %vm1344 = vcmp.eq.s32.totalorder %v520, %v617
        %vm1345 = vcmp.eq.s32.totalorder %v520, %v621
        %vm1346 = vcmp.eq.s32.totalorder %v520, %v625
        %vm1347 = vcmp.eq.s32.totalorder %v520, %v629
        %vm1348 = vcmp.eq.s32.totalorder %v520, %v633
        %vm1349 = vcmp.eq.s32.totalorder %v520, %v637
        %vm1350 = vcmp.eq.s32.totalorder %v520, %v641
        %vm1351 = vcmp.eq.s32.totalorder %v520, %v645
        %vm1352 = vcmp.eq.s32.totalorder %v520, %v649
        %vm1353 = vcmp.eq.s32.totalorder %v520, %v653
        %vm1354 = vcmp.eq.s32.totalorder %v520, %v657
        %vm1355 = vcmp.eq.s32.totalorder %v520, %v661
        %vm1356 = vcmp.eq.s32.totalorder %v520, %v665
        %vm1357 = vcmp.eq.s32.totalorder %v520, %v669
        %vm1358 = vcmp.eq.s32.totalorder %v521, %v609
        %vm1359 = vcmp.eq.s32.totalorder %v521, %v613
        %vm1360 = vcmp.eq.s32.totalorder %v521, %v617
        %vm1361 = vcmp.eq.s32.totalorder %v521, %v621
        %vm1362 = vcmp.eq.s32.totalorder %v521, %v625
        %vm1363 = vcmp.eq.s32.totalorder %v521, %v629
        %vm1364 = vcmp.eq.s32.totalorder %v521, %v633
        %vm1365 = vcmp.eq.s32.totalorder %v521, %v637
        %vm1366 = vcmp.eq.s32.totalorder %v521, %v641
        %vm1367 = vcmp.eq.s32.totalorder %v521, %v645
        %vm1368 = vcmp.eq.s32.totalorder %v521, %v649
        %vm1369 = vcmp.eq.s32.totalorder %v521, %v653
        %vm1370 = vcmp.eq.s32.totalorder %v521, %v657
        %vm1371 = vcmp.eq.s32.totalorder %v521, %v661
        %vm1372 = vcmp.eq.s32.totalorder %v521, %v665
        %vm1373 = vcmp.eq.s32.totalorder %v521, %v669
        %vm1374 = vcmp.eq.s32.totalorder %v522, %v609
        %vm1375 = vcmp.eq.s32.totalorder %v522, %v613
        %vm1376 = vcmp.eq.s32.totalorder %v522, %v617
        %vm1377 = vcmp.eq.s32.totalorder %v522, %v621
        %vm1378 = vcmp.eq.s32.totalorder %v522, %v625
        %vm1379 = vcmp.eq.s32.totalorder %v522, %v629
        %vm1380 = vcmp.eq.s32.totalorder %v522, %v633
        %vm1381 = vcmp.eq.s32.totalorder %v522, %v637
        %vm1382 = vcmp.eq.s32.totalorder %v522, %v641
        %vm1383 = vcmp.eq.s32.totalorder %v522, %v645
        %vm1384 = vcmp.eq.s32.totalorder %v522, %v649
        %vm1385 = vcmp.eq.s32.totalorder %v522, %v653
        %vm1386 = vcmp.eq.s32.totalorder %v522, %v657
        %vm1387 = vcmp.eq.s32.totalorder %v522, %v661
        %vm1388 = vcmp.eq.s32.totalorder %v522, %v665
        %vm1389 = vcmp.eq.s32.totalorder %v522, %v669
        %vm1390 = vcmp.eq.s32.totalorder %v523, %v609
        %vm1391 = vcmp.eq.s32.totalorder %v523, %v613
        %vm1392 = vcmp.eq.s32.totalorder %v523, %v617
        %vm1393 = vcmp.eq.s32.totalorder %v523, %v621
        %vm1394 = vcmp.eq.s32.totalorder %v523, %v625
        %vm1395 = vcmp.eq.s32.totalorder %v523, %v629
        %vm1396 = vcmp.eq.s32.totalorder %v523, %v633
        %vm1397 = vcmp.eq.s32.totalorder %v523, %v637
        %vm1398 = vcmp.eq.s32.totalorder %v523, %v641
        %vm1399 = vcmp.eq.s32.totalorder %v523, %v645
        %vm1400 = vcmp.eq.s32.totalorder %v523, %v649
        %vm1401 = vcmp.eq.s32.totalorder %v523, %v653
        %vm1402 = vcmp.eq.s32.totalorder %v523, %v657
        %vm1403 = vcmp.eq.s32.totalorder %v523, %v661
        %vm1404 = vcmp.eq.s32.totalorder %v523, %v665
        %vm1405 = vcmp.eq.s32.totalorder %v523, %v669
        %vm1406 = vcmp.eq.s32.totalorder %v524, %v609
        %vm1407 = vcmp.eq.s32.totalorder %v524, %v613
        %vm1408 = vcmp.eq.s32.totalorder %v524, %v617
        %vm1409 = vcmp.eq.s32.totalorder %v524, %v621
        %vm1410 = vcmp.eq.s32.totalorder %v524, %v625
        %vm1411 = vcmp.eq.s32.totalorder %v524, %v629
        %vm1412 = vcmp.eq.s32.totalorder %v524, %v633
        %vm1413 = vcmp.eq.s32.totalorder %v524, %v637
        %vm1414 = vcmp.eq.s32.totalorder %v524, %v641
        %vm1415 = vcmp.eq.s32.totalorder %v524, %v645
        %vm1416 = vcmp.eq.s32.totalorder %v524, %v649
        %vm1417 = vcmp.eq.s32.totalorder %v524, %v653
        %vm1418 = vcmp.eq.s32.totalorder %v524, %v657
        %vm1419 = vcmp.eq.s32.totalorder %v524, %v661
        %vm1420 = vcmp.eq.s32.totalorder %v524, %v665
        %vm1421 = vcmp.eq.s32.totalorder %v524, %v669
        %vm1422 = vcmp.eq.s32.totalorder %v525, %v609
        %vm1423 = vcmp.eq.s32.totalorder %v525, %v613
        %vm1424 = vcmp.eq.s32.totalorder %v525, %v617
        %vm1425 = vcmp.eq.s32.totalorder %v525, %v621
        %vm1426 = vcmp.eq.s32.totalorder %v525, %v625
        %vm1427 = vcmp.eq.s32.totalorder %v525, %v629
        %vm1428 = vcmp.eq.s32.totalorder %v525, %v633
        %vm1429 = vcmp.eq.s32.totalorder %v525, %v637
        %vm1430 = vcmp.eq.s32.totalorder %v525, %v641
        %vm1431 = vcmp.eq.s32.totalorder %v525, %v645
        %vm1432 = vcmp.eq.s32.totalorder %v525, %v649
        %vm1433 = vcmp.eq.s32.totalorder %v525, %v653
        %vm1434 = vcmp.eq.s32.totalorder %v525, %v657
        %vm1435 = vcmp.eq.s32.totalorder %v525, %v661
        %vm1436 = vcmp.eq.s32.totalorder %v525, %v665
        %vm1437 = vcmp.eq.s32.totalorder %v525, %v669
        %vm1438 = vcmp.eq.s32.totalorder %v526, %v609
        %vm1439 = vcmp.eq.s32.totalorder %v526, %v613
        %vm1440 = vcmp.eq.s32.totalorder %v526, %v617
        %vm1441 = vcmp.eq.s32.totalorder %v526, %v621
        %vm1442 = vcmp.eq.s32.totalorder %v526, %v625
        %vm1443 = vcmp.eq.s32.totalorder %v526, %v629
        %vm1444 = vcmp.eq.s32.totalorder %v526, %v633
        %vm1445 = vcmp.eq.s32.totalorder %v526, %v637
        %vm1446 = vcmp.eq.s32.totalorder %v526, %v641
        %vm1447 = vcmp.eq.s32.totalorder %v526, %v645
        %vm1448 = vcmp.eq.s32.totalorder %v526, %v649
        %vm1449 = vcmp.eq.s32.totalorder %v526, %v653
        %vm1450 = vcmp.eq.s32.totalorder %v526, %v657
        %vm1451 = vcmp.eq.s32.totalorder %v526, %v661
        %vm1452 = vcmp.eq.s32.totalorder %v526, %v665
        %vm1453 = vcmp.eq.s32.totalorder %v526, %v669
        %vm1454 = vcmp.eq.s32.totalorder %v527, %v609
        %vm1455 = vcmp.eq.s32.totalorder %v527, %v613
        %vm1456 = vcmp.eq.s32.totalorder %v527, %v617
        %vm1457 = vcmp.eq.s32.totalorder %v527, %v621
        %vm1458 = vcmp.eq.s32.totalorder %v527, %v625
        %vm1459 = vcmp.eq.s32.totalorder %v527, %v629
        %vm1460 = vcmp.eq.s32.totalorder %v527, %v633
        %vm1461 = vcmp.eq.s32.totalorder %v527, %v637
        %vm1462 = vcmp.eq.s32.totalorder %v527, %v641
        %vm1463 = vcmp.eq.s32.totalorder %v527, %v645
        %vm1464 = vcmp.eq.s32.totalorder %v527, %v649
        %vm1465 = vcmp.eq.s32.totalorder %v527, %v653
        %vm1466 = vcmp.eq.s32.totalorder %v527, %v657
        %vm1467 = vcmp.eq.s32.totalorder %v527, %v661
        %vm1468 = vcmp.eq.s32.totalorder %v527, %v665
        %vm1469 = vcmp.eq.s32.totalorder %v527, %v669
        %vm1470 = vcmp.eq.s32.totalorder %v528, %v609
        %vm1471 = vcmp.eq.s32.totalorder %v528, %v613
        %vm1472 = vcmp.eq.s32.totalorder %v528, %v617
        %vm1473 = vcmp.eq.s32.totalorder %v528, %v621
        %vm1474 = vcmp.eq.s32.totalorder %v528, %v625
        %vm1475 = vcmp.eq.s32.totalorder %v528, %v629
        %vm1476 = vcmp.eq.s32.totalorder %v528, %v633
        %vm1477 = vcmp.eq.s32.totalorder %v528, %v637
        %vm1478 = vcmp.eq.s32.totalorder %v528, %v641
        %vm1479 = vcmp.eq.s32.totalorder %v528, %v645
        %vm1480 = vcmp.eq.s32.totalorder %v528, %v649
        %vm1481 = vcmp.eq.s32.totalorder %v528, %v653
        %vm1482 = vcmp.eq.s32.totalorder %v528, %v657
        %vm1483 = vcmp.eq.s32.totalorder %v528, %v661
        %vm1484 = vcmp.eq.s32.totalorder %v528, %v665
        %vm1485 = vcmp.eq.s32.totalorder %v528, %v669
        %vm1486 = vcmp.eq.s32.totalorder %v529, %v609
        %vm1487 = vcmp.eq.s32.totalorder %v529, %v613
        %vm1488 = vcmp.eq.s32.totalorder %v529, %v617
        %vm1489 = vcmp.eq.s32.totalorder %v529, %v621
        %vm1490 = vcmp.eq.s32.totalorder %v529, %v625
        %vm1491 = vcmp.eq.s32.totalorder %v529, %v629
        %vm1492 = vcmp.eq.s32.totalorder %v529, %v633
        %vm1493 = vcmp.eq.s32.totalorder %v529, %v637
        %vm1494 = vcmp.eq.s32.totalorder %v529, %v641
        %vm1495 = vcmp.eq.s32.totalorder %v529, %v645
        %vm1496 = vcmp.eq.s32.totalorder %v529, %v649
        %vm1497 = vcmp.eq.s32.totalorder %v529, %v653
        %vm1498 = vcmp.eq.s32.totalorder %v529, %v657
        %vm1499 = vcmp.eq.s32.totalorder %v529, %v661
        %vm1500 = vcmp.eq.s32.totalorder %v529, %v665
        %vm1501 = vcmp.eq.s32.totalorder %v529, %v669
        %vm1502 = vcmp.eq.s32.totalorder %v530, %v609
        %vm1503 = vcmp.eq.s32.totalorder %v530, %v613
        %vm1504 = vcmp.eq.s32.totalorder %v530, %v617
        %vm1505 = vcmp.eq.s32.totalorder %v530, %v621
        %vm1506 = vcmp.eq.s32.totalorder %v530, %v625
        %vm1507 = vcmp.eq.s32.totalorder %v530, %v629
        %vm1508 = vcmp.eq.s32.totalorder %v530, %v633
        %vm1509 = vcmp.eq.s32.totalorder %v530, %v637
        %vm1510 = vcmp.eq.s32.totalorder %v530, %v641
        %vm1511 = vcmp.eq.s32.totalorder %v530, %v645
        %vm1512 = vcmp.eq.s32.totalorder %v530, %v649
        %vm1513 = vcmp.eq.s32.totalorder %v530, %v653
        %vm1514 = vcmp.eq.s32.totalorder %v530, %v657
        %vm1515 = vcmp.eq.s32.totalorder %v530, %v661
        %vm1516 = vcmp.eq.s32.totalorder %v530, %v665
        %vm1517 = vcmp.eq.s32.totalorder %v530, %v669
        %vm1518 = vcmp.eq.s32.totalorder %v531, %v609
        %vm1519 = vcmp.eq.s32.totalorder %v531, %v613
        %vm1520 = vcmp.eq.s32.totalorder %v531, %v617
        %vm1521 = vcmp.eq.s32.totalorder %v531, %v621
        %vm1522 = vcmp.eq.s32.totalorder %v531, %v625
        %vm1523 = vcmp.eq.s32.totalorder %v531, %v629
        %vm1524 = vcmp.eq.s32.totalorder %v531, %v633
        %vm1525 = vcmp.eq.s32.totalorder %v531, %v637
        %vm1526 = vcmp.eq.s32.totalorder %v531, %v641
        %vm1527 = vcmp.eq.s32.totalorder %v531, %v645
        %vm1528 = vcmp.eq.s32.totalorder %v531, %v649
        %vm1529 = vcmp.eq.s32.totalorder %v531, %v653
        %vm1530 = vcmp.eq.s32.totalorder %v531, %v657
        %vm1531 = vcmp.eq.s32.totalorder %v531, %v661
        %vm1532 = vcmp.eq.s32.totalorder %v531, %v665
        %vm1533 = vcmp.eq.s32.totalorder %v531, %v669
        %vm1534 = vcmp.eq.s32.totalorder %v532, %v609
        %vm1535 = vcmp.eq.s32.totalorder %v532, %v613
        %vm1536 = vcmp.eq.s32.totalorder %v532, %v617
        %vm1537 = vcmp.eq.s32.totalorder %v532, %v621
        %vm1538 = vcmp.eq.s32.totalorder %v532, %v625
        %vm1539 = vcmp.eq.s32.totalorder %v532, %v629
        %vm1540 = vcmp.eq.s32.totalorder %v532, %v633
        %vm1541 = vcmp.eq.s32.totalorder %v532, %v637
        %vm1542 = vcmp.eq.s32.totalorder %v532, %v641
        %vm1543 = vcmp.eq.s32.totalorder %v532, %v645
        %vm1544 = vcmp.eq.s32.totalorder %v532, %v649
        %vm1545 = vcmp.eq.s32.totalorder %v532, %v653
        %vm1546 = vcmp.eq.s32.totalorder %v532, %v657
        %vm1547 = vcmp.eq.s32.totalorder %v532, %v661
        %vm1548 = vcmp.eq.s32.totalorder %v532, %v665
        %vm1549 = vcmp.eq.s32.totalorder %v532, %v669
        %vm1550 = vcmp.eq.s32.totalorder %v533, %v609
        %vm1551 = vcmp.eq.s32.totalorder %v533, %v613
        %vm1552 = vcmp.eq.s32.totalorder %v533, %v617
        %vm1553 = vcmp.eq.s32.totalorder %v533, %v621
        %vm1554 = vcmp.eq.s32.totalorder %v533, %v625
        %vm1555 = vcmp.eq.s32.totalorder %v533, %v629
        %vm1556 = vcmp.eq.s32.totalorder %v533, %v633
        %vm1557 = vcmp.eq.s32.totalorder %v533, %v637
        %vm1558 = vcmp.eq.s32.totalorder %v533, %v641
        %vm1559 = vcmp.eq.s32.totalorder %v533, %v645
        %vm1560 = vcmp.eq.s32.totalorder %v533, %v649
        %vm1561 = vcmp.eq.s32.totalorder %v533, %v653
        %vm1562 = vcmp.eq.s32.totalorder %v533, %v657
        %vm1563 = vcmp.eq.s32.totalorder %v533, %v661
        %vm1564 = vcmp.eq.s32.totalorder %v533, %v665
        %vm1565 = vcmp.eq.s32.totalorder %v533, %v669
        %vm1566 = vcmp.eq.s32.totalorder %v534, %v609
        %vm1567 = vcmp.eq.s32.totalorder %v534, %v613
        %vm1568 = vcmp.eq.s32.totalorder %v534, %v617
        %vm1569 = vcmp.eq.s32.totalorder %v534, %v621
        %vm1570 = vcmp.eq.s32.totalorder %v534, %v625
        %vm1571 = vcmp.eq.s32.totalorder %v534, %v629
        %vm1572 = vcmp.eq.s32.totalorder %v534, %v633
        %vm1573 = vcmp.eq.s32.totalorder %v534, %v637
        %vm1574 = vcmp.eq.s32.totalorder %v534, %v641
        %vm1575 = vcmp.eq.s32.totalorder %v534, %v645
        %vm1576 = vcmp.eq.s32.totalorder %v534, %v649
        %vm1577 = vcmp.eq.s32.totalorder %v534, %v653
        %vm1578 = vcmp.eq.s32.totalorder %v534, %v657
        %vm1579 = vcmp.eq.s32.totalorder %v534, %v661
        %vm1580 = vcmp.eq.s32.totalorder %v534, %v665
        %vm1581 = vcmp.eq.s32.totalorder %v534, %v669
        %vm1582 = vcmp.eq.s32.totalorder %v535, %v609
        %vm1583 = vcmp.eq.s32.totalorder %v535, %v613
        %vm1584 = vcmp.eq.s32.totalorder %v535, %v617
        %vm1585 = vcmp.eq.s32.totalorder %v535, %v621
        %vm1586 = vcmp.eq.s32.totalorder %v535, %v625
        %vm1587 = vcmp.eq.s32.totalorder %v535, %v629
        %vm1588 = vcmp.eq.s32.totalorder %v535, %v633
        %vm1589 = vcmp.eq.s32.totalorder %v535, %v637
        %vm1590 = vcmp.eq.s32.totalorder %v535, %v641
        %vm1591 = vcmp.eq.s32.totalorder %v535, %v645
        %vm1592 = vcmp.eq.s32.totalorder %v535, %v649
        %vm1593 = vcmp.eq.s32.totalorder %v535, %v653
        %vm1594 = vcmp.eq.s32.totalorder %v535, %v657
        %vm1595 = vcmp.eq.s32.totalorder %v535, %v661
        %vm1596 = vcmp.eq.s32.totalorder %v535, %v665
        %vm1597 = vcmp.eq.s32.totalorder %v535, %v669
        %vm1598 = vcmp.eq.s32.totalorder %v536, %v609
        %vm1599 = vcmp.eq.s32.totalorder %v536, %v613
        %vm1600 = vcmp.eq.s32.totalorder %v536, %v617
        %vm1601 = vcmp.eq.s32.totalorder %v536, %v621
        %vm1602 = vcmp.eq.s32.totalorder %v536, %v625
        %vm1603 = vcmp.eq.s32.totalorder %v536, %v629
        %vm1604 = vcmp.eq.s32.totalorder %v536, %v633
        %vm1605 = vcmp.eq.s32.totalorder %v536, %v637
        %vm1606 = vcmp.eq.s32.totalorder %v536, %v641
        %vm1607 = vcmp.eq.s32.totalorder %v536, %v645
        %vm1608 = vcmp.eq.s32.totalorder %v536, %v649
        %vm1609 = vcmp.eq.s32.totalorder %v536, %v653
        %vm1610 = vcmp.eq.s32.totalorder %v536, %v657
        %vm1611 = vcmp.eq.s32.totalorder %v536, %v661
        %vm1612 = vcmp.eq.s32.totalorder %v536, %v665
        %vm1613 = vcmp.eq.s32.totalorder %v536, %v669
        %vm1614 = vcmp.eq.s32.totalorder %v537, %v609
        %vm1615 = vcmp.eq.s32.totalorder %v537, %v613
        %vm1616 = vcmp.eq.s32.totalorder %v537, %v617
        %vm1617 = vcmp.eq.s32.totalorder %v537, %v621
        %vm1618 = vcmp.eq.s32.totalorder %v537, %v625
        %vm1619 = vcmp.eq.s32.totalorder %v537, %v629
        %vm1620 = vcmp.eq.s32.totalorder %v537, %v633
        %vm1621 = vcmp.eq.s32.totalorder %v537, %v637
        %vm1622 = vcmp.eq.s32.totalorder %v537, %v641
        %vm1623 = vcmp.eq.s32.totalorder %v537, %v645
        %vm1624 = vcmp.eq.s32.totalorder %v537, %v649
        %vm1625 = vcmp.eq.s32.totalorder %v537, %v653
        %vm1626 = vcmp.eq.s32.totalorder %v537, %v657
        %vm1627 = vcmp.eq.s32.totalorder %v537, %v661
        %vm1628 = vcmp.eq.s32.totalorder %v537, %v665
        %vm1629 = vcmp.eq.s32.totalorder %v537, %v669
        %vm1630 = vcmp.eq.s32.totalorder %v538, %v609
        %vm1631 = vcmp.eq.s32.totalorder %v538, %v613
        %vm1632 = vcmp.eq.s32.totalorder %v538, %v617
        %vm1633 = vcmp.eq.s32.totalorder %v538, %v621
        %vm1634 = vcmp.eq.s32.totalorder %v538, %v625
        %vm1635 = vcmp.eq.s32.totalorder %v538, %v629
        %vm1636 = vcmp.eq.s32.totalorder %v538, %v633
        %vm1637 = vcmp.eq.s32.totalorder %v538, %v637
        %vm1638 = vcmp.eq.s32.totalorder %v538, %v641
        %vm1639 = vcmp.eq.s32.totalorder %v538, %v645
        %vm1640 = vcmp.eq.s32.totalorder %v538, %v649
        %vm1641 = vcmp.eq.s32.totalorder %v538, %v653
        %vm1642 = vcmp.eq.s32.totalorder %v538, %v657
        %vm1643 = vcmp.eq.s32.totalorder %v538, %v661
        %vm1644 = vcmp.eq.s32.totalorder %v538, %v665
        %vm1645 = vcmp.eq.s32.totalorder %v538, %v669
        %vm1646 = vcmp.eq.s32.totalorder %v539, %v609
        %vm1647 = vcmp.eq.s32.totalorder %v539, %v613
        %vm1648 = vcmp.eq.s32.totalorder %v539, %v617
        %vm1649 = vcmp.eq.s32.totalorder %v539, %v621
        %vm1650 = vcmp.eq.s32.totalorder %v539, %v625
        %vm1651 = vcmp.eq.s32.totalorder %v539, %v629
        %vm1652 = vcmp.eq.s32.totalorder %v539, %v633
        %vm1653 = vcmp.eq.s32.totalorder %v539, %v637
        %vm1654 = vcmp.eq.s32.totalorder %v539, %v641
        %vm1655 = vcmp.eq.s32.totalorder %v539, %v645
        %vm1656 = vcmp.eq.s32.totalorder %v539, %v649
        %vm1657 = vcmp.eq.s32.totalorder %v539, %v653
        %vm1658 = vcmp.eq.s32.totalorder %v539, %v657
        %vm1659 = vcmp.eq.s32.totalorder %v539, %v661
        %vm1660 = vcmp.eq.s32.totalorder %v539, %v665
        %vm1661 = vcmp.eq.s32.totalorder %v539, %v669
        %vm1662 = vcmp.eq.s32.totalorder %v540, %v609
        %vm1663 = vcmp.eq.s32.totalorder %v540, %v613
        %vm1664 = vcmp.eq.s32.totalorder %v540, %v617
        %vm1665 = vcmp.eq.s32.totalorder %v540, %v621
        %vm1666 = vcmp.eq.s32.totalorder %v540, %v625
        %vm1667 = vcmp.eq.s32.totalorder %v540, %v629
        %vm1668 = vcmp.eq.s32.totalorder %v540, %v633
        %vm1669 = vcmp.eq.s32.totalorder %v540, %v637
        %vm1670 = vcmp.eq.s32.totalorder %v540, %v641
        %vm1671 = vcmp.eq.s32.totalorder %v540, %v645
        %vm1672 = vcmp.eq.s32.totalorder %v540, %v649
        %vm1673 = vcmp.eq.s32.totalorder %v540, %v653
        %vm1674 = vcmp.eq.s32.totalorder %v540, %v657
        %vm1675 = vcmp.eq.s32.totalorder %v540, %v661
        %vm1676 = vcmp.eq.s32.totalorder %v540, %v665
        %vm1677 = vcmp.eq.s32.totalorder %v540, %v669
        %vm1678 = vcmp.eq.s32.totalorder %v541, %v609
        %vm1679 = vcmp.eq.s32.totalorder %v541, %v613
        %vm1680 = vcmp.eq.s32.totalorder %v541, %v617
        %vm1681 = vcmp.eq.s32.totalorder %v541, %v621
        %vm1682 = vcmp.eq.s32.totalorder %v541, %v625
        %vm1683 = vcmp.eq.s32.totalorder %v541, %v629
        %vm1684 = vcmp.eq.s32.totalorder %v541, %v633
        %vm1685 = vcmp.eq.s32.totalorder %v541, %v637
        %vm1686 = vcmp.eq.s32.totalorder %v541, %v641
        %vm1687 = vcmp.eq.s32.totalorder %v541, %v645
        %vm1688 = vcmp.eq.s32.totalorder %v541, %v649
        %vm1689 = vcmp.eq.s32.totalorder %v541, %v653
        %vm1690 = vcmp.eq.s32.totalorder %v541, %v657
        %vm1691 = vcmp.eq.s32.totalorder %v541, %v661
        %vm1692 = vcmp.eq.s32.totalorder %v541, %v665
        %vm1693 = vcmp.eq.s32.totalorder %v541, %v669
        %v1694 = vsel %vm670, 1, 0
        %v1695 = vsel %vm671, 1, 0
        %v1696 = vsel %vm672, 1, 0
        %v1697 = vsel %vm673, 1, 0
        %v1698 = vsel %vm674, 1, 0
        %v1699 = vsel %vm675, 1, 0
        %v1700 = vsel %vm676, 1, 0
        %v1701 = vsel %vm677, 1, 0
        %v1702 = vsel %vm678, 1, 0
        %v1703 = vsel %vm679, 1, 0
        %v1704 = vsel %vm680, 1, 0
        %v1705 = vsel %vm681, 1, 0
        %v1706 = vsel %vm682, 1, 0
        %v1707 = vsel %vm683, 1, 0
        %v1708 = vsel %vm684, 1, 0
        %v1709 = vsel %vm685, 1, 0
        %v1710 = vsel %vm686, 1, 0
        %v1711 = vsel %vm687, 1, 0
        %v1712 = vsel %vm688, 1, 0
        %v1713 = vsel %vm689, 1, 0
        %v1714 = vsel %vm690, 1, 0
        %v1715 = vsel %vm691, 1, 0
        %v1716 = vsel %vm692, 1, 0
        %v1717 = vsel %vm693, 1, 0
        %v1718 = vsel %vm694, 1, 0
        %v1719 = vsel %vm695, 1, 0
        %v1720 = vsel %vm696, 1, 0
        %v1721 = vsel %vm697, 1, 0
        %v1722 = vsel %vm698, 1, 0
        %v1723 = vsel %vm699, 1, 0
        %v1724 = vsel %vm700, 1, 0
        %v1725 = vsel %vm701, 1, 0
        %v1726 = vsel %vm702, 1, 0
        %v1727 = vsel %vm703, 1, 0
        %v1728 = vsel %vm704, 1, 0
        %v1729 = vsel %vm705, 1, 0
        %v1730 = vsel %vm706, 1, 0
        %v1731 = vsel %vm707, 1, 0
        %v1732 = vsel %vm708, 1, 0
        %v1733 = vsel %vm709, 1, 0
        %v1734 = vsel %vm710, 1, 0
        %v1735 = vsel %vm711, 1, 0
        %v1736 = vsel %vm712, 1, 0
        %v1737 = vsel %vm713, 1, 0
        %v1738 = vsel %vm714, 1, 0
        %v1739 = vsel %vm715, 1, 0
        %v1740 = vsel %vm716, 1, 0
        %v1741 = vsel %vm717, 1, 0
        %v1742 = vsel %vm718, 1, 0
        %v1743 = vsel %vm719, 1, 0
        %v1744 = vsel %vm720, 1, 0
        %v1745 = vsel %vm721, 1, 0
        %v1746 = vsel %vm722, 1, 0
        %v1747 = vsel %vm723, 1, 0
        %v1748 = vsel %vm724, 1, 0
        %v1749 = vsel %vm725, 1, 0
        %v1750 = vsel %vm726, 1, 0
        %v1751 = vsel %vm727, 1, 0
        %v1752 = vsel %vm728, 1, 0
        %v1753 = vsel %vm729, 1, 0
        %v1754 = vsel %vm730, 1, 0
        %v1755 = vsel %vm731, 1, 0
        %v1756 = vsel %vm732, 1, 0
        %v1757 = vsel %vm733, 1, 0
        %v1758 = vsel %vm734, 1, 0
        %v1759 = vsel %vm735, 1, 0
        %v1760 = vsel %vm736, 1, 0
        %v1761 = vsel %vm737, 1, 0
        %v1762 = vsel %vm738, 1, 0
        %v1763 = vsel %vm739, 1, 0
        %v1764 = vsel %vm740, 1, 0
        %v1765 = vsel %vm741, 1, 0
        %v1766 = vsel %vm742, 1, 0
        %v1767 = vsel %vm743, 1, 0
        %v1768 = vsel %vm744, 1, 0
        %v1769 = vsel %vm745, 1, 0
        %v1770 = vsel %vm746, 1, 0
        %v1771 = vsel %vm747, 1, 0
        %v1772 = vsel %vm748, 1, 0
        %v1773 = vsel %vm749, 1, 0
        %v1774 = vsel %vm750, 1, 0
        %v1775 = vsel %vm751, 1, 0
        %v1776 = vsel %vm752, 1, 0
        %v1777 = vsel %vm753, 1, 0
        %v1778 = vsel %vm754, 1, 0
        %v1779 = vsel %vm755, 1, 0
        %v1780 = vsel %vm756, 1, 0
        %v1781 = vsel %vm757, 1, 0
        %v1782 = vsel %vm758, 1, 0
        %v1783 = vsel %vm759, 1, 0
        %v1784 = vsel %vm760, 1, 0
        %v1785 = vsel %vm761, 1, 0
        %v1786 = vsel %vm762, 1, 0
        %v1787 = vsel %vm763, 1, 0
        %v1788 = vsel %vm764, 1, 0
        %v1789 = vsel %vm765, 1, 0
        %v1790 = vsel %vm766, 1, 0
        %v1791 = vsel %vm767, 1, 0
        %v1792 = vsel %vm768, 1, 0
        %v1793 = vsel %vm769, 1, 0
        %v1794 = vsel %vm770, 1, 0
        %v1795 = vsel %vm771, 1, 0
        %v1796 = vsel %vm772, 1, 0
        %v1797 = vsel %vm773, 1, 0
        %v1798 = vsel %vm774, 1, 0
        %v1799 = vsel %vm775, 1, 0
        %v1800 = vsel %vm776, 1, 0
        %v1801 = vsel %vm777, 1, 0
        %v1802 = vsel %vm778, 1, 0
        %v1803 = vsel %vm779, 1, 0
        %v1804 = vsel %vm780, 1, 0
        %v1805 = vsel %vm781, 1, 0
        %v1806 = vsel %vm782, 1, 0
        %v1807 = vsel %vm783, 1, 0
        %v1808 = vsel %vm784, 1, 0
        %v1809 = vsel %vm785, 1, 0
        %v1810 = vsel %vm786, 1, 0
        %v1811 = vsel %vm787, 1, 0
        %v1812 = vsel %vm788, 1, 0
        %v1813 = vsel %vm789, 1, 0
        %v1814 = vsel %vm790, 1, 0
        %v1815 = vsel %vm791, 1, 0
        %v1816 = vsel %vm792, 1, 0
        %v1817 = vsel %vm793, 1, 0
        %v1818 = vsel %vm794, 1, 0
        %v1819 = vsel %vm795, 1, 0
        %v1820 = vsel %vm796, 1, 0
        %v1821 = vsel %vm797, 1, 0
        %v1822 = vsel %vm798, 1, 0
        %v1823 = vsel %vm799, 1, 0
        %v1824 = vsel %vm800, 1, 0
        %v1825 = vsel %vm801, 1, 0
        %v1826 = vsel %vm802, 1, 0
        %v1827 = vsel %vm803, 1, 0
        %v1828 = vsel %vm804, 1, 0
        %v1829 = vsel %vm805, 1, 0
        %v1830 = vsel %vm806, 1, 0
        %v1831 = vsel %vm807, 1, 0
        %v1832 = vsel %vm808, 1, 0
        %v1833 = vsel %vm809, 1, 0
        %v1834 = vsel %vm810, 1, 0
        %v1835 = vsel %vm811, 1, 0
        %v1836 = vsel %vm812, 1, 0
        %v1837 = vsel %vm813, 1, 0
        %v1838 = vsel %vm814, 1, 0
        %v1839 = vsel %vm815, 1, 0
        %v1840 = vsel %vm816, 1, 0
        %v1841 = vsel %vm817, 1, 0
        %v1842 = vsel %vm818, 1, 0
        %v1843 = vsel %vm819, 1, 0
        %v1844 = vsel %vm820, 1, 0
        %v1845 = vsel %vm821, 1, 0
        %v1846 = vsel %vm822, 1, 0
        %v1847 = vsel %vm823, 1, 0
        %v1848 = vsel %vm824, 1, 0
        %v1849 = vsel %vm825, 1, 0
        %v1850 = vsel %vm826, 1, 0
        %v1851 = vsel %vm827, 1, 0
        %v1852 = vsel %vm828, 1, 0
        %v1853 = vsel %vm829, 1, 0
        %v1854 = vsel %vm830, 1, 0
        %v1855 = vsel %vm831, 1, 0
        %v1856 = vsel %vm832, 1, 0
        %v1857 = vsel %vm833, 1, 0
        %v1858 = vsel %vm834, 1, 0
        %v1859 = vsel %vm835, 1, 0
        %v1860 = vsel %vm836, 1, 0
        %v1861 = vsel %vm837, 1, 0
        %v1862 = vsel %vm838, 1, 0
        %v1863 = vsel %vm839, 1, 0
        %v1864 = vsel %vm840, 1, 0
        %v1865 = vsel %vm841, 1, 0
        %v1866 = vsel %vm842, 1, 0
        %v1867 = vsel %vm843, 1, 0
        %v1868 = vsel %vm844, 1, 0
        %v1869 = vsel %vm845, 1, 0
        %v1870 = vsel %vm846, 1, 0
        %v1871 = vsel %vm847, 1, 0
        %v1872 = vsel %vm848, 1, 0
        %v1873 = vsel %vm849, 1, 0
        %v1874 = vsel %vm850, 1, 0
        %v1875 = vsel %vm851, 1, 0
        %v1876 = vsel %vm852, 1, 0
        %v1877 = vsel %vm853, 1, 0
        %v1878 = vsel %vm854, 1, 0
        %v1879 = vsel %vm855, 1, 0
        %v1880 = vsel %vm856, 1, 0
        %v1881 = vsel %vm857, 1, 0
        %v1882 = vsel %vm858, 1, 0
        %v1883 = vsel %vm859, 1, 0
        %v1884 = vsel %vm860, 1, 0
        %v1885 = vsel %vm861, 1, 0
        %v1886 = vsel %vm862, 1, 0
        %v1887 = vsel %vm863, 1, 0
        %v1888 = vsel %vm864, 1, 0
        %v1889 = vsel %vm865, 1, 0
        %v1890 = vsel %vm866, 1, 0
        %v1891 = vsel %vm867, 1, 0
        %v1892 = vsel %vm868, 1, 0
        %v1893 = vsel %vm869, 1, 0
        %v1894 = vsel %vm870, 1, 0
        %v1895 = vsel %vm871, 1, 0
        %v1896 = vsel %vm872, 1, 0
        %v1897 = vsel %vm873, 1, 0
        %v1898 = vsel %vm874, 1, 0
        %v1899 = vsel %vm875, 1, 0
        %v1900 = vsel %vm876, 1, 0
        %v1901 = vsel %vm877, 1, 0
        %v1902 = vsel %vm878, 1, 0
        %v1903 = vsel %vm879, 1, 0
        %v1904 = vsel %vm880, 1, 0
        %v1905 = vsel %vm881, 1, 0
        %v1906 = vsel %vm882, 1, 0
        %v1907 = vsel %vm883, 1, 0
        %v1908 = vsel %vm884, 1, 0
        %v1909 = vsel %vm885, 1, 0
        %v1910 = vsel %vm886, 1, 0
        %v1911 = vsel %vm887, 1, 0
        %v1912 = vsel %vm888, 1, 0
        %v1913 = vsel %vm889, 1, 0
        %v1914 = vsel %vm890, 1, 0
        %v1915 = vsel %vm891, 1, 0
        %v1916 = vsel %vm892, 1, 0
        %v1917 = vsel %vm893, 1, 0
        %v1918 = vsel %vm894, 1, 0
        %v1919 = vsel %vm895, 1, 0
        %v1920 = vsel %vm896, 1, 0
        %v1921 = vsel %vm897, 1, 0
        %v1922 = vsel %vm898, 1, 0
        %v1923 = vsel %vm899, 1, 0
        %v1924 = vsel %vm900, 1, 0
        %v1925 = vsel %vm901, 1, 0
        %v1926 = vsel %vm902, 1, 0
        %v1927 = vsel %vm903, 1, 0
        %v1928 = vsel %vm904, 1, 0
        %v1929 = vsel %vm905, 1, 0
        %v1930 = vsel %vm906, 1, 0
        %v1931 = vsel %vm907, 1, 0
        %v1932 = vsel %vm908, 1, 0
        %v1933 = vsel %vm909, 1, 0
        %v1934 = vsel %vm910, 1, 0
        %v1935 = vsel %vm911, 1, 0
        %v1936 = vsel %vm912, 1, 0
        %v1937 = vsel %vm913, 1, 0
        %v1938 = vsel %vm914, 1, 0
        %v1939 = vsel %vm915, 1, 0
        %v1940 = vsel %vm916, 1, 0
        %v1941 = vsel %vm917, 1, 0
        %v1942 = vsel %vm918, 1, 0
        %v1943 = vsel %vm919, 1, 0
        %v1944 = vsel %vm920, 1, 0
        %v1945 = vsel %vm921, 1, 0
        %v1946 = vsel %vm922, 1, 0
        %v1947 = vsel %vm923, 1, 0
        %v1948 = vsel %vm924, 1, 0
        %v1949 = vsel %vm925, 1, 0
        %v1950 = vsel %vm926, 1, 0
        %v1951 = vsel %vm927, 1, 0
        %v1952 = vsel %vm928, 1, 0
        %v1953 = vsel %vm929, 1, 0
        %v1954 = vsel %vm930, 1, 0
        %v1955 = vsel %vm931, 1, 0
        %v1956 = vsel %vm932, 1, 0
        %v1957 = vsel %vm933, 1, 0
        %v1958 = vsel %vm934, 1, 0
        %v1959 = vsel %vm935, 1, 0
        %v1960 = vsel %vm936, 1, 0
        %v1961 = vsel %vm937, 1, 0
        %v1962 = vsel %vm938, 1, 0
        %v1963 = vsel %vm939, 1, 0
        %v1964 = vsel %vm940, 1, 0
        %v1965 = vsel %vm941, 1, 0
        %v1966 = vsel %vm942, 1, 0
        %v1967 = vsel %vm943, 1, 0
        %v1968 = vsel %vm944, 1, 0
        %v1969 = vsel %vm945, 1, 0
        %v1970 = vsel %vm946, 1, 0
        %v1971 = vsel %vm947, 1, 0
        %v1972 = vsel %vm948, 1, 0
        %v1973 = vsel %vm949, 1, 0
        %v1974 = vsel %vm950, 1, 0
        %v1975 = vsel %vm951, 1, 0
        %v1976 = vsel %vm952, 1, 0
        %v1977 = vsel %vm953, 1, 0
        %v1978 = vsel %vm954, 1, 0
        %v1979 = vsel %vm955, 1, 0
        %v1980 = vsel %vm956, 1, 0
        %v1981 = vsel %vm957, 1, 0
        %v1982 = vsel %vm958, 1, 0
        %v1983 = vsel %vm959, 1, 0
        %v1984 = vsel %vm960, 1, 0
        %v1985 = vsel %vm961, 1, 0
        %v1986 = vsel %vm962, 1, 0
        %v1987 = vsel %vm963, 1, 0
        %v1988 = vsel %vm964, 1, 0
        %v1989 = vsel %vm965, 1, 0
        %v1990 = vsel %vm966, 1, 0
        %v1991 = vsel %vm967, 1, 0
        %v1992 = vsel %vm968, 1, 0
        %v1993 = vsel %vm969, 1, 0
        %v1994 = vsel %vm970, 1, 0
        %v1995 = vsel %vm971, 1, 0
        %v1996 = vsel %vm972, 1, 0
        %v1997 = vsel %vm973, 1, 0
        %v1998 = vsel %vm974, 1, 0
        %v1999 = vsel %vm975, 1, 0
        %v2000 = vsel %vm976, 1, 0
        %v2001 = vsel %vm977, 1, 0
        %v2002 = vsel %vm978, 1, 0
        %v2003 = vsel %vm979, 1, 0
        %v2004 = vsel %vm980, 1, 0
        %v2005 = vsel %vm981, 1, 0
        %v2006 = vsel %vm982, 1, 0
        %v2007 = vsel %vm983, 1, 0
        %v2008 = vsel %vm984, 1, 0
        %v2009 = vsel %vm985, 1, 0
        %v2010 = vsel %vm986, 1, 0
        %v2011 = vsel %vm987, 1, 0
        %v2012 = vsel %vm988, 1, 0
        %v2013 = vsel %vm989, 1, 0
        %v2014 = vsel %vm990, 1, 0
        %v2015 = vsel %vm991, 1, 0
        %v2016 = vsel %vm992, 1, 0
        %v2017 = vsel %vm993, 1, 0
        %v2018 = vsel %vm994, 1, 0
        %v2019 = vsel %vm995, 1, 0
        %v2020 = vsel %vm996, 1, 0
        %v2021 = vsel %vm997, 1, 0
        %v2022 = vsel %vm998, 1, 0
        %v2023 = vsel %vm999, 1, 0
        %v2024 = vsel %vm1000, 1, 0
        %v2025 = vsel %vm1001, 1, 0
        %v2026 = vsel %vm1002, 1, 0
        %v2027 = vsel %vm1003, 1, 0
        %v2028 = vsel %vm1004, 1, 0
        %v2029 = vsel %vm1005, 1, 0
        %v2030 = vsel %vm1006, 1, 0
        %v2031 = vsel %vm1007, 1, 0
        %v2032 = vsel %vm1008, 1, 0
        %v2033 = vsel %vm1009, 1, 0
        %v2034 = vsel %vm1010, 1, 0
        %v2035 = vsel %vm1011, 1, 0
        %v2036 = vsel %vm1012, 1, 0
        %v2037 = vsel %vm1013, 1, 0
        %v2038 = vsel %vm1014, 1, 0
        %v2039 = vsel %vm1015, 1, 0
        %v2040 = vsel %vm1016, 1, 0
        %v2041 = vsel %vm1017, 1, 0
        %v2042 = vsel %vm1018, 1, 0
        %v2043 = vsel %vm1019, 1, 0
        %v2044 = vsel %vm1020, 1, 0
        %v2045 = vsel %vm1021, 1, 0
        %v2046 = vsel %vm1022, 1, 0
        %v2047 = vsel %vm1023, 1, 0
        %v2048 = vsel %vm1024, 1, 0
        %v2049 = vsel %vm1025, 1, 0
        %v2050 = vsel %vm1026, 1, 0
        %v2051 = vsel %vm1027, 1, 0
        %v2052 = vsel %vm1028, 1, 0
        %v2053 = vsel %vm1029, 1, 0
        %v2054 = vsel %vm1030, 1, 0
        %v2055 = vsel %vm1031, 1, 0
        %v2056 = vsel %vm1032, 1, 0
        %v2057 = vsel %vm1033, 1, 0
        %v2058 = vsel %vm1034, 1, 0
        %v2059 = vsel %vm1035, 1, 0
        %v2060 = vsel %vm1036, 1, 0
        %v2061 = vsel %vm1037, 1, 0
        %v2062 = vsel %vm1038, 1, 0
        %v2063 = vsel %vm1039, 1, 0
        %v2064 = vsel %vm1040, 1, 0
        %v2065 = vsel %vm1041, 1, 0
        %v2066 = vsel %vm1042, 1, 0
        %v2067 = vsel %vm1043, 1, 0
        %v2068 = vsel %vm1044, 1, 0
        %v2069 = vsel %vm1045, 1, 0
        %v2070 = vsel %vm1046, 1, 0
        %v2071 = vsel %vm1047, 1, 0
        %v2072 = vsel %vm1048, 1, 0
        %v2073 = vsel %vm1049, 1, 0
        %v2074 = vsel %vm1050, 1, 0
        %v2075 = vsel %vm1051, 1, 0
        %v2076 = vsel %vm1052, 1, 0
        %v2077 = vsel %vm1053, 1, 0
        %v2078 = vsel %vm1054, 1, 0
        %v2079 = vsel %vm1055, 1, 0
        %v2080 = vsel %vm1056, 1, 0
        %v2081 = vsel %vm1057, 1, 0
        %v2082 = vsel %vm1058, 1, 0
        %v2083 = vsel %vm1059, 1, 0
        %v2084 = vsel %vm1060, 1, 0
        %v2085 = vsel %vm1061, 1, 0
        %v2086 = vsel %vm1062, 1, 0
        %v2087 = vsel %vm1063, 1, 0
        %v2088 = vsel %vm1064, 1, 0
        %v2089 = vsel %vm1065, 1, 0
        %v2090 = vsel %vm1066, 1, 0
        %v2091 = vsel %vm1067, 1, 0
        %v2092 = vsel %vm1068, 1, 0
        %v2093 = vsel %vm1069, 1, 0
        %v2094 = vsel %vm1070, 1, 0
        %v2095 = vsel %vm1071, 1, 0
        %v2096 = vsel %vm1072, 1, 0
        %v2097 = vsel %vm1073, 1, 0
        %v2098 = vsel %vm1074, 1, 0
        %v2099 = vsel %vm1075, 1, 0
        %v2100 = vsel %vm1076, 1, 0
        %v2101 = vsel %vm1077, 1, 0
        %v2102 = vsel %vm1078, 1, 0
        %v2103 = vsel %vm1079, 1, 0
        %v2104 = vsel %vm1080, 1, 0
        %v2105 = vsel %vm1081, 1, 0
        %v2106 = vsel %vm1082, 1, 0
        %v2107 = vsel %vm1083, 1, 0
        %v2108 = vsel %vm1084, 1, 0
        %v2109 = vsel %vm1085, 1, 0
        %v2110 = vsel %vm1086, 1, 0
        %v2111 = vsel %vm1087, 1, 0
        %v2112 = vsel %vm1088, 1, 0
        %v2113 = vsel %vm1089, 1, 0
        %v2114 = vsel %vm1090, 1, 0
        %v2115 = vsel %vm1091, 1, 0
        %v2116 = vsel %vm1092, 1, 0
        %v2117 = vsel %vm1093, 1, 0
        %v2118 = vsel %vm1094, 1, 0
        %v2119 = vsel %vm1095, 1, 0
        %v2120 = vsel %vm1096, 1, 0
        %v2121 = vsel %vm1097, 1, 0
        %v2122 = vsel %vm1098, 1, 0
        %v2123 = vsel %vm1099, 1, 0
        %v2124 = vsel %vm1100, 1, 0
        %v2125 = vsel %vm1101, 1, 0
        %v2126 = vsel %vm1102, 1, 0
        %v2127 = vsel %vm1103, 1, 0
        %v2128 = vsel %vm1104, 1, 0
        %v2129 = vsel %vm1105, 1, 0
        %v2130 = vsel %vm1106, 1, 0
        %v2131 = vsel %vm1107, 1, 0
        %v2132 = vsel %vm1108, 1, 0
        %v2133 = vsel %vm1109, 1, 0
        %v2134 = vsel %vm1110, 1, 0
        %v2135 = vsel %vm1111, 1, 0
        %v2136 = vsel %vm1112, 1, 0
        %v2137 = vsel %vm1113, 1, 0
        %v2138 = vsel %vm1114, 1, 0
        %v2139 = vsel %vm1115, 1, 0
        %v2140 = vsel %vm1116, 1, 0
        %v2141 = vsel %vm1117, 1, 0
        %v2142 = vsel %vm1118, 1, 0
        %v2143 = vsel %vm1119, 1, 0
        %v2144 = vsel %vm1120, 1, 0
        %v2145 = vsel %vm1121, 1, 0
        %v2146 = vsel %vm1122, 1, 0
        %v2147 = vsel %vm1123, 1, 0
        %v2148 = vsel %vm1124, 1, 0
        %v2149 = vsel %vm1125, 1, 0
        %v2150 = vsel %vm1126, 1, 0
        %v2151 = vsel %vm1127, 1, 0
        %v2152 = vsel %vm1128, 1, 0
        %v2153 = vsel %vm1129, 1, 0
        %v2154 = vsel %vm1130, 1, 0
        %v2155 = vsel %vm1131, 1, 0
        %v2156 = vsel %vm1132, 1, 0
        %v2157 = vsel %vm1133, 1, 0
        %v2158 = vsel %vm1134, 1, 0
        %v2159 = vsel %vm1135, 1, 0
        %v2160 = vsel %vm1136, 1, 0
        %v2161 = vsel %vm1137, 1, 0
        %v2162 = vsel %vm1138, 1, 0
        %v2163 = vsel %vm1139, 1, 0
        %v2164 = vsel %vm1140, 1, 0
        %v2165 = vsel %vm1141, 1, 0
        %v2166 = vsel %vm1142, 1, 0
        %v2167 = vsel %vm1143, 1, 0
        %v2168 = vsel %vm1144, 1, 0
        %v2169 = vsel %vm1145, 1, 0
        %v2170 = vsel %vm1146, 1, 0
        %v2171 = vsel %vm1147, 1, 0
        %v2172 = vsel %vm1148, 1, 0
        %v2173 = vsel %vm1149, 1, 0
        %v2174 = vsel %vm1150, 1, 0
        %v2175 = vsel %vm1151, 1, 0
        %v2176 = vsel %vm1152, 1, 0
        %v2177 = vsel %vm1153, 1, 0
        %v2178 = vsel %vm1154, 1, 0
        %v2179 = vsel %vm1155, 1, 0
        %v2180 = vsel %vm1156, 1, 0
        %v2181 = vsel %vm1157, 1, 0
        %v2182 = vsel %vm1158, 1, 0
        %v2183 = vsel %vm1159, 1, 0
        %v2184 = vsel %vm1160, 1, 0
        %v2185 = vsel %vm1161, 1, 0
        %v2186 = vsel %vm1162, 1, 0
        %v2187 = vsel %vm1163, 1, 0
        %v2188 = vsel %vm1164, 1, 0
        %v2189 = vsel %vm1165, 1, 0
        %v2190 = vsel %vm1166, 1, 0
        %v2191 = vsel %vm1167, 1, 0
        %v2192 = vsel %vm1168, 1, 0
        %v2193 = vsel %vm1169, 1, 0
        %v2194 = vsel %vm1170, 1, 0
        %v2195 = vsel %vm1171, 1, 0
        %v2196 = vsel %vm1172, 1, 0
        %v2197 = vsel %vm1173, 1, 0
        %v2198 = vsel %vm1174, 1, 0
        %v2199 = vsel %vm1175, 1, 0
        %v2200 = vsel %vm1176, 1, 0
        %v2201 = vsel %vm1177, 1, 0
        %v2202 = vsel %vm1178, 1, 0
        %v2203 = vsel %vm1179, 1, 0
        %v2204 = vsel %vm1180, 1, 0
        %v2205 = vsel %vm1181, 1, 0
        %v2206 = vsel %vm1182, 1, 0
        %v2207 = vsel %vm1183, 1, 0
        %v2208 = vsel %vm1184, 1, 0
        %v2209 = vsel %vm1185, 1, 0
        %v2210 = vsel %vm1186, 1, 0
        %v2211 = vsel %vm1187, 1, 0
        %v2212 = vsel %vm1188, 1, 0
        %v2213 = vsel %vm1189, 1, 0
        %v2214 = vsel %vm1190, 1, 0
        %v2215 = vsel %vm1191, 1, 0
        %v2216 = vsel %vm1192, 1, 0
        %v2217 = vsel %vm1193, 1, 0
        %v2218 = vsel %vm1194, 1, 0
        %v2219 = vsel %vm1195, 1, 0
        %v2220 = vsel %vm1196, 1, 0
        %v2221 = vsel %vm1197, 1, 0
        %v2222 = vsel %vm1198, 1, 0
        %v2223 = vsel %vm1199, 1, 0
        %v2224 = vsel %vm1200, 1, 0
        %v2225 = vsel %vm1201, 1, 0
        %v2226 = vsel %vm1202, 1, 0
        %v2227 = vsel %vm1203, 1, 0
        %v2228 = vsel %vm1204, 1, 0
        %v2229 = vsel %vm1205, 1, 0
        %v2230 = vsel %vm1206, 1, 0
        %v2231 = vsel %vm1207, 1, 0
        %v2232 = vsel %vm1208, 1, 0
        %v2233 = vsel %vm1209, 1, 0
        %v2234 = vsel %vm1210, 1, 0
        %v2235 = vsel %vm1211, 1, 0
        %v2236 = vsel %vm1212, 1, 0
        %v2237 = vsel %vm1213, 1, 0
        %v2238 = vsel %vm1214, 1, 0
        %v2239 = vsel %vm1215, 1, 0
        %v2240 = vsel %vm1216, 1, 0
        %v2241 = vsel %vm1217, 1, 0
        %v2242 = vsel %vm1218, 1, 0
        %v2243 = vsel %vm1219, 1, 0
        %v2244 = vsel %vm1220, 1, 0
        %v2245 = vsel %vm1221, 1, 0
        %v2246 = vsel %vm1222, 1, 0
        %v2247 = vsel %vm1223, 1, 0
        %v2248 = vsel %vm1224, 1, 0
        %v2249 = vsel %vm1225, 1, 0
        %v2250 = vsel %vm1226, 1, 0
        %v2251 = vsel %vm1227, 1, 0
        %v2252 = vsel %vm1228, 1, 0
        %v2253 = vsel %vm1229, 1, 0
        %v2254 = vsel %vm1230, 1, 0
        %v2255 = vsel %vm1231, 1, 0
        %v2256 = vsel %vm1232, 1, 0
        %v2257 = vsel %vm1233, 1, 0
        %v2258 = vsel %vm1234, 1, 0
        %v2259 = vsel %vm1235, 1, 0
        %v2260 = vsel %vm1236, 1, 0
        %v2261 = vsel %vm1237, 1, 0
        %v2262 = vsel %vm1238, 1, 0
        %v2263 = vsel %vm1239, 1, 0
        %v2264 = vsel %vm1240, 1, 0
        %v2265 = vsel %vm1241, 1, 0
        %v2266 = vsel %vm1242, 1, 0
        %v2267 = vsel %vm1243, 1, 0
        %v2268 = vsel %vm1244, 1, 0
        %v2269 = vsel %vm1245, 1, 0
        %v2270 = vsel %vm1246, 1, 0
        %v2271 = vsel %vm1247, 1, 0
        %v2272 = vsel %vm1248, 1, 0
        %v2273 = vsel %vm1249, 1, 0
        %v2274 = vsel %vm1250, 1, 0
        %v2275 = vsel %vm1251, 1, 0
        %v2276 = vsel %vm1252, 1, 0
        %v2277 = vsel %vm1253, 1, 0
        %v2278 = vsel %vm1254, 1, 0
        %v2279 = vsel %vm1255, 1, 0
        %v2280 = vsel %vm1256, 1, 0
        %v2281 = vsel %vm1257, 1, 0
        %v2282 = vsel %vm1258, 1, 0
        %v2283 = vsel %vm1259, 1, 0
        %v2284 = vsel %vm1260, 1, 0
        %v2285 = vsel %vm1261, 1, 0
        %v2286 = vsel %vm1262, 1, 0
        %v2287 = vsel %vm1263, 1, 0
        %v2288 = vsel %vm1264, 1, 0
        %v2289 = vsel %vm1265, 1, 0
        %v2290 = vsel %vm1266, 1, 0
        %v2291 = vsel %vm1267, 1, 0
        %v2292 = vsel %vm1268, 1, 0
        %v2293 = vsel %vm1269, 1, 0
        %v2294 = vsel %vm1270, 1, 0
        %v2295 = vsel %vm1271, 1, 0
        %v2296 = vsel %vm1272, 1, 0
        %v2297 = vsel %vm1273, 1, 0
        %v2298 = vsel %vm1274, 1, 0
        %v2299 = vsel %vm1275, 1, 0
        %v2300 = vsel %vm1276, 1, 0
        %v2301 = vsel %vm1277, 1, 0
        %v2302 = vsel %vm1278, 1, 0
        %v2303 = vsel %vm1279, 1, 0
        %v2304 = vsel %vm1280, 1, 0
        %v2305 = vsel %vm1281, 1, 0
        %v2306 = vsel %vm1282, 1, 0
        %v2307 = vsel %vm1283, 1, 0
        %v2308 = vsel %vm1284, 1, 0
        %v2309 = vsel %vm1285, 1, 0
        %v2310 = vsel %vm1286, 1, 0
        %v2311 = vsel %vm1287, 1, 0
        %v2312 = vsel %vm1288, 1, 0
        %v2313 = vsel %vm1289, 1, 0
        %v2314 = vsel %vm1290, 1, 0
        %v2315 = vsel %vm1291, 1, 0
        %v2316 = vsel %vm1292, 1, 0
        %v2317 = vsel %vm1293, 1, 0
        %v2318 = vsel %vm1294, 1, 0
        %v2319 = vsel %vm1295, 1, 0
        %v2320 = vsel %vm1296, 1, 0
        %v2321 = vsel %vm1297, 1, 0
        %v2322 = vsel %vm1298, 1, 0
        %v2323 = vsel %vm1299, 1, 0
        %v2324 = vsel %vm1300, 1, 0
        %v2325 = vsel %vm1301, 1, 0
        %v2326 = vsel %vm1302, 1, 0
        %v2327 = vsel %vm1303, 1, 0
        %v2328 = vsel %vm1304, 1, 0
        %v2329 = vsel %vm1305, 1, 0
        %v2330 = vsel %vm1306, 1, 0
        %v2331 = vsel %vm1307, 1, 0
        %v2332 = vsel %vm1308, 1, 0
        %v2333 = vsel %vm1309, 1, 0
        %v2334 = vsel %vm1310, 1, 0
        %v2335 = vsel %vm1311, 1, 0
        %v2336 = vsel %vm1312, 1, 0
        %v2337 = vsel %vm1313, 1, 0
        %v2338 = vsel %vm1314, 1, 0
        %v2339 = vsel %vm1315, 1, 0
        %v2340 = vsel %vm1316, 1, 0
        %v2341 = vsel %vm1317, 1, 0
        %v2342 = vsel %vm1318, 1, 0
        %v2343 = vsel %vm1319, 1, 0
        %v2344 = vsel %vm1320, 1, 0
        %v2345 = vsel %vm1321, 1, 0
        %v2346 = vsel %vm1322, 1, 0
        %v2347 = vsel %vm1323, 1, 0
        %v2348 = vsel %vm1324, 1, 0
        %v2349 = vsel %vm1325, 1, 0
        %v2350 = vsel %vm1326, 1, 0
        %v2351 = vsel %vm1327, 1, 0
        %v2352 = vsel %vm1328, 1, 0
        %v2353 = vsel %vm1329, 1, 0
        %v2354 = vsel %vm1330, 1, 0
        %v2355 = vsel %vm1331, 1, 0
        %v2356 = vsel %vm1332, 1, 0
        %v2357 = vsel %vm1333, 1, 0
        %v2358 = vsel %vm1334, 1, 0
        %v2359 = vsel %vm1335, 1, 0
        %v2360 = vsel %vm1336, 1, 0
        %v2361 = vsel %vm1337, 1, 0
        %v2362 = vsel %vm1338, 1, 0
        %v2363 = vsel %vm1339, 1, 0
        %v2364 = vsel %vm1340, 1, 0
        %v2365 = vsel %vm1341, 1, 0
        %v2366 = vsel %vm1342, 1, 0
        %v2367 = vsel %vm1343, 1, 0
        %v2368 = vsel %vm1344, 1, 0
        %v2369 = vsel %vm1345, 1, 0
        %v2370 = vsel %vm1346, 1, 0
        %v2371 = vsel %vm1347, 1, 0
        %v2372 = vsel %vm1348, 1, 0
        %v2373 = vsel %vm1349, 1, 0
        %v2374 = vsel %vm1350, 1, 0
        %v2375 = vsel %vm1351, 1, 0
        %v2376 = vsel %vm1352, 1, 0
        %v2377 = vsel %vm1353, 1, 0
        %v2378 = vsel %vm1354, 1, 0
        %v2379 = vsel %vm1355, 1, 0
        %v2380 = vsel %vm1356, 1, 0
        %v2381 = vsel %vm1357, 1, 0
        %v2382 = vsel %vm1358, 1, 0
        %v2383 = vsel %vm1359, 1, 0
        %v2384 = vsel %vm1360, 1, 0
        %v2385 = vsel %vm1361, 1, 0
        %v2386 = vsel %vm1362, 1, 0
        %v2387 = vsel %vm1363, 1, 0
        %v2388 = vsel %vm1364, 1, 0
        %v2389 = vsel %vm1365, 1, 0
        %v2390 = vsel %vm1366, 1, 0
        %v2391 = vsel %vm1367, 1, 0
        %v2392 = vsel %vm1368, 1, 0
        %v2393 = vsel %vm1369, 1, 0
        %v2394 = vsel %vm1370, 1, 0
        %v2395 = vsel %vm1371, 1, 0
        %v2396 = vsel %vm1372, 1, 0
        %v2397 = vsel %vm1373, 1, 0
        %v2398 = vsel %vm1374, 1, 0
        %v2399 = vsel %vm1375, 1, 0
        %v2400 = vsel %vm1376, 1, 0
        %v2401 = vsel %vm1377, 1, 0
        %v2402 = vsel %vm1378, 1, 0
        %v2403 = vsel %vm1379, 1, 0
        %v2404 = vsel %vm1380, 1, 0
        %v2405 = vsel %vm1381, 1, 0
        %v2406 = vsel %vm1382, 1, 0
        %v2407 = vsel %vm1383, 1, 0
        %v2408 = vsel %vm1384, 1, 0
        %v2409 = vsel %vm1385, 1, 0
        %v2410 = vsel %vm1386, 1, 0
        %v2411 = vsel %vm1387, 1, 0
        %v2412 = vsel %vm1388, 1, 0
        %v2413 = vsel %vm1389, 1, 0
        %v2414 = vsel %vm1390, 1, 0
        %v2415 = vsel %vm1391, 1, 0
        %v2416 = vsel %vm1392, 1, 0
        %v2417 = vsel %vm1393, 1, 0
        %v2418 = vsel %vm1394, 1, 0
        %v2419 = vsel %vm1395, 1, 0
        %v2420 = vsel %vm1396, 1, 0
        %v2421 = vsel %vm1397, 1, 0
        %v2422 = vsel %vm1398, 1, 0
        %v2423 = vsel %vm1399, 1, 0
        %v2424 = vsel %vm1400, 1, 0
        %v2425 = vsel %vm1401, 1, 0
        %v2426 = vsel %vm1402, 1, 0
        %v2427 = vsel %vm1403, 1, 0
        %v2428 = vsel %vm1404, 1, 0
        %v2429 = vsel %vm1405, 1, 0
        %v2430 = vsel %vm1406, 1, 0
        %v2431 = vsel %vm1407, 1, 0
        %v2432 = vsel %vm1408, 1, 0
        %v2433 = vsel %vm1409, 1, 0
        %v2434 = vsel %vm1410, 1, 0
        %v2435 = vsel %vm1411, 1, 0
        %v2436 = vsel %vm1412, 1, 0
        %v2437 = vsel %vm1413, 1, 0
        %v2438 = vsel %vm1414, 1, 0
        %v2439 = vsel %vm1415, 1, 0
        %v2440 = vsel %vm1416, 1, 0
        %v2441 = vsel %vm1417, 1, 0
        %v2442 = vsel %vm1418, 1, 0
        %v2443 = vsel %vm1419, 1, 0
        %v2444 = vsel %vm1420, 1, 0
        %v2445 = vsel %vm1421, 1, 0
        %v2446 = vsel %vm1422, 1, 0
        %v2447 = vsel %vm1423, 1, 0
        %v2448 = vsel %vm1424, 1, 0
        %v2449 = vsel %vm1425, 1, 0
        %v2450 = vsel %vm1426, 1, 0
        %v2451 = vsel %vm1427, 1, 0
        %v2452 = vsel %vm1428, 1, 0
        %v2453 = vsel %vm1429, 1, 0
        %v2454 = vsel %vm1430, 1, 0
        %v2455 = vsel %vm1431, 1, 0
        %v2456 = vsel %vm1432, 1, 0
        %v2457 = vsel %vm1433, 1, 0
        %v2458 = vsel %vm1434, 1, 0
        %v2459 = vsel %vm1435, 1, 0
        %v2460 = vsel %vm1436, 1, 0
        %v2461 = vsel %vm1437, 1, 0
        %v2462 = vsel %vm1438, 1, 0
        %v2463 = vsel %vm1439, 1, 0
        %v2464 = vsel %vm1440, 1, 0
        %v2465 = vsel %vm1441, 1, 0
        %v2466 = vsel %vm1442, 1, 0
        %v2467 = vsel %vm1443, 1, 0
        %v2468 = vsel %vm1444, 1, 0
        %v2469 = vsel %vm1445, 1, 0
        %v2470 = vsel %vm1446, 1, 0
        %v2471 = vsel %vm1447, 1, 0
        %v2472 = vsel %vm1448, 1, 0
        %v2473 = vsel %vm1449, 1, 0
        %v2474 = vsel %vm1450, 1, 0
        %v2475 = vsel %vm1451, 1, 0
        %v2476 = vsel %vm1452, 1, 0
        %v2477 = vsel %vm1453, 1, 0
        %v2478 = vsel %vm1454, 1, 0
        %v2479 = vsel %vm1455, 1, 0
        %v2480 = vsel %vm1456, 1, 0
        %v2481 = vsel %vm1457, 1, 0
        %v2482 = vsel %vm1458, 1, 0
        %v2483 = vsel %vm1459, 1, 0
        %v2484 = vsel %vm1460, 1, 0
        %v2485 = vsel %vm1461, 1, 0
        %v2486 = vsel %vm1462, 1, 0
        %v2487 = vsel %vm1463, 1, 0
        %v2488 = vsel %vm1464, 1, 0
        %v2489 = vsel %vm1465, 1, 0
        %v2490 = vsel %vm1466, 1, 0
        %v2491 = vsel %vm1467, 1, 0
        %v2492 = vsel %vm1468, 1, 0
        %v2493 = vsel %vm1469, 1, 0
        %v2494 = vsel %vm1470, 1, 0
        %v2495 = vsel %vm1471, 1, 0
        %v2496 = vsel %vm1472, 1, 0
        %v2497 = vsel %vm1473, 1, 0
        %v2498 = vsel %vm1474, 1, 0
        %v2499 = vsel %vm1475, 1, 0
        %v2500 = vsel %vm1476, 1, 0
        %v2501 = vsel %vm1477, 1, 0
        %v2502 = vsel %vm1478, 1, 0
        %v2503 = vsel %vm1479, 1, 0
        %v2504 = vsel %vm1480, 1, 0
        %v2505 = vsel %vm1481, 1, 0
        %v2506 = vsel %vm1482, 1, 0
        %v2507 = vsel %vm1483, 1, 0
        %v2508 = vsel %vm1484, 1, 0
        %v2509 = vsel %vm1485, 1, 0
        %v2510 = vsel %vm1486, 1, 0
        %v2511 = vsel %vm1487, 1, 0
        %v2512 = vsel %vm1488, 1, 0
        %v2513 = vsel %vm1489, 1, 0
        %v2514 = vsel %vm1490, 1, 0
        %v2515 = vsel %vm1491, 1, 0
        %v2516 = vsel %vm1492, 1, 0
        %v2517 = vsel %vm1493, 1, 0
        %v2518 = vsel %vm1494, 1, 0
        %v2519 = vsel %vm1495, 1, 0
        %v2520 = vsel %vm1496, 1, 0
        %v2521 = vsel %vm1497, 1, 0
        %v2522 = vsel %vm1498, 1, 0
        %v2523 = vsel %vm1499, 1, 0
        %v2524 = vsel %vm1500, 1, 0
        %v2525 = vsel %vm1501, 1, 0
        %v2526 = vsel %vm1502, 1, 0
        %v2527 = vsel %vm1503, 1, 0
        %v2528 = vsel %vm1504, 1, 0
        %v2529 = vsel %vm1505, 1, 0
        %v2530 = vsel %vm1506, 1, 0
        %v2531 = vsel %vm1507, 1, 0
        %v2532 = vsel %vm1508, 1, 0
        %v2533 = vsel %vm1509, 1, 0
        %v2534 = vsel %vm1510, 1, 0
        %v2535 = vsel %vm1511, 1, 0
        %v2536 = vsel %vm1512, 1, 0
        %v2537 = vsel %vm1513, 1, 0
        %v2538 = vsel %vm1514, 1, 0
        %v2539 = vsel %vm1515, 1, 0
        %v2540 = vsel %vm1516, 1, 0
        %v2541 = vsel %vm1517, 1, 0
        %v2542 = vsel %vm1518, 1, 0
        %v2543 = vsel %vm1519, 1, 0
        %v2544 = vsel %vm1520, 1, 0
        %v2545 = vsel %vm1521, 1, 0
        %v2546 = vsel %vm1522, 1, 0
        %v2547 = vsel %vm1523, 1, 0
        %v2548 = vsel %vm1524, 1, 0
        %v2549 = vsel %vm1525, 1, 0
        %v2550 = vsel %vm1526, 1, 0
        %v2551 = vsel %vm1527, 1, 0
        %v2552 = vsel %vm1528, 1, 0
        %v2553 = vsel %vm1529, 1, 0
        %v2554 = vsel %vm1530, 1, 0
        %v2555 = vsel %vm1531, 1, 0
        %v2556 = vsel %vm1532, 1, 0
        %v2557 = vsel %vm1533, 1, 0
        %v2558 = vsel %vm1534, 1, 0
        %v2559 = vsel %vm1535, 1, 0
        %v2560 = vsel %vm1536, 1, 0
        %v2561 = vsel %vm1537, 1, 0
        %v2562 = vsel %vm1538, 1, 0
        %v2563 = vsel %vm1539, 1, 0
        %v2564 = vsel %vm1540, 1, 0
        %v2565 = vsel %vm1541, 1, 0
        %v2566 = vsel %vm1542, 1, 0
        %v2567 = vsel %vm1543, 1, 0
        %v2568 = vsel %vm1544, 1, 0
        %v2569 = vsel %vm1545, 1, 0
        %v2570 = vsel %vm1546, 1, 0
        %v2571 = vsel %vm1547, 1, 0
        %v2572 = vsel %vm1548, 1, 0
        %v2573 = vsel %vm1549, 1, 0
        %v2574 = vsel %vm1550, 1, 0
        %v2575 = vsel %vm1551, 1, 0
        %v2576 = vsel %vm1552, 1, 0
        %v2577 = vsel %vm1553, 1, 0
        %v2578 = vsel %vm1554, 1, 0
        %v2579 = vsel %vm1555, 1, 0
        %v2580 = vsel %vm1556, 1, 0
        %v2581 = vsel %vm1557, 1, 0
        %v2582 = vsel %vm1558, 1, 0
        %v2583 = vsel %vm1559, 1, 0
        %v2584 = vsel %vm1560, 1, 0
        %v2585 = vsel %vm1561, 1, 0
        %v2586 = vsel %vm1562, 1, 0
        %v2587 = vsel %vm1563, 1, 0
        %v2588 = vsel %vm1564, 1, 0
        %v2589 = vsel %vm1565, 1, 0
        %v2590 = vsel %vm1566, 1, 0
        %v2591 = vsel %vm1567, 1, 0
        %v2592 = vsel %vm1568, 1, 0
        %v2593 = vsel %vm1569, 1, 0
        %v2594 = vsel %vm1570, 1, 0
        %v2595 = vsel %vm1571, 1, 0
        %v2596 = vsel %vm1572, 1, 0
        %v2597 = vsel %vm1573, 1, 0
        %v2598 = vsel %vm1574, 1, 0
        %v2599 = vsel %vm1575, 1, 0
        %v2600 = vsel %vm1576, 1, 0
        %v2601 = vsel %vm1577, 1, 0
        %v2602 = vsel %vm1578, 1, 0
        %v2603 = vsel %vm1579, 1, 0
        %v2604 = vsel %vm1580, 1, 0
        %v2605 = vsel %vm1581, 1, 0
        %v2606 = vsel %vm1582, 1, 0
        %v2607 = vsel %vm1583, 1, 0
        %v2608 = vsel %vm1584, 1, 0
        %v2609 = vsel %vm1585, 1, 0
        %v2610 = vsel %vm1586, 1, 0
        %v2611 = vsel %vm1587, 1, 0
        %v2612 = vsel %vm1588, 1, 0
        %v2613 = vsel %vm1589, 1, 0
        %v2614 = vsel %vm1590, 1, 0
        %v2615 = vsel %vm1591, 1, 0
        %v2616 = vsel %vm1592, 1, 0
        %v2617 = vsel %vm1593, 1, 0
        %v2618 = vsel %vm1594, 1, 0
        %v2619 = vsel %vm1595, 1, 0
        %v2620 = vsel %vm1596, 1, 0
        %v2621 = vsel %vm1597, 1, 0
        %v2622 = vsel %vm1598, 1, 0
        %v2623 = vsel %vm1599, 1, 0
        %v2624 = vsel %vm1600, 1, 0
        %v2625 = vsel %vm1601, 1, 0
        %v2626 = vsel %vm1602, 1, 0
        %v2627 = vsel %vm1603, 1, 0
        %v2628 = vsel %vm1604, 1, 0
        %v2629 = vsel %vm1605, 1, 0
        %v2630 = vsel %vm1606, 1, 0
        %v2631 = vsel %vm1607, 1, 0
        %v2632 = vsel %vm1608, 1, 0
        %v2633 = vsel %vm1609, 1, 0
        %v2634 = vsel %vm1610, 1, 0
        %v2635 = vsel %vm1611, 1, 0
        %v2636 = vsel %vm1612, 1, 0
        %v2637 = vsel %vm1613, 1, 0
        %v2638 = vsel %vm1614, 1, 0
        %v2639 = vsel %vm1615, 1, 0
        %v2640 = vsel %vm1616, 1, 0
        %v2641 = vsel %vm1617, 1, 0
        %v2642 = vsel %vm1618, 1, 0
        %v2643 = vsel %vm1619, 1, 0
        %v2644 = vsel %vm1620, 1, 0
        %v2645 = vsel %vm1621, 1, 0
        %v2646 = vsel %vm1622, 1, 0
        %v2647 = vsel %vm1623, 1, 0
        %v2648 = vsel %vm1624, 1, 0
        %v2649 = vsel %vm1625, 1, 0
        %v2650 = vsel %vm1626, 1, 0
        %v2651 = vsel %vm1627, 1, 0
        %v2652 = vsel %vm1628, 1, 0
        %v2653 = vsel %vm1629, 1, 0
        %v2654 = vsel %vm1630, 1, 0
        %v2655 = vsel %vm1631, 1, 0
        %v2656 = vsel %vm1632, 1, 0
        %v2657 = vsel %vm1633, 1, 0
        %v2658 = vsel %vm1634, 1, 0
        %v2659 = vsel %vm1635, 1, 0
        %v2660 = vsel %vm1636, 1, 0
        %v2661 = vsel %vm1637, 1, 0
        %v2662 = vsel %vm1638, 1, 0
        %v2663 = vsel %vm1639, 1, 0
        %v2664 = vsel %vm1640, 1, 0
        %v2665 = vsel %vm1641, 1, 0
        %v2666 = vsel %vm1642, 1, 0
        %v2667 = vsel %vm1643, 1, 0
        %v2668 = vsel %vm1644, 1, 0
        %v2669 = vsel %vm1645, 1, 0
        %v2670 = vsel %vm1646, 1, 0
        %v2671 = vsel %vm1647, 1, 0
        %v2672 = vsel %vm1648, 1, 0
        %v2673 = vsel %vm1649, 1, 0
        %v2674 = vsel %vm1650, 1, 0
        %v2675 = vsel %vm1651, 1, 0
        %v2676 = vsel %vm1652, 1, 0
        %v2677 = vsel %vm1653, 1, 0
        %v2678 = vsel %vm1654, 1, 0
        %v2679 = vsel %vm1655, 1, 0
        %v2680 = vsel %vm1656, 1, 0
        %v2681 = vsel %vm1657, 1, 0
        %v2682 = vsel %vm1658, 1, 0
        %v2683 = vsel %vm1659, 1, 0
        %v2684 = vsel %vm1660, 1, 0
        %v2685 = vsel %vm1661, 1, 0
        %v2686 = vsel %vm1662, 1, 0
        %v2687 = vsel %vm1663, 1, 0
        %v2688 = vsel %vm1664, 1, 0
        %v2689 = vsel %vm1665, 1, 0
        %v2690 = vsel %vm1666, 1, 0
        %v2691 = vsel %vm1667, 1, 0
        %v2692 = vsel %vm1668, 1, 0
        %v2693 = vsel %vm1669, 1, 0
        %v2694 = vsel %vm1670, 1, 0
        %v2695 = vsel %vm1671, 1, 0
        %v2696 = vsel %vm1672, 1, 0
        %v2697 = vsel %vm1673, 1, 0
        %v2698 = vsel %vm1674, 1, 0
        %v2699 = vsel %vm1675, 1, 0
        %v2700 = vsel %vm1676, 1, 0
        %v2701 = vsel %vm1677, 1, 0
        %v2702 = vsel %vm1678, 1, 0
        %v2703 = vsel %vm1679, 1, 0
        %v2704 = vsel %vm1680, 1, 0
        %v2705 = vsel %vm1681, 1, 0
        %v2706 = vsel %vm1682, 1, 0
        %v2707 = vsel %vm1683, 1, 0
        %v2708 = vsel %vm1684, 1, 0
        %v2709 = vsel %vm1685, 1, 0
        %v2710 = vsel %vm1686, 1, 0
        %v2711 = vsel %vm1687, 1, 0
        %v2712 = vsel %vm1688, 1, 0
        %v2713 = vsel %vm1689, 1, 0
        %v2714 = vsel %vm1690, 1, 0
        %v2715 = vsel %vm1691, 1, 0
        %v2716 = vsel %vm1692, 1, 0
        %v2717 = vsel %vm1693, 1, 0
        %v2718 = vcvt.s32.f32 %v1694
        %v2719 = vcvt.s32.f32 %v1695
        %v2720 = vcvt.s32.f32 %v1696
        %v2721 = vcvt.s32.f32 %v1697
        %v2722 = vcvt.s32.f32 %v1698
        %v2723 = vcvt.s32.f32 %v1699
        %v2724 = vcvt.s32.f32 %v1700
        %v2725 = vcvt.s32.f32 %v1701
        %v2726 = vcvt.s32.f32 %v1702
        %v2727 = vcvt.s32.f32 %v1703
        %v2728 = vcvt.s32.f32 %v1704
        %v2729 = vcvt.s32.f32 %v1705
        %v2730 = vcvt.s32.f32 %v1706
        %v2731 = vcvt.s32.f32 %v1707
        %v2732 = vcvt.s32.f32 %v1708
        %v2733 = vcvt.s32.f32 %v1709
        %v2734 = vcvt.s32.f32 %v1710
        %v2735 = vcvt.s32.f32 %v1711
        %v2736 = vcvt.s32.f32 %v1712
        %v2737 = vcvt.s32.f32 %v1713
        %v2738 = vcvt.s32.f32 %v1714
        %v2739 = vcvt.s32.f32 %v1715
        %v2740 = vcvt.s32.f32 %v1716
        %v2741 = vcvt.s32.f32 %v1717
        %v2742 = vcvt.s32.f32 %v1718
        %v2743 = vcvt.s32.f32 %v1719
        %v2744 = vcvt.s32.f32 %v1720
        %v2745 = vcvt.s32.f32 %v1721
        %v2746 = vcvt.s32.f32 %v1722
        %v2747 = vcvt.s32.f32 %v1723
        %v2748 = vcvt.s32.f32 %v1724
        %v2749 = vcvt.s32.f32 %v1725
        %v2750 = vcvt.s32.f32 %v1726
        %v2751 = vcvt.s32.f32 %v1727
        %v2752 = vcvt.s32.f32 %v1728
        %v2753 = vcvt.s32.f32 %v1729
        %v2754 = vcvt.s32.f32 %v1730
        %v2755 = vcvt.s32.f32 %v1731
        %v2756 = vcvt.s32.f32 %v1732
        %v2757 = vcvt.s32.f32 %v1733
        %v2758 = vcvt.s32.f32 %v1734
        %v2759 = vcvt.s32.f32 %v1735
        %v2760 = vcvt.s32.f32 %v1736
        %v2761 = vcvt.s32.f32 %v1737
        %v2762 = vcvt.s32.f32 %v1738
        %v2763 = vcvt.s32.f32 %v1739
        %v2764 = vcvt.s32.f32 %v1740
        %v2765 = vcvt.s32.f32 %v1741
        %v2766 = vcvt.s32.f32 %v1742
        %v2767 = vcvt.s32.f32 %v1743
        %v2768 = vcvt.s32.f32 %v1744
        %v2769 = vcvt.s32.f32 %v1745
        %v2770 = vcvt.s32.f32 %v1746
        %v2771 = vcvt.s32.f32 %v1747
        %v2772 = vcvt.s32.f32 %v1748
        %v2773 = vcvt.s32.f32 %v1749
        %v2774 = vcvt.s32.f32 %v1750
        %v2775 = vcvt.s32.f32 %v1751
        %v2776 = vcvt.s32.f32 %v1752
        %v2777 = vcvt.s32.f32 %v1753
        %v2778 = vcvt.s32.f32 %v1754
        %v2779 = vcvt.s32.f32 %v1755
        %v2780 = vcvt.s32.f32 %v1756
        %v2781 = vcvt.s32.f32 %v1757
        %v2782 = vcvt.s32.f32 %v1758
        %v2783 = vcvt.s32.f32 %v1759
        %v2784 = vcvt.s32.f32 %v1760
        %v2785 = vcvt.s32.f32 %v1761
        %v2786 = vcvt.s32.f32 %v1762
        %v2787 = vcvt.s32.f32 %v1763
        %v2788 = vcvt.s32.f32 %v1764
        %v2789 = vcvt.s32.f32 %v1765
        %v2790 = vcvt.s32.f32 %v1766
        %v2791 = vcvt.s32.f32 %v1767
        %v2792 = vcvt.s32.f32 %v1768
        %v2793 = vcvt.s32.f32 %v1769
        %v2794 = vcvt.s32.f32 %v1770
        %v2795 = vcvt.s32.f32 %v1771
        %v2796 = vcvt.s32.f32 %v1772
        %v2797 = vcvt.s32.f32 %v1773
        %v2798 = vcvt.s32.f32 %v1774
        %v2799 = vcvt.s32.f32 %v1775
        %v2800 = vcvt.s32.f32 %v1776
        %v2801 = vcvt.s32.f32 %v1777
        %v2802 = vcvt.s32.f32 %v1778
        %v2803 = vcvt.s32.f32 %v1779
        %v2804 = vcvt.s32.f32 %v1780
        %v2805 = vcvt.s32.f32 %v1781
        %v2806 = vcvt.s32.f32 %v1782
        %v2807 = vcvt.s32.f32 %v1783
        %v2808 = vcvt.s32.f32 %v1784
        %v2809 = vcvt.s32.f32 %v1785
        %v2810 = vcvt.s32.f32 %v1786
        %v2811 = vcvt.s32.f32 %v1787
        %v2812 = vcvt.s32.f32 %v1788
        %v2813 = vcvt.s32.f32 %v1789
        %v2814 = vcvt.s32.f32 %v1790
        %v2815 = vcvt.s32.f32 %v1791
        %v2816 = vcvt.s32.f32 %v1792
        %v2817 = vcvt.s32.f32 %v1793
        %v2818 = vcvt.s32.f32 %v1794
        %v2819 = vcvt.s32.f32 %v1795
        %v2820 = vcvt.s32.f32 %v1796
        %v2821 = vcvt.s32.f32 %v1797
        %v2822 = vcvt.s32.f32 %v1798
        %v2823 = vcvt.s32.f32 %v1799
        %v2824 = vcvt.s32.f32 %v1800
        %v2825 = vcvt.s32.f32 %v1801
        %v2826 = vcvt.s32.f32 %v1802
        %v2827 = vcvt.s32.f32 %v1803
        %v2828 = vcvt.s32.f32 %v1804
        %v2829 = vcvt.s32.f32 %v1805
        %v2830 = vcvt.s32.f32 %v1806
        %v2831 = vcvt.s32.f32 %v1807
        %v2832 = vcvt.s32.f32 %v1808
        %v2833 = vcvt.s32.f32 %v1809
        %v2834 = vcvt.s32.f32 %v1810
        %v2835 = vcvt.s32.f32 %v1811
        %v2836 = vcvt.s32.f32 %v1812
        %v2837 = vcvt.s32.f32 %v1813
        %v2838 = vcvt.s32.f32 %v1814
        %v2839 = vcvt.s32.f32 %v1815
        %v2840 = vcvt.s32.f32 %v1816
        %v2841 = vcvt.s32.f32 %v1817
        %v2842 = vcvt.s32.f32 %v1818
        %v2843 = vcvt.s32.f32 %v1819
        %v2844 = vcvt.s32.f32 %v1820
        %v2845 = vcvt.s32.f32 %v1821
        %v2846 = vcvt.s32.f32 %v1822
        %v2847 = vcvt.s32.f32 %v1823
        %v2848 = vcvt.s32.f32 %v1824
        %v2849 = vcvt.s32.f32 %v1825
        %v2850 = vcvt.s32.f32 %v1826
        %v2851 = vcvt.s32.f32 %v1827
        %v2852 = vcvt.s32.f32 %v1828
        %v2853 = vcvt.s32.f32 %v1829
        %v2854 = vcvt.s32.f32 %v1830
        %v2855 = vcvt.s32.f32 %v1831
        %v2856 = vcvt.s32.f32 %v1832
        %v2857 = vcvt.s32.f32 %v1833
        %v2858 = vcvt.s32.f32 %v1834
        %v2859 = vcvt.s32.f32 %v1835
        %v2860 = vcvt.s32.f32 %v1836
        %v2861 = vcvt.s32.f32 %v1837
        %v2862 = vcvt.s32.f32 %v1838
        %v2863 = vcvt.s32.f32 %v1839
        %v2864 = vcvt.s32.f32 %v1840
        %v2865 = vcvt.s32.f32 %v1841
        %v2866 = vcvt.s32.f32 %v1842
        %v2867 = vcvt.s32.f32 %v1843
        %v2868 = vcvt.s32.f32 %v1844
        %v2869 = vcvt.s32.f32 %v1845
        %v2870 = vcvt.s32.f32 %v1846
        %v2871 = vcvt.s32.f32 %v1847
        %v2872 = vcvt.s32.f32 %v1848
        %v2873 = vcvt.s32.f32 %v1849
        %v2874 = vcvt.s32.f32 %v1850
        %v2875 = vcvt.s32.f32 %v1851
        %v2876 = vcvt.s32.f32 %v1852
        %v2877 = vcvt.s32.f32 %v1853
        %v2878 = vcvt.s32.f32 %v1854
        %v2879 = vcvt.s32.f32 %v1855
        %v2880 = vcvt.s32.f32 %v1856
        %v2881 = vcvt.s32.f32 %v1857
        %v2882 = vcvt.s32.f32 %v1858
        %v2883 = vcvt.s32.f32 %v1859
        %v2884 = vcvt.s32.f32 %v1860
        %v2885 = vcvt.s32.f32 %v1861
        %v2886 = vcvt.s32.f32 %v1862
        %v2887 = vcvt.s32.f32 %v1863
        %v2888 = vcvt.s32.f32 %v1864
        %v2889 = vcvt.s32.f32 %v1865
        %v2890 = vcvt.s32.f32 %v1866
        %v2891 = vcvt.s32.f32 %v1867
        %v2892 = vcvt.s32.f32 %v1868
        %v2893 = vcvt.s32.f32 %v1869
        %v2894 = vcvt.s32.f32 %v1870
        %v2895 = vcvt.s32.f32 %v1871
        %v2896 = vcvt.s32.f32 %v1872
        %v2897 = vcvt.s32.f32 %v1873
        %v2898 = vcvt.s32.f32 %v1874
        %v2899 = vcvt.s32.f32 %v1875
        %v2900 = vcvt.s32.f32 %v1876
        %v2901 = vcvt.s32.f32 %v1877
        %v2902 = vcvt.s32.f32 %v1878
        %v2903 = vcvt.s32.f32 %v1879
        %v2904 = vcvt.s32.f32 %v1880
        %v2905 = vcvt.s32.f32 %v1881
        %v2906 = vcvt.s32.f32 %v1882
        %v2907 = vcvt.s32.f32 %v1883
        %v2908 = vcvt.s32.f32 %v1884
        %v2909 = vcvt.s32.f32 %v1885
        %v2910 = vcvt.s32.f32 %v1886
        %v2911 = vcvt.s32.f32 %v1887
        %v2912 = vcvt.s32.f32 %v1888
        %v2913 = vcvt.s32.f32 %v1889
        %v2914 = vcvt.s32.f32 %v1890
        %v2915 = vcvt.s32.f32 %v1891
        %v2916 = vcvt.s32.f32 %v1892
        %v2917 = vcvt.s32.f32 %v1893
        %v2918 = vcvt.s32.f32 %v1894
        %v2919 = vcvt.s32.f32 %v1895
        %v2920 = vcvt.s32.f32 %v1896
        %v2921 = vcvt.s32.f32 %v1897
        %v2922 = vcvt.s32.f32 %v1898
        %v2923 = vcvt.s32.f32 %v1899
        %v2924 = vcvt.s32.f32 %v1900
        %v2925 = vcvt.s32.f32 %v1901
        %v2926 = vcvt.s32.f32 %v1902
        %v2927 = vcvt.s32.f32 %v1903
        %v2928 = vcvt.s32.f32 %v1904
        %v2929 = vcvt.s32.f32 %v1905
        %v2930 = vcvt.s32.f32 %v1906
        %v2931 = vcvt.s32.f32 %v1907
        %v2932 = vcvt.s32.f32 %v1908
        %v2933 = vcvt.s32.f32 %v1909
        %v2934 = vcvt.s32.f32 %v1910
        %v2935 = vcvt.s32.f32 %v1911
        %v2936 = vcvt.s32.f32 %v1912
        %v2937 = vcvt.s32.f32 %v1913
        %v2938 = vcvt.s32.f32 %v1914
        %v2939 = vcvt.s32.f32 %v1915
        %v2940 = vcvt.s32.f32 %v1916
        %v2941 = vcvt.s32.f32 %v1917
        %v2942 = vcvt.s32.f32 %v1918
        %v2943 = vcvt.s32.f32 %v1919
        %v2944 = vcvt.s32.f32 %v1920
        %v2945 = vcvt.s32.f32 %v1921
        %v2946 = vcvt.s32.f32 %v1922
        %v2947 = vcvt.s32.f32 %v1923
        %v2948 = vcvt.s32.f32 %v1924
        %v2949 = vcvt.s32.f32 %v1925
        %v2950 = vcvt.s32.f32 %v1926
        %v2951 = vcvt.s32.f32 %v1927
        %v2952 = vcvt.s32.f32 %v1928
        %v2953 = vcvt.s32.f32 %v1929
        %v2954 = vcvt.s32.f32 %v1930
        %v2955 = vcvt.s32.f32 %v1931
        %v2956 = vcvt.s32.f32 %v1932
        %v2957 = vcvt.s32.f32 %v1933
        %v2958 = vcvt.s32.f32 %v1934
        %v2959 = vcvt.s32.f32 %v1935
        %v2960 = vcvt.s32.f32 %v1936
        %v2961 = vcvt.s32.f32 %v1937
        %v2962 = vcvt.s32.f32 %v1938
        %v2963 = vcvt.s32.f32 %v1939
        %v2964 = vcvt.s32.f32 %v1940
        %v2965 = vcvt.s32.f32 %v1941
        %v2966 = vcvt.s32.f32 %v1942
        %v2967 = vcvt.s32.f32 %v1943
        %v2968 = vcvt.s32.f32 %v1944
        %v2969 = vcvt.s32.f32 %v1945
        %v2970 = vcvt.s32.f32 %v1946
        %v2971 = vcvt.s32.f32 %v1947
        %v2972 = vcvt.s32.f32 %v1948
        %v2973 = vcvt.s32.f32 %v1949
        %v2974 = vcvt.s32.f32 %v1950
        %v2975 = vcvt.s32.f32 %v1951
        %v2976 = vcvt.s32.f32 %v1952
        %v2977 = vcvt.s32.f32 %v1953
        %v2978 = vcvt.s32.f32 %v1954
        %v2979 = vcvt.s32.f32 %v1955
        %v2980 = vcvt.s32.f32 %v1956
        %v2981 = vcvt.s32.f32 %v1957
        %v2982 = vcvt.s32.f32 %v1958
        %v2983 = vcvt.s32.f32 %v1959
        %v2984 = vcvt.s32.f32 %v1960
        %v2985 = vcvt.s32.f32 %v1961
        %v2986 = vcvt.s32.f32 %v1962
        %v2987 = vcvt.s32.f32 %v1963
        %v2988 = vcvt.s32.f32 %v1964
        %v2989 = vcvt.s32.f32 %v1965
        %v2990 = vcvt.s32.f32 %v1966
        %v2991 = vcvt.s32.f32 %v1967
        %v2992 = vcvt.s32.f32 %v1968
        %v2993 = vcvt.s32.f32 %v1969
        %v2994 = vcvt.s32.f32 %v1970
        %v2995 = vcvt.s32.f32 %v1971
        %v2996 = vcvt.s32.f32 %v1972
        %v2997 = vcvt.s32.f32 %v1973
        %v2998 = vcvt.s32.f32 %v1974
        %v2999 = vcvt.s32.f32 %v1975
        %v3000 = vcvt.s32.f32 %v1976
        %v3001 = vcvt.s32.f32 %v1977
        %v3002 = vcvt.s32.f32 %v1978
        %v3003 = vcvt.s32.f32 %v1979
        %v3004 = vcvt.s32.f32 %v1980
        %v3005 = vcvt.s32.f32 %v1981
        %v3006 = vcvt.s32.f32 %v1982
        %v3007 = vcvt.s32.f32 %v1983
        %v3008 = vcvt.s32.f32 %v1984
        %v3009 = vcvt.s32.f32 %v1985
        %v3010 = vcvt.s32.f32 %v1986
        %v3011 = vcvt.s32.f32 %v1987
        %v3012 = vcvt.s32.f32 %v1988
        %v3013 = vcvt.s32.f32 %v1989
        %v3014 = vcvt.s32.f32 %v1990
        %v3015 = vcvt.s32.f32 %v1991
        %v3016 = vcvt.s32.f32 %v1992
        %v3017 = vcvt.s32.f32 %v1993
        %v3018 = vcvt.s32.f32 %v1994
        %v3019 = vcvt.s32.f32 %v1995
        %v3020 = vcvt.s32.f32 %v1996
        %v3021 = vcvt.s32.f32 %v1997
        %v3022 = vcvt.s32.f32 %v1998
        %v3023 = vcvt.s32.f32 %v1999
        %v3024 = vcvt.s32.f32 %v2000
        %v3025 = vcvt.s32.f32 %v2001
        %v3026 = vcvt.s32.f32 %v2002
        %v3027 = vcvt.s32.f32 %v2003
        %v3028 = vcvt.s32.f32 %v2004
        %v3029 = vcvt.s32.f32 %v2005
        %v3030 = vcvt.s32.f32 %v2006
        %v3031 = vcvt.s32.f32 %v2007
        %v3032 = vcvt.s32.f32 %v2008
        %v3033 = vcvt.s32.f32 %v2009
        %v3034 = vcvt.s32.f32 %v2010
        %v3035 = vcvt.s32.f32 %v2011
        %v3036 = vcvt.s32.f32 %v2012
        %v3037 = vcvt.s32.f32 %v2013
        %v3038 = vcvt.s32.f32 %v2014
        %v3039 = vcvt.s32.f32 %v2015
        %v3040 = vcvt.s32.f32 %v2016
        %v3041 = vcvt.s32.f32 %v2017
        %v3042 = vcvt.s32.f32 %v2018
        %v3043 = vcvt.s32.f32 %v2019
        %v3044 = vcvt.s32.f32 %v2020
        %v3045 = vcvt.s32.f32 %v2021
        %v3046 = vcvt.s32.f32 %v2022
        %v3047 = vcvt.s32.f32 %v2023
        %v3048 = vcvt.s32.f32 %v2024
        %v3049 = vcvt.s32.f32 %v2025
        %v3050 = vcvt.s32.f32 %v2026
        %v3051 = vcvt.s32.f32 %v2027
        %v3052 = vcvt.s32.f32 %v2028
        %v3053 = vcvt.s32.f32 %v2029
        %v3054 = vcvt.s32.f32 %v2030
        %v3055 = vcvt.s32.f32 %v2031
        %v3056 = vcvt.s32.f32 %v2032
        %v3057 = vcvt.s32.f32 %v2033
        %v3058 = vcvt.s32.f32 %v2034
        %v3059 = vcvt.s32.f32 %v2035
        %v3060 = vcvt.s32.f32 %v2036
        %v3061 = vcvt.s32.f32 %v2037
        %v3062 = vcvt.s32.f32 %v2038
        %v3063 = vcvt.s32.f32 %v2039
        %v3064 = vcvt.s32.f32 %v2040
        %v3065 = vcvt.s32.f32 %v2041
        %v3066 = vcvt.s32.f32 %v2042
        %v3067 = vcvt.s32.f32 %v2043
        %v3068 = vcvt.s32.f32 %v2044
        %v3069 = vcvt.s32.f32 %v2045
        %v3070 = vcvt.s32.f32 %v2046
        %v3071 = vcvt.s32.f32 %v2047
        %v3072 = vcvt.s32.f32 %v2048
        %v3073 = vcvt.s32.f32 %v2049
        %v3074 = vcvt.s32.f32 %v2050
        %v3075 = vcvt.s32.f32 %v2051
        %v3076 = vcvt.s32.f32 %v2052
        %v3077 = vcvt.s32.f32 %v2053
        %v3078 = vcvt.s32.f32 %v2054
        %v3079 = vcvt.s32.f32 %v2055
        %v3080 = vcvt.s32.f32 %v2056
        %v3081 = vcvt.s32.f32 %v2057
        %v3082 = vcvt.s32.f32 %v2058
        %v3083 = vcvt.s32.f32 %v2059
        %v3084 = vcvt.s32.f32 %v2060
        %v3085 = vcvt.s32.f32 %v2061
        %v3086 = vcvt.s32.f32 %v2062
        %v3087 = vcvt.s32.f32 %v2063
        %v3088 = vcvt.s32.f32 %v2064
        %v3089 = vcvt.s32.f32 %v2065
        %v3090 = vcvt.s32.f32 %v2066
        %v3091 = vcvt.s32.f32 %v2067
        %v3092 = vcvt.s32.f32 %v2068
        %v3093 = vcvt.s32.f32 %v2069
        %v3094 = vcvt.s32.f32 %v2070
        %v3095 = vcvt.s32.f32 %v2071
        %v3096 = vcvt.s32.f32 %v2072
        %v3097 = vcvt.s32.f32 %v2073
        %v3098 = vcvt.s32.f32 %v2074
        %v3099 = vcvt.s32.f32 %v2075
        %v3100 = vcvt.s32.f32 %v2076
        %v3101 = vcvt.s32.f32 %v2077
        %v3102 = vcvt.s32.f32 %v2078
        %v3103 = vcvt.s32.f32 %v2079
        %v3104 = vcvt.s32.f32 %v2080
        %v3105 = vcvt.s32.f32 %v2081
        %v3106 = vcvt.s32.f32 %v2082
        %v3107 = vcvt.s32.f32 %v2083
        %v3108 = vcvt.s32.f32 %v2084
        %v3109 = vcvt.s32.f32 %v2085
        %v3110 = vcvt.s32.f32 %v2086
        %v3111 = vcvt.s32.f32 %v2087
        %v3112 = vcvt.s32.f32 %v2088
        %v3113 = vcvt.s32.f32 %v2089
        %v3114 = vcvt.s32.f32 %v2090
        %v3115 = vcvt.s32.f32 %v2091
        %v3116 = vcvt.s32.f32 %v2092
        %v3117 = vcvt.s32.f32 %v2093
        %v3118 = vcvt.s32.f32 %v2094
        %v3119 = vcvt.s32.f32 %v2095
        %v3120 = vcvt.s32.f32 %v2096
        %v3121 = vcvt.s32.f32 %v2097
        %v3122 = vcvt.s32.f32 %v2098
        %v3123 = vcvt.s32.f32 %v2099
        %v3124 = vcvt.s32.f32 %v2100
        %v3125 = vcvt.s32.f32 %v2101
        %v3126 = vcvt.s32.f32 %v2102
        %v3127 = vcvt.s32.f32 %v2103
        %v3128 = vcvt.s32.f32 %v2104
        %v3129 = vcvt.s32.f32 %v2105
        %v3130 = vcvt.s32.f32 %v2106
        %v3131 = vcvt.s32.f32 %v2107
        %v3132 = vcvt.s32.f32 %v2108
        %v3133 = vcvt.s32.f32 %v2109
        %v3134 = vcvt.s32.f32 %v2110
        %v3135 = vcvt.s32.f32 %v2111
        %v3136 = vcvt.s32.f32 %v2112
        %v3137 = vcvt.s32.f32 %v2113
        %v3138 = vcvt.s32.f32 %v2114
        %v3139 = vcvt.s32.f32 %v2115
        %v3140 = vcvt.s32.f32 %v2116
        %v3141 = vcvt.s32.f32 %v2117
        %v3142 = vcvt.s32.f32 %v2118
        %v3143 = vcvt.s32.f32 %v2119
        %v3144 = vcvt.s32.f32 %v2120
        %v3145 = vcvt.s32.f32 %v2121
        %v3146 = vcvt.s32.f32 %v2122
        %v3147 = vcvt.s32.f32 %v2123
        %v3148 = vcvt.s32.f32 %v2124
        %v3149 = vcvt.s32.f32 %v2125
        %v3150 = vcvt.s32.f32 %v2126
        %v3151 = vcvt.s32.f32 %v2127
        %v3152 = vcvt.s32.f32 %v2128
        %v3153 = vcvt.s32.f32 %v2129
        %v3154 = vcvt.s32.f32 %v2130
        %v3155 = vcvt.s32.f32 %v2131
        %v3156 = vcvt.s32.f32 %v2132
        %v3157 = vcvt.s32.f32 %v2133
        %v3158 = vcvt.s32.f32 %v2134
        %v3159 = vcvt.s32.f32 %v2135
        %v3160 = vcvt.s32.f32 %v2136
        %v3161 = vcvt.s32.f32 %v2137
        %v3162 = vcvt.s32.f32 %v2138
        %v3163 = vcvt.s32.f32 %v2139
        %v3164 = vcvt.s32.f32 %v2140
        %v3165 = vcvt.s32.f32 %v2141
        %v3166 = vcvt.s32.f32 %v2142
        %v3167 = vcvt.s32.f32 %v2143
        %v3168 = vcvt.s32.f32 %v2144
        %v3169 = vcvt.s32.f32 %v2145
        %v3170 = vcvt.s32.f32 %v2146
        %v3171 = vcvt.s32.f32 %v2147
        %v3172 = vcvt.s32.f32 %v2148
        %v3173 = vcvt.s32.f32 %v2149
        %v3174 = vcvt.s32.f32 %v2150
        %v3175 = vcvt.s32.f32 %v2151
        %v3176 = vcvt.s32.f32 %v2152
        %v3177 = vcvt.s32.f32 %v2153
        %v3178 = vcvt.s32.f32 %v2154
        %v3179 = vcvt.s32.f32 %v2155
        %v3180 = vcvt.s32.f32 %v2156
        %v3181 = vcvt.s32.f32 %v2157
        %v3182 = vcvt.s32.f32 %v2158
        %v3183 = vcvt.s32.f32 %v2159
        %v3184 = vcvt.s32.f32 %v2160
        %v3185 = vcvt.s32.f32 %v2161
        %v3186 = vcvt.s32.f32 %v2162
        %v3187 = vcvt.s32.f32 %v2163
        %v3188 = vcvt.s32.f32 %v2164
        %v3189 = vcvt.s32.f32 %v2165
        %v3190 = vcvt.s32.f32 %v2166
        %v3191 = vcvt.s32.f32 %v2167
        %v3192 = vcvt.s32.f32 %v2168
        %v3193 = vcvt.s32.f32 %v2169
        %v3194 = vcvt.s32.f32 %v2170
        %v3195 = vcvt.s32.f32 %v2171
        %v3196 = vcvt.s32.f32 %v2172
        %v3197 = vcvt.s32.f32 %v2173
        %v3198 = vcvt.s32.f32 %v2174
        %v3199 = vcvt.s32.f32 %v2175
        %v3200 = vcvt.s32.f32 %v2176
        %v3201 = vcvt.s32.f32 %v2177
        %v3202 = vcvt.s32.f32 %v2178
        %v3203 = vcvt.s32.f32 %v2179
        %v3204 = vcvt.s32.f32 %v2180
        %v3205 = vcvt.s32.f32 %v2181
        %v3206 = vcvt.s32.f32 %v2182
        %v3207 = vcvt.s32.f32 %v2183
        %v3208 = vcvt.s32.f32 %v2184
        %v3209 = vcvt.s32.f32 %v2185
        %v3210 = vcvt.s32.f32 %v2186
        %v3211 = vcvt.s32.f32 %v2187
        %v3212 = vcvt.s32.f32 %v2188
        %v3213 = vcvt.s32.f32 %v2189
        %v3214 = vcvt.s32.f32 %v2190
        %v3215 = vcvt.s32.f32 %v2191
        %v3216 = vcvt.s32.f32 %v2192
        %v3217 = vcvt.s32.f32 %v2193
        %v3218 = vcvt.s32.f32 %v2194
        %v3219 = vcvt.s32.f32 %v2195
        %v3220 = vcvt.s32.f32 %v2196
        %v3221 = vcvt.s32.f32 %v2197
        %v3222 = vcvt.s32.f32 %v2198
        %v3223 = vcvt.s32.f32 %v2199
        %v3224 = vcvt.s32.f32 %v2200
        %v3225 = vcvt.s32.f32 %v2201
        %v3226 = vcvt.s32.f32 %v2202
        %v3227 = vcvt.s32.f32 %v2203
        %v3228 = vcvt.s32.f32 %v2204
        %v3229 = vcvt.s32.f32 %v2205
        %v3230 = vcvt.s32.f32 %v2206
        %v3231 = vcvt.s32.f32 %v2207
        %v3232 = vcvt.s32.f32 %v2208
        %v3233 = vcvt.s32.f32 %v2209
        %v3234 = vcvt.s32.f32 %v2210
        %v3235 = vcvt.s32.f32 %v2211
        %v3236 = vcvt.s32.f32 %v2212
        %v3237 = vcvt.s32.f32 %v2213
        %v3238 = vcvt.s32.f32 %v2214
        %v3239 = vcvt.s32.f32 %v2215
        %v3240 = vcvt.s32.f32 %v2216
        %v3241 = vcvt.s32.f32 %v2217
        %v3242 = vcvt.s32.f32 %v2218
        %v3243 = vcvt.s32.f32 %v2219
        %v3244 = vcvt.s32.f32 %v2220
        %v3245 = vcvt.s32.f32 %v2221
        %v3246 = vcvt.s32.f32 %v2222
        %v3247 = vcvt.s32.f32 %v2223
        %v3248 = vcvt.s32.f32 %v2224
        %v3249 = vcvt.s32.f32 %v2225
        %v3250 = vcvt.s32.f32 %v2226
        %v3251 = vcvt.s32.f32 %v2227
        %v3252 = vcvt.s32.f32 %v2228
        %v3253 = vcvt.s32.f32 %v2229
        %v3254 = vcvt.s32.f32 %v2230
        %v3255 = vcvt.s32.f32 %v2231
        %v3256 = vcvt.s32.f32 %v2232
        %v3257 = vcvt.s32.f32 %v2233
        %v3258 = vcvt.s32.f32 %v2234
        %v3259 = vcvt.s32.f32 %v2235
        %v3260 = vcvt.s32.f32 %v2236
        %v3261 = vcvt.s32.f32 %v2237
        %v3262 = vcvt.s32.f32 %v2238
        %v3263 = vcvt.s32.f32 %v2239
        %v3264 = vcvt.s32.f32 %v2240
        %v3265 = vcvt.s32.f32 %v2241
        %v3266 = vcvt.s32.f32 %v2242
        %v3267 = vcvt.s32.f32 %v2243
        %v3268 = vcvt.s32.f32 %v2244
        %v3269 = vcvt.s32.f32 %v2245
        %v3270 = vcvt.s32.f32 %v2246
        %v3271 = vcvt.s32.f32 %v2247
        %v3272 = vcvt.s32.f32 %v2248
        %v3273 = vcvt.s32.f32 %v2249
        %v3274 = vcvt.s32.f32 %v2250
        %v3275 = vcvt.s32.f32 %v2251
        %v3276 = vcvt.s32.f32 %v2252
        %v3277 = vcvt.s32.f32 %v2253
        %v3278 = vcvt.s32.f32 %v2254
        %v3279 = vcvt.s32.f32 %v2255
        %v3280 = vcvt.s32.f32 %v2256
        %v3281 = vcvt.s32.f32 %v2257
        %v3282 = vcvt.s32.f32 %v2258
        %v3283 = vcvt.s32.f32 %v2259
        %v3284 = vcvt.s32.f32 %v2260
        %v3285 = vcvt.s32.f32 %v2261
        %v3286 = vcvt.s32.f32 %v2262
        %v3287 = vcvt.s32.f32 %v2263
        %v3288 = vcvt.s32.f32 %v2264
        %v3289 = vcvt.s32.f32 %v2265
        %v3290 = vcvt.s32.f32 %v2266
        %v3291 = vcvt.s32.f32 %v2267
        %v3292 = vcvt.s32.f32 %v2268
        %v3293 = vcvt.s32.f32 %v2269
        %v3294 = vcvt.s32.f32 %v2270
        %v3295 = vcvt.s32.f32 %v2271
        %v3296 = vcvt.s32.f32 %v2272
        %v3297 = vcvt.s32.f32 %v2273
        %v3298 = vcvt.s32.f32 %v2274
        %v3299 = vcvt.s32.f32 %v2275
        %v3300 = vcvt.s32.f32 %v2276
        %v3301 = vcvt.s32.f32 %v2277
        %v3302 = vcvt.s32.f32 %v2278
        %v3303 = vcvt.s32.f32 %v2279
        %v3304 = vcvt.s32.f32 %v2280
        %v3305 = vcvt.s32.f32 %v2281
        %v3306 = vcvt.s32.f32 %v2282
        %v3307 = vcvt.s32.f32 %v2283
        %v3308 = vcvt.s32.f32 %v2284
        %v3309 = vcvt.s32.f32 %v2285
        %v3310 = vcvt.s32.f32 %v2286
        %v3311 = vcvt.s32.f32 %v2287
        %v3312 = vcvt.s32.f32 %v2288
        %v3313 = vcvt.s32.f32 %v2289
        %v3314 = vcvt.s32.f32 %v2290
        %v3315 = vcvt.s32.f32 %v2291
        %v3316 = vcvt.s32.f32 %v2292
        %v3317 = vcvt.s32.f32 %v2293
        %v3318 = vcvt.s32.f32 %v2294
        %v3319 = vcvt.s32.f32 %v2295
        %v3320 = vcvt.s32.f32 %v2296
        %v3321 = vcvt.s32.f32 %v2297
        %v3322 = vcvt.s32.f32 %v2298
        %v3323 = vcvt.s32.f32 %v2299
        %v3324 = vcvt.s32.f32 %v2300
        %v3325 = vcvt.s32.f32 %v2301
        %v3326 = vcvt.s32.f32 %v2302
        %v3327 = vcvt.s32.f32 %v2303
        %v3328 = vcvt.s32.f32 %v2304
        %v3329 = vcvt.s32.f32 %v2305
        %v3330 = vcvt.s32.f32 %v2306
        %v3331 = vcvt.s32.f32 %v2307
        %v3332 = vcvt.s32.f32 %v2308
        %v3333 = vcvt.s32.f32 %v2309
        %v3334 = vcvt.s32.f32 %v2310
        %v3335 = vcvt.s32.f32 %v2311
        %v3336 = vcvt.s32.f32 %v2312
        %v3337 = vcvt.s32.f32 %v2313
        %v3338 = vcvt.s32.f32 %v2314
        %v3339 = vcvt.s32.f32 %v2315
        %v3340 = vcvt.s32.f32 %v2316
        %v3341 = vcvt.s32.f32 %v2317
        %v3342 = vcvt.s32.f32 %v2318
        %v3343 = vcvt.s32.f32 %v2319
        %v3344 = vcvt.s32.f32 %v2320
        %v3345 = vcvt.s32.f32 %v2321
        %v3346 = vcvt.s32.f32 %v2322
        %v3347 = vcvt.s32.f32 %v2323
        %v3348 = vcvt.s32.f32 %v2324
        %v3349 = vcvt.s32.f32 %v2325
        %v3350 = vcvt.s32.f32 %v2326
        %v3351 = vcvt.s32.f32 %v2327
        %v3352 = vcvt.s32.f32 %v2328
        %v3353 = vcvt.s32.f32 %v2329
        %v3354 = vcvt.s32.f32 %v2330
        %v3355 = vcvt.s32.f32 %v2331
        %v3356 = vcvt.s32.f32 %v2332
        %v3357 = vcvt.s32.f32 %v2333
        %v3358 = vcvt.s32.f32 %v2334
        %v3359 = vcvt.s32.f32 %v2335
        %v3360 = vcvt.s32.f32 %v2336
        %v3361 = vcvt.s32.f32 %v2337
        %v3362 = vcvt.s32.f32 %v2338
        %v3363 = vcvt.s32.f32 %v2339
        %v3364 = vcvt.s32.f32 %v2340
        %v3365 = vcvt.s32.f32 %v2341
        %v3366 = vcvt.s32.f32 %v2342
        %v3367 = vcvt.s32.f32 %v2343
        %v3368 = vcvt.s32.f32 %v2344
        %v3369 = vcvt.s32.f32 %v2345
        %v3370 = vcvt.s32.f32 %v2346
        %v3371 = vcvt.s32.f32 %v2347
        %v3372 = vcvt.s32.f32 %v2348
        %v3373 = vcvt.s32.f32 %v2349
        %v3374 = vcvt.s32.f32 %v2350
        %v3375 = vcvt.s32.f32 %v2351
        %v3376 = vcvt.s32.f32 %v2352
        %v3377 = vcvt.s32.f32 %v2353
        %v3378 = vcvt.s32.f32 %v2354
        %v3379 = vcvt.s32.f32 %v2355
        %v3380 = vcvt.s32.f32 %v2356
        %v3381 = vcvt.s32.f32 %v2357
        %v3382 = vcvt.s32.f32 %v2358
        %v3383 = vcvt.s32.f32 %v2359
        %v3384 = vcvt.s32.f32 %v2360
        %v3385 = vcvt.s32.f32 %v2361
        %v3386 = vcvt.s32.f32 %v2362
        %v3387 = vcvt.s32.f32 %v2363
        %v3388 = vcvt.s32.f32 %v2364
        %v3389 = vcvt.s32.f32 %v2365
        %v3390 = vcvt.s32.f32 %v2366
        %v3391 = vcvt.s32.f32 %v2367
        %v3392 = vcvt.s32.f32 %v2368
        %v3393 = vcvt.s32.f32 %v2369
        %v3394 = vcvt.s32.f32 %v2370
        %v3395 = vcvt.s32.f32 %v2371
        %v3396 = vcvt.s32.f32 %v2372
        %v3397 = vcvt.s32.f32 %v2373
        %v3398 = vcvt.s32.f32 %v2374
        %v3399 = vcvt.s32.f32 %v2375
        %v3400 = vcvt.s32.f32 %v2376
        %v3401 = vcvt.s32.f32 %v2377
        %v3402 = vcvt.s32.f32 %v2378
        %v3403 = vcvt.s32.f32 %v2379
        %v3404 = vcvt.s32.f32 %v2380
        %v3405 = vcvt.s32.f32 %v2381
        %v3406 = vcvt.s32.f32 %v2382
        %v3407 = vcvt.s32.f32 %v2383
        %v3408 = vcvt.s32.f32 %v2384
        %v3409 = vcvt.s32.f32 %v2385
        %v3410 = vcvt.s32.f32 %v2386
        %v3411 = vcvt.s32.f32 %v2387
        %v3412 = vcvt.s32.f32 %v2388
        %v3413 = vcvt.s32.f32 %v2389
        %v3414 = vcvt.s32.f32 %v2390
        %v3415 = vcvt.s32.f32 %v2391
        %v3416 = vcvt.s32.f32 %v2392
        %v3417 = vcvt.s32.f32 %v2393
        %v3418 = vcvt.s32.f32 %v2394
        %v3419 = vcvt.s32.f32 %v2395
        %v3420 = vcvt.s32.f32 %v2396
        %v3421 = vcvt.s32.f32 %v2397
        %v3422 = vcvt.s32.f32 %v2398
        %v3423 = vcvt.s32.f32 %v2399
        %v3424 = vcvt.s32.f32 %v2400
        %v3425 = vcvt.s32.f32 %v2401
        %v3426 = vcvt.s32.f32 %v2402
        %v3427 = vcvt.s32.f32 %v2403
        %v3428 = vcvt.s32.f32 %v2404
        %v3429 = vcvt.s32.f32 %v2405
        %v3430 = vcvt.s32.f32 %v2406
        %v3431 = vcvt.s32.f32 %v2407
        %v3432 = vcvt.s32.f32 %v2408
        %v3433 = vcvt.s32.f32 %v2409
        %v3434 = vcvt.s32.f32 %v2410
        %v3435 = vcvt.s32.f32 %v2411
        %v3436 = vcvt.s32.f32 %v2412
        %v3437 = vcvt.s32.f32 %v2413
        %v3438 = vcvt.s32.f32 %v2414
        %v3439 = vcvt.s32.f32 %v2415
        %v3440 = vcvt.s32.f32 %v2416
        %v3441 = vcvt.s32.f32 %v2417
        %v3442 = vcvt.s32.f32 %v2418
        %v3443 = vcvt.s32.f32 %v2419
        %v3444 = vcvt.s32.f32 %v2420
        %v3445 = vcvt.s32.f32 %v2421
        %v3446 = vcvt.s32.f32 %v2422
        %v3447 = vcvt.s32.f32 %v2423
        %v3448 = vcvt.s32.f32 %v2424
        %v3449 = vcvt.s32.f32 %v2425
        %v3450 = vcvt.s32.f32 %v2426
        %v3451 = vcvt.s32.f32 %v2427
        %v3452 = vcvt.s32.f32 %v2428
        %v3453 = vcvt.s32.f32 %v2429
        %v3454 = vcvt.s32.f32 %v2430
        %v3455 = vcvt.s32.f32 %v2431
        %v3456 = vcvt.s32.f32 %v2432
        %v3457 = vcvt.s32.f32 %v2433
        %v3458 = vcvt.s32.f32 %v2434
        %v3459 = vcvt.s32.f32 %v2435
        %v3460 = vcvt.s32.f32 %v2436
        %v3461 = vcvt.s32.f32 %v2437
        %v3462 = vcvt.s32.f32 %v2438
        %v3463 = vcvt.s32.f32 %v2439
        %v3464 = vcvt.s32.f32 %v2440
        %v3465 = vcvt.s32.f32 %v2441
        %v3466 = vcvt.s32.f32 %v2442
        %v3467 = vcvt.s32.f32 %v2443
        %v3468 = vcvt.s32.f32 %v2444
        %v3469 = vcvt.s32.f32 %v2445
        %v3470 = vcvt.s32.f32 %v2446
        %v3471 = vcvt.s32.f32 %v2447
        %v3472 = vcvt.s32.f32 %v2448
        %v3473 = vcvt.s32.f32 %v2449
        %v3474 = vcvt.s32.f32 %v2450
        %v3475 = vcvt.s32.f32 %v2451
        %v3476 = vcvt.s32.f32 %v2452
        %v3477 = vcvt.s32.f32 %v2453
        %v3478 = vcvt.s32.f32 %v2454
        %v3479 = vcvt.s32.f32 %v2455
        %v3480 = vcvt.s32.f32 %v2456
        %v3481 = vcvt.s32.f32 %v2457
        %v3482 = vcvt.s32.f32 %v2458
        %v3483 = vcvt.s32.f32 %v2459
        %v3484 = vcvt.s32.f32 %v2460
        %v3485 = vcvt.s32.f32 %v2461
        %v3486 = vcvt.s32.f32 %v2462
        %v3487 = vcvt.s32.f32 %v2463
        %v3488 = vcvt.s32.f32 %v2464
        %v3489 = vcvt.s32.f32 %v2465
        %v3490 = vcvt.s32.f32 %v2466
        %v3491 = vcvt.s32.f32 %v2467
        %v3492 = vcvt.s32.f32 %v2468
        %v3493 = vcvt.s32.f32 %v2469
        %v3494 = vcvt.s32.f32 %v2470
        %v3495 = vcvt.s32.f32 %v2471
        %v3496 = vcvt.s32.f32 %v2472
        %v3497 = vcvt.s32.f32 %v2473
        %v3498 = vcvt.s32.f32 %v2474
        %v3499 = vcvt.s32.f32 %v2475
        %v3500 = vcvt.s32.f32 %v2476
        %v3501 = vcvt.s32.f32 %v2477
        %v3502 = vcvt.s32.f32 %v2478
        %v3503 = vcvt.s32.f32 %v2479
        %v3504 = vcvt.s32.f32 %v2480
        %v3505 = vcvt.s32.f32 %v2481
        %v3506 = vcvt.s32.f32 %v2482
        %v3507 = vcvt.s32.f32 %v2483
        %v3508 = vcvt.s32.f32 %v2484
        %v3509 = vcvt.s32.f32 %v2485
        %v3510 = vcvt.s32.f32 %v2486
        %v3511 = vcvt.s32.f32 %v2487
        %v3512 = vcvt.s32.f32 %v2488
        %v3513 = vcvt.s32.f32 %v2489
        %v3514 = vcvt.s32.f32 %v2490
        %v3515 = vcvt.s32.f32 %v2491
        %v3516 = vcvt.s32.f32 %v2492
        %v3517 = vcvt.s32.f32 %v2493
        %v3518 = vcvt.s32.f32 %v2494
        %v3519 = vcvt.s32.f32 %v2495
        %v3520 = vcvt.s32.f32 %v2496
        %v3521 = vcvt.s32.f32 %v2497
        %v3522 = vcvt.s32.f32 %v2498
        %v3523 = vcvt.s32.f32 %v2499
        %v3524 = vcvt.s32.f32 %v2500
        %v3525 = vcvt.s32.f32 %v2501
        %v3526 = vcvt.s32.f32 %v2502
        %v3527 = vcvt.s32.f32 %v2503
        %v3528 = vcvt.s32.f32 %v2504
        %v3529 = vcvt.s32.f32 %v2505
        %v3530 = vcvt.s32.f32 %v2506
        %v3531 = vcvt.s32.f32 %v2507
        %v3532 = vcvt.s32.f32 %v2508
        %v3533 = vcvt.s32.f32 %v2509
        %v3534 = vcvt.s32.f32 %v2510
        %v3535 = vcvt.s32.f32 %v2511
        %v3536 = vcvt.s32.f32 %v2512
        %v3537 = vcvt.s32.f32 %v2513
        %v3538 = vcvt.s32.f32 %v2514
        %v3539 = vcvt.s32.f32 %v2515
        %v3540 = vcvt.s32.f32 %v2516
        %v3541 = vcvt.s32.f32 %v2517
        %v3542 = vcvt.s32.f32 %v2518
        %v3543 = vcvt.s32.f32 %v2519
        %v3544 = vcvt.s32.f32 %v2520
        %v3545 = vcvt.s32.f32 %v2521
        %v3546 = vcvt.s32.f32 %v2522
        %v3547 = vcvt.s32.f32 %v2523
        %v3548 = vcvt.s32.f32 %v2524
        %v3549 = vcvt.s32.f32 %v2525
        %v3550 = vcvt.s32.f32 %v2526
        %v3551 = vcvt.s32.f32 %v2527
        %v3552 = vcvt.s32.f32 %v2528
        %v3553 = vcvt.s32.f32 %v2529
        %v3554 = vcvt.s32.f32 %v2530
        %v3555 = vcvt.s32.f32 %v2531
        %v3556 = vcvt.s32.f32 %v2532
        %v3557 = vcvt.s32.f32 %v2533
        %v3558 = vcvt.s32.f32 %v2534
        %v3559 = vcvt.s32.f32 %v2535
        %v3560 = vcvt.s32.f32 %v2536
        %v3561 = vcvt.s32.f32 %v2537
        %v3562 = vcvt.s32.f32 %v2538
        %v3563 = vcvt.s32.f32 %v2539
        %v3564 = vcvt.s32.f32 %v2540
        %v3565 = vcvt.s32.f32 %v2541
        %v3566 = vcvt.s32.f32 %v2542
        %v3567 = vcvt.s32.f32 %v2543
        %v3568 = vcvt.s32.f32 %v2544
        %v3569 = vcvt.s32.f32 %v2545
        %v3570 = vcvt.s32.f32 %v2546
        %v3571 = vcvt.s32.f32 %v2547
        %v3572 = vcvt.s32.f32 %v2548
        %v3573 = vcvt.s32.f32 %v2549
        %v3574 = vcvt.s32.f32 %v2550
        %v3575 = vcvt.s32.f32 %v2551
        %v3576 = vcvt.s32.f32 %v2552
        %v3577 = vcvt.s32.f32 %v2553
        %v3578 = vcvt.s32.f32 %v2554
        %v3579 = vcvt.s32.f32 %v2555
        %v3580 = vcvt.s32.f32 %v2556
        %v3581 = vcvt.s32.f32 %v2557
        %v3582 = vcvt.s32.f32 %v2558
        %v3583 = vcvt.s32.f32 %v2559
        %v3584 = vcvt.s32.f32 %v2560
        %v3585 = vcvt.s32.f32 %v2561
        %v3586 = vcvt.s32.f32 %v2562
        %v3587 = vcvt.s32.f32 %v2563
        %v3588 = vcvt.s32.f32 %v2564
        %v3589 = vcvt.s32.f32 %v2565
        %v3590 = vcvt.s32.f32 %v2566
        %v3591 = vcvt.s32.f32 %v2567
        %v3592 = vcvt.s32.f32 %v2568
        %v3593 = vcvt.s32.f32 %v2569
        %v3594 = vcvt.s32.f32 %v2570
        %v3595 = vcvt.s32.f32 %v2571
        %v3596 = vcvt.s32.f32 %v2572
        %v3597 = vcvt.s32.f32 %v2573
        %v3598 = vcvt.s32.f32 %v2574
        %v3599 = vcvt.s32.f32 %v2575
        %v3600 = vcvt.s32.f32 %v2576
        %v3601 = vcvt.s32.f32 %v2577
        %v3602 = vcvt.s32.f32 %v2578
        %v3603 = vcvt.s32.f32 %v2579
        %v3604 = vcvt.s32.f32 %v2580
        %v3605 = vcvt.s32.f32 %v2581
        %v3606 = vcvt.s32.f32 %v2582
        %v3607 = vcvt.s32.f32 %v2583
        %v3608 = vcvt.s32.f32 %v2584
        %v3609 = vcvt.s32.f32 %v2585
        %v3610 = vcvt.s32.f32 %v2586
        %v3611 = vcvt.s32.f32 %v2587
        %v3612 = vcvt.s32.f32 %v2588
        %v3613 = vcvt.s32.f32 %v2589
        %v3614 = vcvt.s32.f32 %v2590
        %v3615 = vcvt.s32.f32 %v2591
        %v3616 = vcvt.s32.f32 %v2592
        %v3617 = vcvt.s32.f32 %v2593
        %v3618 = vcvt.s32.f32 %v2594
        %v3619 = vcvt.s32.f32 %v2595
        %v3620 = vcvt.s32.f32 %v2596
        %v3621 = vcvt.s32.f32 %v2597
        %v3622 = vcvt.s32.f32 %v2598
        %v3623 = vcvt.s32.f32 %v2599
        %v3624 = vcvt.s32.f32 %v2600
        %v3625 = vcvt.s32.f32 %v2601
        %v3626 = vcvt.s32.f32 %v2602
        %v3627 = vcvt.s32.f32 %v2603
        %v3628 = vcvt.s32.f32 %v2604
        %v3629 = vcvt.s32.f32 %v2605
        %v3630 = vcvt.s32.f32 %v2606
        %v3631 = vcvt.s32.f32 %v2607
        %v3632 = vcvt.s32.f32 %v2608
        %v3633 = vcvt.s32.f32 %v2609
        %v3634 = vcvt.s32.f32 %v2610
        %v3635 = vcvt.s32.f32 %v2611
        %v3636 = vcvt.s32.f32 %v2612
        %v3637 = vcvt.s32.f32 %v2613
        %v3638 = vcvt.s32.f32 %v2614
        %v3639 = vcvt.s32.f32 %v2615
        %v3640 = vcvt.s32.f32 %v2616
        %v3641 = vcvt.s32.f32 %v2617
        %v3642 = vcvt.s32.f32 %v2618
        %v3643 = vcvt.s32.f32 %v2619
        %v3644 = vcvt.s32.f32 %v2620
        %v3645 = vcvt.s32.f32 %v2621
        %v3646 = vcvt.s32.f32 %v2622
        %v3647 = vcvt.s32.f32 %v2623
        %v3648 = vcvt.s32.f32 %v2624
        %v3649 = vcvt.s32.f32 %v2625
        %v3650 = vcvt.s32.f32 %v2626
        %v3651 = vcvt.s32.f32 %v2627
        %v3652 = vcvt.s32.f32 %v2628
        %v3653 = vcvt.s32.f32 %v2629
        %v3654 = vcvt.s32.f32 %v2630
        %v3655 = vcvt.s32.f32 %v2631
        %v3656 = vcvt.s32.f32 %v2632
        %v3657 = vcvt.s32.f32 %v2633
        %v3658 = vcvt.s32.f32 %v2634
        %v3659 = vcvt.s32.f32 %v2635
        %v3660 = vcvt.s32.f32 %v2636
        %v3661 = vcvt.s32.f32 %v2637
        %v3662 = vcvt.s32.f32 %v2638
        %v3663 = vcvt.s32.f32 %v2639
        %v3664 = vcvt.s32.f32 %v2640
        %v3665 = vcvt.s32.f32 %v2641
        %v3666 = vcvt.s32.f32 %v2642
        %v3667 = vcvt.s32.f32 %v2643
        %v3668 = vcvt.s32.f32 %v2644
        %v3669 = vcvt.s32.f32 %v2645
        %v3670 = vcvt.s32.f32 %v2646
        %v3671 = vcvt.s32.f32 %v2647
        %v3672 = vcvt.s32.f32 %v2648
        %v3673 = vcvt.s32.f32 %v2649
        %v3674 = vcvt.s32.f32 %v2650
        %v3675 = vcvt.s32.f32 %v2651
        %v3676 = vcvt.s32.f32 %v2652
        %v3677 = vcvt.s32.f32 %v2653
        %v3678 = vcvt.s32.f32 %v2654
        %v3679 = vcvt.s32.f32 %v2655
        %v3680 = vcvt.s32.f32 %v2656
        %v3681 = vcvt.s32.f32 %v2657
        %v3682 = vcvt.s32.f32 %v2658
        %v3683 = vcvt.s32.f32 %v2659
        %v3684 = vcvt.s32.f32 %v2660
        %v3685 = vcvt.s32.f32 %v2661
        %v3686 = vcvt.s32.f32 %v2662
        %v3687 = vcvt.s32.f32 %v2663
        %v3688 = vcvt.s32.f32 %v2664
        %v3689 = vcvt.s32.f32 %v2665
        %v3690 = vcvt.s32.f32 %v2666
        %v3691 = vcvt.s32.f32 %v2667
        %v3692 = vcvt.s32.f32 %v2668
        %v3693 = vcvt.s32.f32 %v2669
        %v3694 = vcvt.s32.f32 %v2670
        %v3695 = vcvt.s32.f32 %v2671
        %v3696 = vcvt.s32.f32 %v2672
        %v3697 = vcvt.s32.f32 %v2673
        %v3698 = vcvt.s32.f32 %v2674
        %v3699 = vcvt.s32.f32 %v2675
        %v3700 = vcvt.s32.f32 %v2676
        %v3701 = vcvt.s32.f32 %v2677
        %v3702 = vcvt.s32.f32 %v2678
        %v3703 = vcvt.s32.f32 %v2679
        %v3704 = vcvt.s32.f32 %v2680
        %v3705 = vcvt.s32.f32 %v2681
        %v3706 = vcvt.s32.f32 %v2682
        %v3707 = vcvt.s32.f32 %v2683
        %v3708 = vcvt.s32.f32 %v2684
        %v3709 = vcvt.s32.f32 %v2685
        %v3710 = vcvt.s32.f32 %v2686
        %v3711 = vcvt.s32.f32 %v2687
        %v3712 = vcvt.s32.f32 %v2688
        %v3713 = vcvt.s32.f32 %v2689
        %v3714 = vcvt.s32.f32 %v2690
        %v3715 = vcvt.s32.f32 %v2691
        %v3716 = vcvt.s32.f32 %v2692
        %v3717 = vcvt.s32.f32 %v2693
        %v3718 = vcvt.s32.f32 %v2694
        %v3719 = vcvt.s32.f32 %v2695
        %v3720 = vcvt.s32.f32 %v2696
        %v3721 = vcvt.s32.f32 %v2697
        %v3722 = vcvt.s32.f32 %v2698
        %v3723 = vcvt.s32.f32 %v2699
        %v3724 = vcvt.s32.f32 %v2700
        %v3725 = vcvt.s32.f32 %v2701
        %v3726 = vcvt.s32.f32 %v2702
        %v3727 = vcvt.s32.f32 %v2703
        %v3728 = vcvt.s32.f32 %v2704
        %v3729 = vcvt.s32.f32 %v2705
        %v3730 = vcvt.s32.f32 %v2706
        %v3731 = vcvt.s32.f32 %v2707
        %v3732 = vcvt.s32.f32 %v2708
        %v3733 = vcvt.s32.f32 %v2709
        %v3734 = vcvt.s32.f32 %v2710
        %v3735 = vcvt.s32.f32 %v2711
        %v3736 = vcvt.s32.f32 %v2712
        %v3737 = vcvt.s32.f32 %v2713
        %v3738 = vcvt.s32.f32 %v2714
        %v3739 = vcvt.s32.f32 %v2715
        %v3740 = vcvt.s32.f32 %v2716
        %v3741 = vcvt.s32.f32 %v2717
        %v3742 = vld [vmem:[%s252] sm:$0xff]
        %v3743 = vld [vmem:[%s252 + $0x8] sm:$0xff]
        %v3744 = vld [vmem:[%s252 + $0x10] sm:$0xff]
        %v3745 = vld [vmem:[%s252 + $0x18] sm:$0xff]
        %v3746 = vld [vmem:[%s252 + $0x20] sm:$0xff]
        %v3747 = vld [vmem:[%s252 + $0x28] sm:$0xff]
        %v3748 = vld [vmem:[%s252 + $0x30] sm:$0xff]
        %v3749 = vld [vmem:[%s252 + $0x38] sm:$0xff]
        %v3750 = vld [vmem:[%s252 + $0x40] sm:$0xff]
        %v3751 = vld [vmem:[%s252 + $0x48] sm:$0xff]
        %v3752 = vld [vmem:[%s252 + $0x50] sm:$0xff]
        %v3753 = vld [vmem:[%s252 + $0x58] sm:$0xff]
        %v3754 = vld [vmem:[%s252 + $0x60] sm:$0xff]
        %v3755 = vld [vmem:[%s252 + $0x68] sm:$0xff]
        %v3756 = vld [vmem:[%s252 + $0x70] sm:$0xff]
        %v3757 = vld [vmem:[%s252 + $0x78] sm:$0xff]
        %v3758 = vld [vmem:[%s252 + $0x80] sm:$0xff]
        %v3759 = vld [vmem:[%s252 + $0x88] sm:$0xff]
        %v3760 = vld [vmem:[%s252 + $0x90] sm:$0xff]
        %v3761 = vld [vmem:[%s252 + $0x98] sm:$0xff]
        %3762 = vmatprep.subr.mxu0 %v2719
        %3763 = vmatpush1.msra.mxu0 %v2718
        %3764 = vmatprep.subr.mxu0 %v2735
        %3765 = vmatpush1.msra.mxu0 %v2734
        %3766 = vmatprep.subr.mxu0 %v2751
        %3767 = vmatpush1.msra.mxu0 %v2750
        %3768 = vmatprep.subr.mxu0 %v2767
        %3769 = vmatpush1.msra.mxu0 %v2766
        %3770 = vmatprep.subr.mxu0 %v2783
        %3771 = vmatpush1.msra.mxu0 %v2782
        %3772 = vmatprep.subr.mxu0 %v2799
        %3773 = vmatpush1.msra.mxu0 %v2798
        %3774 = vmatprep.subr.mxu0 %v2815
        %3775 = vmatpush1.msra.mxu0 %v2814
        %3776 = vmatprep.subr.mxu0 %v2831
        %3777 = vmatpush1.msra.mxu0 %v2830
        %3778 = vmatprep.subr.mxu0 %v2847
        %3779 = vmatpush1.msra.mxu0 %v2846
        %3780 = vmatprep.subr.mxu0 %v2863
        %3781 = vmatpush1.msra.mxu0 %v2862
        %3782 = vmatprep.subr.mxu0 %v2879
        %3783 = vmatpush1.msra.mxu0 %v2878
        %3784 = vmatprep.subr.mxu0 %v2895
        %3785 = vmatpush1.msra.mxu0 %v2894
        %3786 = vmatprep.subr.mxu0 %v2911
        %3787 = vmatpush1.msra.mxu0 %v2910
        %3788 = vmatprep.subr.mxu0 %v2927
        %3789 = vmatpush1.msra.mxu0 %v2926
        %3790 = vmatprep.subr.mxu0 %v2943
        %3791 = vmatpush1.msra.mxu0 %v2942
        %3792 = vmatprep.subr.mxu0 %v2959
        %3793 = vmatpush1.msra.mxu0 %v2958
        %3794 = vmatprep.subr.mxu0 %v2975
        %3795 = vmatpush1.msra.mxu0 %v2974
        %3796 = vmatprep.subr.mxu0 %v2991
        %3797 = vmatpush1.msra.mxu0 %v2990
        %3798 = vmatprep.subr.mxu0 %v3007
        %3799 = vmatpush1.msra.mxu0 %v3006
        %3800 = vmatprep.subr.mxu0 %v3023
        %3801 = vmatpush1.msra.mxu0 %v3022
        %3802 = vmatprep.subr.mxu0 %v3039
        %3803 = vmatpush1.msra.mxu0 %v3038
        %3804 = vmatprep.subr.mxu0 %v3055
        %3805 = vmatpush1.msra.mxu0 %v3054
        %3806 = vmatprep.subr.mxu0 %v3071
        %3807 = vmatpush1.msra.mxu0 %v3070
        %3808 = vmatprep.subr.mxu0 %v3087
        %3809 = vmatpush1.msra.mxu0 %v3086
        %3810 = vmatprep.subr.mxu0 %v3103
        %3811 = vmatpush1.msra.mxu0 %v3102
        %3812 = vmatprep.subr.mxu0 %v3119
        %3813 = vmatpush1.msra.mxu0 %v3118
        %3814 = vmatprep.subr.mxu0 %v3135
        %3815 = vmatpush1.msra.mxu0 %v3134
        %3816 = vmatprep.subr.mxu0 %v3151
        %3817 = vmatpush1.msra.mxu0 %v3150
        %3818 = vmatprep.subr.mxu0 %v3167
        %3819 = vmatpush1.msra.mxu0 %v3166
        %3820 = vmatprep.subr.mxu0 %v3183
        %3821 = vmatpush1.msra.mxu0 %v3182
        %3822 = vmatprep.subr.mxu0 %v3199
        %3823 = vmatpush1.msra.mxu0 %v3198
        %3824 = vmatprep.subr.mxu0 %v3215
        %3825 = vmatpush1.msra.mxu0 %v3214
        %3826 = vmatprep.mubr.f32.mxu0 %v3743
        %3827 = vmatmul.mubr.f32.gmra.mrb[0].mxu0 %v3742
        %v3828 = vpop.f32.mrb[0].mxu0
        %v3829 = vadd.f32 0.0, %v3828
        %v3830 = vpop.f32.mrb[0].mxu0
        %v3831 = vadd.f32 0.0, %v3830
        %3832 = vmatprep.mubr.f32.mxu0 %v3747
        %3833 = vmatmul.mubr.f32.gmra.mrb[0].mxu0 %v3746
        %v3834 = vpop.f32.mrb[0].mxu0
        %v3835 = vadd.f32 0.0, %v3834
        %v3836 = vpop.f32.mrb[0].mxu0
        %v3837 = vadd.f32 0.0, %v3836
        %3838 = vmatprep.mubr.f32.mxu0 %v3751
        %3839 = vmatmul.mubr.f32.gmra.mrb[0].mxu0 %v3750
        %v3840 = vpop.f32.mrb[0].mxu0
        %v3841 = vadd.f32 0.0, %v3840
        %v3842 = vpop.f32.mrb[0].mxu0
        %v3843 = vadd.f32 0.0, %v3842
        %3844 = vmatprep.mubr.f32.mxu0 %v3755
        %3845 = vmatmul.mubr.f32.gmra.mrb[0].mxu0 %v3754
        %v3846 = vpop.f32.mrb[0].mxu0
        %v3847 = vadd.f32 0.0, %v3846
        %v3848 = vpop.f32.mrb[0].mxu0
        %v3849 = vadd.f32 0.0, %v3848
        %3850 = vmatprep.mubr.f32.mxu0 %v3759
        %3851 = vmatmul.mubr.f32.gmra.mrb[0].mxu0 %v3758
        %v3852 = vpop.f32.mrb[0].mxu0
        %v3853 = vadd.f32 0.0, %v3852
        %v3854 = vpop.f32.mrb[0].mxu0
        %v3855 = vadd.f32 0.0, %v3854
        %3856 = vdwg.mxu0
        %3857 = vmatprep.subr.mxu0 %v3231
        %3858 = vmatpush1.msra.mxu0 %v3230
        %3859 = vmatprep.subr.mxu0 %v3247
        %3860 = vmatpush1.msra.mxu0 %v3246
        %3861 = vmatprep.subr.mxu0 %v3263
        %3862 = vmatpush1.msra.mxu0 %v3262
        %3863 = vmatprep.subr.mxu0 %v3279
        %3864 = vmatpush1.msra.mxu0 %v3278
        %3865 = vmatprep.subr.mxu0 %v3295
        %3866 = vmatpush1.msra.mxu0 %v3294
        %3867 = vmatprep.subr.mxu0 %v3311
        %3868 = vmatpush1.msra.mxu0 %v3310
        %3869 = vmatprep.subr.mxu0 %v3327
        %3870 = vmatpush1.msra.mxu0 %v3326
        %3871 = vmatprep.subr.mxu0 %v3343
        %3872 = vmatpush1.msra.mxu0 %v3342
        %3873 = vmatprep.subr.mxu0 %v3359
        %3874 = vmatpush1.msra.mxu0 %v3358
        %3875 = vmatprep.subr.mxu0 %v3375
        %3876 = vmatpush1.msra.mxu0 %v3374
        %3877 = vmatprep.subr.mxu0 %v3391
        %3878 = vmatpush1.msra.mxu0 %v3390
        %3879 = vmatprep.subr.mxu0 %v3407
        %3880 = vmatpush1.msra.mxu0 %v3406
        %3881 = vmatprep.subr.mxu0 %v3423
        %3882 = vmatpush1.msra.mxu0 %v3422
        %3883 = vmatprep.subr.mxu0 %v3439
        %3884 = vmatpush1.msra.mxu0 %v3438
        %3885 = vmatprep.subr.mxu0 %v3455
        %3886 = vmatpush1.msra.mxu0 %v3454
        %3887 = vmatprep.subr.mxu0 %v3471
        %3888 = vmatpush1.msra.mxu0 %v3470
        %3889 = vmatprep.subr.mxu0 %v3487
        %3890 = vmatpush1.msra.mxu0 %v3486
        %3891 = vmatprep.subr.mxu0 %v3503
        %3892 = vmatpush1.msra.mxu0 %v3502
        %3893 = vmatprep.subr.mxu0 %v3519
        %3894 = vmatpush1.msra.mxu0 %v3518
        %3895 = vmatprep.subr.mxu0 %v3535
        %3896 = vmatpush1.msra.mxu0 %v3534
        %3897 = vmatprep.subr.mxu0 %v3551
        %3898 = vmatpush1.msra.mxu0 %v3550
        %3899 = vmatprep.subr.mxu0 %v3567
        %3900 = vmatpush1.msra.mxu0 %v3566
        %3901 = vmatprep.subr.mxu0 %v3583
        %3902 = vmatpush1.msra.mxu0 %v3582
        %3903 = vmatprep.subr.mxu0 %v3599
        %3904 = vmatpush1.msra.mxu0 %v3598
        %3905 = vmatprep.subr.mxu0 %v3615
        %3906 = vmatpush1.msra.mxu0 %v3614
        %3907 = vmatprep.subr.mxu0 %v3631
        %3908 = vmatpush1.msra.mxu0 %v3630
        %3909 = vmatprep.subr.mxu0 %v3647
        %3910 = vmatpush1.msra.mxu0 %v3646
        %3911 = vmatprep.subr.mxu0 %v3663
        %3912 = vmatpush1.msra.mxu0 %v3662
        %3913 = vmatprep.subr.mxu0 %v3679
        %3914 = vmatpush1.msra.mxu0 %v3678
        %3915 = vmatprep.subr.mxu0 %v3695
        %3916 = vmatpush1.msra.mxu0 %v3694
        %3917 = vmatprep.subr.mxu0 %v3711
        %3918 = vmatpush1.msra.mxu0 %v3710
        %3919 = vmatprep.subr.mxu0 %v3727
        %3920 = vmatpush1.msra.mxu0 %v3726
        %3921 = vmatprep.mubr.f32.mxu0 %v3745
        %3922 = vmatmul.mubr.f32.gmra.mrb[0].mxu0 %v3744
        %v3923 = vpop.f32.mrb[0].mxu0
        %v3924 = vadd.f32 %v3829, %v3923
        %v3925 = vpop.f32.mrb[0].mxu0
        %v3926 = vadd.f32 %v3831, %v3925
        %3927 = vmatprep.mubr.f32.mxu0 %v3749
        %3928 = vmatmul.mubr.f32.gmra.mrb[0].mxu0 %v3748
        %v3929 = vpop.f32.mrb[0].mxu0
        %v3930 = vadd.f32 %v3835, %v3929
        %v3931 = vpop.f32.mrb[0].mxu0
        %v3932 = vadd.f32 %v3837, %v3931
        %3933 = vmatprep.mubr.f32.mxu0 %v3753
        %3934 = vmatmul.mubr.f32.gmra.mrb[0].mxu0 %v3752
        %v3935 = vpop.f32.mrb[0].mxu0
        %v3936 = vadd.f32 %v3841, %v3935
        %v3937 = vpop.f32.mrb[0].mxu0
        %v3938 = vadd.f32 %v3843, %v3937
        %3939 = vmatprep.mubr.f32.mxu0 %v3757
        %3940 = vmatmul.mubr.f32.gmra.mrb[0].mxu0 %v3756
        %v3941 = vpop.f32.mrb[0].mxu0
        %v3942 = vadd.f32 %v3847, %v3941
        %v3943 = vpop.f32.mrb[0].mxu0
        %v3944 = vadd.f32 %v3849, %v3943
        %3945 = vmatprep.mubr.f32.mxu0 %v3761
        %3946 = vmatmul.mubr.f32.gmra.mrb[0].mxu0 %v3760
        %v3947 = vpop.f32.mrb[0].mxu0
        %v3948 = vadd.f32 %v3853, %v3947
        %v3949 = vpop.f32.mrb[0].mxu0
        %v3950 = vadd.f32 %v3855, %v3949
        %3951 = vdwg.mxu0
        %3952 = vmatprep.subr.mxu0 %v2721
        %3953 = vmatpush1.msra.mxu0 %v2720
        %3954 = vmatprep.subr.mxu0 %v2737
        %3955 = vmatpush1.msra.mxu0 %v2736
        %3956 = vmatprep.subr.mxu0 %v2753
        %3957 = vmatpush1.msra.mxu0 %v2752
        %3958 = vmatprep.subr.mxu0 %v2769
        %3959 = vmatpush1.msra.mxu0 %v2768
        %3960 = vmatprep.subr.mxu0 %v2785
        %3961 = vmatpush1.msra.mxu0 %v2784
        %3962 = vmatprep.subr.mxu0 %v2801
        %3963 = vmatpush1.msra.mxu0 %v2800
        %3964 = vmatprep.subr.mxu0 %v2817
        %3965 = vmatpush1.msra.mxu0 %v2816
        %3966 = vmatprep.subr.mxu0 %v2833
        %3967 = vmatpush1.msra.mxu0 %v2832
        %3968 = vmatprep.subr.mxu0 %v2849
        %3969 = vmatpush1.msra.mxu0 %v2848
        %3970 = vmatprep.subr.mxu0 %v2865
        %3971 = vmatpush1.msra.mxu0 %v2864
        %3972 = vmatprep.subr.mxu0 %v2881
        %3973 = vmatpush1.msra.mxu0 %v2880
        %3974 = vmatprep.subr.mxu0 %v2897
        %3975 = vmatpush1.msra.mxu0 %v2896
        %3976 = vmatprep.subr.mxu0 %v2913
        %3977 = vmatpush1.msra.mxu0 %v2912
        %3978 = vmatprep.subr.mxu0 %v2929
        %3979 = vmatpush1.msra.mxu0 %v2928
        %3980 = vmatprep.subr.mxu0 %v2945
        %3981 = vmatpush1.msra.mxu0 %v2944
        %3982 = vmatprep.subr.mxu0 %v2961
        %3983 = vmatpush1.msra.mxu0 %v2960
        %3984 = vmatprep.subr.mxu0 %v2977
        %3985 = vmatpush1.msra.mxu0 %v2976
        %3986 = vmatprep.subr.mxu0 %v2993
        %3987 = vmatpush1.msra.mxu0 %v2992
        %3988 = vmatprep.subr.mxu0 %v3009
        %3989 = vmatpush1.msra.mxu0 %v3008
        %3990 = vmatprep.subr.mxu0 %v3025
        %3991 = vmatpush1.msra.mxu0 %v3024
        %3992 = vmatprep.subr.mxu0 %v3041
        %3993 = vmatpush1.msra.mxu0 %v3040
        %3994 = vmatprep.subr.mxu0 %v3057
        %3995 = vmatpush1.msra.mxu0 %v3056
        %3996 = vmatprep.subr.mxu0 %v3073
        %3997 = vmatpush1.msra.mxu0 %v3072
        %3998 = vmatprep.subr.mxu0 %v3089
        %3999 = vmatpush1.msra.mxu0 %v3088
        %4000 = vmatprep.subr.mxu0 %v3105
        %4001 = vmatpush1.msra.mxu0 %v3104
        %4002 = vmatprep.subr.mxu0 %v3121
        %4003 = vmatpush1.msra.mxu0 %v3120
        %4004 = vmatprep.subr.mxu0 %v3137
        %4005 = vmatpush1.msra.mxu0 %v3136
        %4006 = vmatprep.subr.mxu0 %v3153
        %4007 = vmatpush1.msra.mxu0 %v3152
        %4008 = vmatprep.subr.mxu0 %v3169
        %4009 = vmatpush1.msra.mxu0 %v3168
        %4010 = vmatprep.subr.mxu0 %v3185
        %4011 = vmatpush1.msra.mxu0 %v3184
        %4012 = vmatprep.subr.mxu0 %v3201
        %4013 = vmatpush1.msra.mxu0 %v3200
        %4014 = vmatprep.subr.mxu0 %v3217
        %4015 = vmatpush1.msra.mxu0 %v3216
        %4016 = vmatprep.mubr.f32.mxu0 %v3743
        %4017 = vmatmul.mubr.f32.gmra.mrb[0].mxu0 %v3742
        %v4018 = vpop.f32.mrb[0].mxu0
        %v4019 = vadd.f32 0.0, %v4018
        %v4020 = vpop.f32.mrb[0].mxu0
        %v4021 = vadd.f32 0.0, %v4020
        %4022 = vmatprep.mubr.f32.mxu0 %v3747
        %4023 = vmatmul.mubr.f32.gmra.mrb[0].mxu0 %v3746
        %v4024 = vpop.f32.mrb[0].mxu0
        %v4025 = vadd.f32 0.0, %v4024
        %v4026 = vpop.f32.mrb[0].mxu0
        %v4027 = vadd.f32 0.0, %v4026
        %4028 = vmatprep.mubr.f32.mxu0 %v3751
        %4029 = vmatmul.mubr.f32.gmra.mrb[0].mxu0 %v3750
        %v4030 = vpop.f32.mrb[0].mxu0
        %v4031 = vadd.f32 0.0, %v4030
        %v4032 = vpop.f32.mrb[0].mxu0
        %v4033 = vadd.f32 0.0, %v4032
        %4034 = vmatprep.mubr.f32.mxu0 %v3755
        %4035 = vmatmul.mubr.f32.gmra.mrb[0].mxu0 %v3754
        %v4036 = vpop.f32.mrb[0].mxu0
        %v4037 = vadd.f32 0.0, %v4036
        %v4038 = vpop.f32.mrb[0].mxu0
        %v4039 = vadd.f32 0.0, %v4038
        %4040 = vmatprep.mubr.f32.mxu0 %v3759
        %4041 = vmatmul.mubr.f32.gmra.mrb[0].mxu0 %v3758
        %v4042 = vpop.f32.mrb[0].mxu0
        %v4043 = vadd.f32 0.0, %v4042
        %v4044 = vpop.f32.mrb[0].mxu0
        %v4045 = vadd.f32 0.0, %v4044
        %4046 = vdwg.mxu0
        %4047 = vmatprep.subr.mxu0 %v3233
        %4048 = vmatpush1.msra.mxu0 %v3232
        %4049 = vmatprep.subr.mxu0 %v3249
        %4050 = vmatpush1.msra.mxu0 %v3248
        %4051 = vmatprep.subr.mxu0 %v3265
        %4052 = vmatpush1.msra.mxu0 %v3264
        %4053 = vmatprep.subr.mxu0 %v3281
        %4054 = vmatpush1.msra.mxu0 %v3280
        %4055 = vmatprep.subr.mxu0 %v3297
        %4056 = vmatpush1.msra.mxu0 %v3296
        %4057 = vmatprep.subr.mxu0 %v3313
        %4058 = vmatpush1.msra.mxu0 %v3312
        %4059 = vmatprep.subr.mxu0 %v3329
        %4060 = vmatpush1.msra.mxu0 %v3328
        %4061 = vmatprep.subr.mxu0 %v3345
        %4062 = vmatpush1.msra.mxu0 %v3344
        %4063 = vmatprep.subr.mxu0 %v3361
        %4064 = vmatpush1.msra.mxu0 %v3360
        %4065 = vmatprep.subr.mxu0 %v3377
        %4066 = vmatpush1.msra.mxu0 %v3376
        %4067 = vmatprep.subr.mxu0 %v3393
        %4068 = vmatpush1.msra.mxu0 %v3392
        %4069 = vmatprep.subr.mxu0 %v3409
        %4070 = vmatpush1.msra.mxu0 %v3408
        %4071 = vmatprep.subr.mxu0 %v3425
        %4072 = vmatpush1.msra.mxu0 %v3424
        %4073 = vmatprep.subr.mxu0 %v3441
        %4074 = vmatpush1.msra.mxu0 %v3440
        %4075 = vmatprep.subr.mxu0 %v3457
        %4076 = vmatpush1.msra.mxu0 %v3456
        %4077 = vmatprep.subr.mxu0 %v3473
        %4078 = vmatpush1.msra.mxu0 %v3472
        %4079 = vmatprep.subr.mxu0 %v3489
        %4080 = vmatpush1.msra.mxu0 %v3488
        %4081 = vmatprep.subr.mxu0 %v3505
        %4082 = vmatpush1.msra.mxu0 %v3504
        %4083 = vmatprep.subr.mxu0 %v3521
        %4084 = vmatpush1.msra.mxu0 %v3520
        %4085 = vmatprep.subr.mxu0 %v3537
        %4086 = vmatpush1.msra.mxu0 %v3536
        %4087 = vmatprep.subr.mxu0 %v3553
        %4088 = vmatpush1.msra.mxu0 %v3552
        %4089 = vmatprep.subr.mxu0 %v3569
        %4090 = vmatpush1.msra.mxu0 %v3568
        %4091 = vmatprep.subr.mxu0 %v3585
        %4092 = vmatpush1.msra.mxu0 %v3584
        %4093 = vmatprep.subr.mxu0 %v3601
        %4094 = vmatpush1.msra.mxu0 %v3600
        %4095 = vmatprep.subr.mxu0 %v3617
        %4096 = vmatpush1.msra.mxu0 %v3616
        %4097 = vmatprep.subr.mxu0 %v3633
        %4098 = vmatpush1.msra.mxu0 %v3632
        %4099 = vmatprep.subr.mxu0 %v3649
        %4100 = vmatpush1.msra.mxu0 %v3648
        %4101 = vmatprep.subr.mxu0 %v3665
        %4102 = vmatpush1.msra.mxu0 %v3664
        %4103 = vmatprep.subr.mxu0 %v3681
        %4104 = vmatpush1.msra.mxu0 %v3680
        %4105 = vmatprep.subr.mxu0 %v3697
        %4106 = vmatpush1.msra.mxu0 %v3696
        %4107 = vmatprep.subr.mxu0 %v3713
        %4108 = vmatpush1.msra.mxu0 %v3712
        %4109 = vmatprep.subr.mxu0 %v3729
        %4110 = vmatpush1.msra.mxu0 %v3728
        %4111 = vmatprep.mubr.f32.mxu0 %v3745
        %4112 = vmatmul.mubr.f32.gmra.mrb[0].mxu0 %v3744
        %v4113 = vpop.f32.mrb[0].mxu0
        %v4114 = vadd.f32 %v4019, %v4113
        %v4115 = vpop.f32.mrb[0].mxu0
        %v4116 = vadd.f32 %v4021, %v4115
        %4117 = vmatprep.mubr.f32.mxu0 %v3749
        %4118 = vmatmul.mubr.f32.gmra.mrb[0].mxu0 %v3748
        %v4119 = vpop.f32.mrb[0].mxu0
        %v4120 = vadd.f32 %v4025, %v4119
        %v4121 = vpop.f32.mrb[0].mxu0
        %v4122 = vadd.f32 %v4027, %v4121
        %4123 = vmatprep.mubr.f32.mxu0 %v3753
        %4124 = vmatmul.mubr.f32.gmra.mrb[0].mxu0 %v3752
        %v4125 = vpop.f32.mrb[0].mxu0
        %v4126 = vadd.f32 %v4031, %v4125
        %v4127 = vpop.f32.mrb[0].mxu0
        %v4128 = vadd.f32 %v4033, %v4127
        %4129 = vmatprep.mubr.f32.mxu0 %v3757
        %4130 = vmatmul.mubr.f32.gmra.mrb[0].mxu0 %v3756
        %v4131 = vpop.f32.mrb[0].mxu0
        %v4132 = vadd.f32 %v4037, %v4131
        %v4133 = vpop.f32.mrb[0].mxu0
        %v4134 = vadd.f32 %v4039, %v4133
        %4135 = vmatprep.mubr.f32.mxu0 %v3761
        %4136 = vmatmul.mubr.f32.gmra.mrb[0].mxu0 %v3760
        %v4137 = vpop.f32.mrb[0].mxu0
        %v4138 = vadd.f32 %v4043, %v4137
        %v4139 = vpop.f32.mrb[0].mxu0
        %v4140 = vadd.f32 %v4045, %v4139
        %4141 = vdwg.mxu0
        %4142 = vmatprep.subr.mxu0 %v2723
        %4143 = vmatpush1.msra.mxu0 %v2722
        %4144 = vmatprep.subr.mxu0 %v2739
        %4145 = vmatpush1.msra.mxu0 %v2738
        %4146 = vmatprep.subr.mxu0 %v2755
        %4147 = vmatpush1.msra.mxu0 %v2754
        %4148 = vmatprep.subr.mxu0 %v2771
        %4149 = vmatpush1.msra.mxu0 %v2770
        %4150 = vmatprep.subr.mxu0 %v2787
        %4151 = vmatpush1.msra.mxu0 %v2786
        %4152 = vmatprep.subr.mxu0 %v2803
        %4153 = vmatpush1.msra.mxu0 %v2802
        %4154 = vmatprep.subr.mxu0 %v2819
        %4155 = vmatpush1.msra.mxu0 %v2818
        %4156 = vmatprep.subr.mxu0 %v2835
        %4157 = vmatpush1.msra.mxu0 %v2834
        %4158 = vmatprep.subr.mxu0 %v2851
        %4159 = vmatpush1.msra.mxu0 %v2850
        %4160 = vmatprep.subr.mxu0 %v2867
        %4161 = vmatpush1.msra.mxu0 %v2866
        %4162 = vmatprep.subr.mxu0 %v2883
        %4163 = vmatpush1.msra.mxu0 %v2882
        %4164 = vmatprep.subr.mxu0 %v2899
        %4165 = vmatpush1.msra.mxu0 %v2898
        %4166 = vmatprep.subr.mxu0 %v2915
        %4167 = vmatpush1.msra.mxu0 %v2914
        %4168 = vmatprep.subr.mxu0 %v2931
        %4169 = vmatpush1.msra.mxu0 %v2930
        %4170 = vmatprep.subr.mxu0 %v2947
        %4171 = vmatpush1.msra.mxu0 %v2946
        %4172 = vmatprep.subr.mxu0 %v2963
        %4173 = vmatpush1.msra.mxu0 %v2962
        %4174 = vmatprep.subr.mxu0 %v2979
        %4175 = vmatpush1.msra.mxu0 %v2978
        %4176 = vmatprep.subr.mxu0 %v2995
        %4177 = vmatpush1.msra.mxu0 %v2994
        %4178 = vmatprep.subr.mxu0 %v3011
        %4179 = vmatpush1.msra.mxu0 %v3010
        %4180 = vmatprep.subr.mxu0 %v3027
        %4181 = vmatpush1.msra.mxu0 %v3026
        %4182 = vmatprep.subr.mxu0 %v3043
        %4183 = vmatpush1.msra.mxu0 %v3042
        %4184 = vmatprep.subr.mxu0 %v3059
        %4185 = vmatpush1.msra.mxu0 %v3058
        %4186 = vmatprep.subr.mxu0 %v3075
        %4187 = vmatpush1.msra.mxu0 %v3074
        %4188 = vmatprep.subr.mxu0 %v3091
        %4189 = vmatpush1.msra.mxu0 %v3090
        %4190 = vmatprep.subr.mxu0 %v3107
        %4191 = vmatpush1.msra.mxu0 %v3106
        %4192 = vmatprep.subr.mxu0 %v3123
        %4193 = vmatpush1.msra.mxu0 %v3122
        %4194 = vmatprep.subr.mxu0 %v3139
        %4195 = vmatpush1.msra.mxu0 %v3138
        %4196 = vmatprep.subr.mxu0 %v3155
        %4197 = vmatpush1.msra.mxu0 %v3154
        %4198 = vmatprep.subr.mxu0 %v3171
        %4199 = vmatpush1.msra.mxu0 %v3170
        %4200 = vmatprep.subr.mxu0 %v3187
        %4201 = vmatpush1.msra.mxu0 %v3186
        %4202 = vmatprep.subr.mxu0 %v3203
        %4203 = vmatpush1.msra.mxu0 %v3202
        %4204 = vmatprep.subr.mxu0 %v3219
        %4205 = vmatpush1.msra.mxu0 %v3218
        %4206 = vmatprep.mubr.f32.mxu0 %v3743
        %4207 = vmatmul.mubr.f32.gmra.mrb[0].mxu0 %v3742
        %v4208 = vpop.f32.mrb[0].mxu0
        %v4209 = vadd.f32 0.0, %v4208
        %v4210 = vpop.f32.mrb[0].mxu0
        %v4211 = vadd.f32 0.0, %v4210
        %4212 = vmatprep.mubr.f32.mxu0 %v3747
        %4213 = vmatmul.mubr.f32.gmra.mrb[0].mxu0 %v3746
        %v4214 = vpop.f32.mrb[0].mxu0
        %v4215 = vadd.f32 0.0, %v4214
        %v4216 = vpop.f32.mrb[0].mxu0
        %v4217 = vadd.f32 0.0, %v4216
        %4218 = vmatprep.mubr.f32.mxu0 %v3751
        %4219 = vmatmul.mubr.f32.gmra.mrb[0].mxu0 %v3750
        %v4220 = vpop.f32.mrb[0].mxu0
        %v4221 = vadd.f32 0.0, %v4220
        %v4222 = vpop.f32.mrb[0].mxu0
        %v4223 = vadd.f32 0.0, %v4222
        %4224 = vmatprep.mubr.f32.mxu0 %v3755
        %4225 = vmatmul.mubr.f32.gmra.mrb[0].mxu0 %v3754
        %v4226 = vpop.f32.mrb[0].mxu0
        %v4227 = vadd.f32 0.0, %v4226
        %v4228 = vpop.f32.mrb[0].mxu0
        %v4229 = vadd.f32 0.0, %v4228
        %4230 = vmatprep.mubr.f32.mxu0 %v3759
        %4231 = vmatmul.mubr.f32.gmra.mrb[0].mxu0 %v3758
        %v4232 = vpop.f32.mrb[0].mxu0
        %v4233 = vadd.f32 0.0, %v4232
        %v4234 = vpop.f32.mrb[0].mxu0
        %v4235 = vadd.f32 0.0, %v4234
        %4236 = vdwg.mxu0
        %4237 = vmatprep.subr.mxu0 %v3235
        %4238 = vmatpush1.msra.mxu0 %v3234
        %4239 = vmatprep.subr.mxu0 %v3251
        %4240 = vmatpush1.msra.mxu0 %v3250
        %4241 = vmatprep.subr.mxu0 %v3267
        %4242 = vmatpush1.msra.mxu0 %v3266
        %4243 = vmatprep.subr.mxu0 %v3283
        %4244 = vmatpush1.msra.mxu0 %v3282
        %4245 = vmatprep.subr.mxu0 %v3299
        %4246 = vmatpush1.msra.mxu0 %v3298
        %4247 = vmatprep.subr.mxu0 %v3315
        %4248 = vmatpush1.msra.mxu0 %v3314
        %4249 = vmatprep.subr.mxu0 %v3331
        %4250 = vmatpush1.msra.mxu0 %v3330
        %4251 = vmatprep.subr.mxu0 %v3347
        %4252 = vmatpush1.msra.mxu0 %v3346
        %4253 = vmatprep.subr.mxu0 %v3363
        %4254 = vmatpush1.msra.mxu0 %v3362
        %4255 = vmatprep.subr.mxu0 %v3379
        %4256 = vmatpush1.msra.mxu0 %v3378
        %4257 = vmatprep.subr.mxu0 %v3395
        %4258 = vmatpush1.msra.mxu0 %v3394
        %4259 = vmatprep.subr.mxu0 %v3411
        %4260 = vmatpush1.msra.mxu0 %v3410
        %4261 = vmatprep.subr.mxu0 %v3427
        %4262 = vmatpush1.msra.mxu0 %v3426
        %4263 = vmatprep.subr.mxu0 %v3443
        %4264 = vmatpush1.msra.mxu0 %v3442
        %4265 = vmatprep.subr.mxu0 %v3459
        %4266 = vmatpush1.msra.mxu0 %v3458
        %4267 = vmatprep.subr.mxu0 %v3475
        %4268 = vmatpush1.msra.mxu0 %v3474
        %4269 = vmatprep.subr.mxu0 %v3491
        %4270 = vmatpush1.msra.mxu0 %v3490
        %4271 = vmatprep.subr.mxu0 %v3507
        %4272 = vmatpush1.msra.mxu0 %v3506
        %4273 = vmatprep.subr.mxu0 %v3523
        %4274 = vmatpush1.msra.mxu0 %v3522
        %4275 = vmatprep.subr.mxu0 %v3539
        %4276 = vmatpush1.msra.mxu0 %v3538
        %4277 = vmatprep.subr.mxu0 %v3555
        %4278 = vmatpush1.msra.mxu0 %v3554
        %4279 = vmatprep.subr.mxu0 %v3571
        %4280 = vmatpush1.msra.mxu0 %v3570
        %4281 = vmatprep.subr.mxu0 %v3587
        %4282 = vmatpush1.msra.mxu0 %v3586
        %4283 = vmatprep.subr.mxu0 %v3603
        %4284 = vmatpush1.msra.mxu0 %v3602
        %4285 = vmatprep.subr.mxu0 %v3619
        %4286 = vmatpush1.msra.mxu0 %v3618
        %4287 = vmatprep.subr.mxu0 %v3635
        %4288 = vmatpush1.msra.mxu0 %v3634
        %4289 = vmatprep.subr.mxu0 %v3651
        %4290 = vmatpush1.msra.mxu0 %v3650
        %4291 = vmatprep.subr.mxu0 %v3667
        %4292 = vmatpush1.msra.mxu0 %v3666
        %4293 = vmatprep.subr.mxu0 %v3683
        %4294 = vmatpush1.msra.mxu0 %v3682
        %4295 = vmatprep.subr.mxu0 %v3699
        %4296 = vmatpush1.msra.mxu0 %v3698
        %4297 = vmatprep.subr.mxu0 %v3715
        %4298 = vmatpush1.msra.mxu0 %v3714
        %4299 = vmatprep.subr.mxu0 %v3731
        %4300 = vmatpush1.msra.mxu0 %v3730
        %4301 = vmatprep.mubr.f32.mxu0 %v3745
        %4302 = vmatmul.mubr.f32.gmra.mrb[0].mxu0 %v3744
        %v4303 = vpop.f32.mrb[0].mxu0
        %v4304 = vadd.f32 %v4209, %v4303
        %v4305 = vpop.f32.mrb[0].mxu0
        %v4306 = vadd.f32 %v4211, %v4305
        %4307 = vmatprep.mubr.f32.mxu0 %v3749
        %4308 = vmatmul.mubr.f32.gmra.mrb[0].mxu0 %v3748
        %v4309 = vpop.f32.mrb[0].mxu0
        %v4310 = vadd.f32 %v4215, %v4309
        %v4311 = vpop.f32.mrb[0].mxu0
        %v4312 = vadd.f32 %v4217, %v4311
        %4313 = vmatprep.mubr.f32.mxu0 %v3753
        %4314 = vmatmul.mubr.f32.gmra.mrb[0].mxu0 %v3752
        %v4315 = vpop.f32.mrb[0].mxu0
        %v4316 = vadd.f32 %v4221, %v4315
        %v4317 = vpop.f32.mrb[0].mxu0
        %v4318 = vadd.f32 %v4223, %v4317
        %4319 = vmatprep.mubr.f32.mxu0 %v3757
        %4320 = vmatmul.mubr.f32.gmra.mrb[0].mxu0 %v3756
        %v4321 = vpop.f32.mrb[0].mxu0
        %v4322 = vadd.f32 %v4227, %v4321
        %v4323 = vpop.f32.mrb[0].mxu0
        %v4324 = vadd.f32 %v4229, %v4323
        %4325 = vmatprep.mubr.f32.mxu0 %v3761
        %4326 = vmatmul.mubr.f32.gmra.mrb[0].mxu0 %v3760
        %v4327 = vpop.f32.mrb[0].mxu0
        %v4328 = vadd.f32 %v4233, %v4327
        %v4329 = vpop.f32.mrb[0].mxu0
        %v4330 = vadd.f32 %v4235, %v4329
        %4331 = vdwg.mxu0
        %4332 = vmatprep.subr.mxu0 %v2725
        %4333 = vmatpush1.msra.mxu0 %v2724
        %4334 = vmatprep.subr.mxu0 %v2741
        %4335 = vmatpush1.msra.mxu0 %v2740
        %4336 = vmatprep.subr.mxu0 %v2757
        %4337 = vmatpush1.msra.mxu0 %v2756
        %4338 = vmatprep.subr.mxu0 %v2773
        %4339 = vmatpush1.msra.mxu0 %v2772
        %4340 = vmatprep.subr.mxu0 %v2789
        %4341 = vmatpush1.msra.mxu0 %v2788
        %4342 = vmatprep.subr.mxu0 %v2805
        %4343 = vmatpush1.msra.mxu0 %v2804
        %4344 = vmatprep.subr.mxu0 %v2821
        %4345 = vmatpush1.msra.mxu0 %v2820
        %4346 = vmatprep.subr.mxu0 %v2837
        %4347 = vmatpush1.msra.mxu0 %v2836
        %4348 = vmatprep.subr.mxu0 %v2853
        %4349 = vmatpush1.msra.mxu0 %v2852
        %4350 = vmatprep.subr.mxu0 %v2869
        %4351 = vmatpush1.msra.mxu0 %v2868
        %4352 = vmatprep.subr.mxu0 %v2885
        %4353 = vmatpush1.msra.mxu0 %v2884
        %4354 = vmatprep.subr.mxu0 %v2901
        %4355 = vmatpush1.msra.mxu0 %v2900
        %4356 = vmatprep.subr.mxu0 %v2917
        %4357 = vmatpush1.msra.mxu0 %v2916
        %4358 = vmatprep.subr.mxu0 %v2933
        %4359 = vmatpush1.msra.mxu0 %v2932
        %4360 = vmatprep.subr.mxu0 %v2949
        %4361 = vmatpush1.msra.mxu0 %v2948
        %4362 = vmatprep.subr.mxu0 %v2965
        %4363 = vmatpush1.msra.mxu0 %v2964
        %4364 = vmatprep.subr.mxu0 %v2981
        %4365 = vmatpush1.msra.mxu0 %v2980
        %4366 = vmatprep.subr.mxu0 %v2997
        %4367 = vmatpush1.msra.mxu0 %v2996
        %4368 = vmatprep.subr.mxu0 %v3013
        %4369 = vmatpush1.msra.mxu0 %v3012
        %4370 = vmatprep.subr.mxu0 %v3029
        %4371 = vmatpush1.msra.mxu0 %v3028
        %4372 = vmatprep.subr.mxu0 %v3045
        %4373 = vmatpush1.msra.mxu0 %v3044
        %4374 = vmatprep.subr.mxu0 %v3061
        %4375 = vmatpush1.msra.mxu0 %v3060
        %4376 = vmatprep.subr.mxu0 %v3077
        %4377 = vmatpush1.msra.mxu0 %v3076
        %4378 = vmatprep.subr.mxu0 %v3093
        %4379 = vmatpush1.msra.mxu0 %v3092
        %4380 = vmatprep.subr.mxu0 %v3109
        %4381 = vmatpush1.msra.mxu0 %v3108
        %4382 = vmatprep.subr.mxu0 %v3125
        %4383 = vmatpush1.msra.mxu0 %v3124
        %4384 = vmatprep.subr.mxu0 %v3141
        %4385 = vmatpush1.msra.mxu0 %v3140
        %4386 = vmatprep.subr.mxu0 %v3157
        %4387 = vmatpush1.msra.mxu0 %v3156
        %4388 = vmatprep.subr.mxu0 %v3173
        %4389 = vmatpush1.msra.mxu0 %v3172
        %4390 = vmatprep.subr.mxu0 %v3189
        %4391 = vmatpush1.msra.mxu0 %v3188
        %4392 = vmatprep.subr.mxu0 %v3205
        %4393 = vmatpush1.msra.mxu0 %v3204
        %4394 = vmatprep.subr.mxu0 %v3221
        %4395 = vmatpush1.msra.mxu0 %v3220
        %4396 = vmatprep.mubr.f32.mxu0 %v3743
        %4397 = vmatmul.mubr.f32.gmra.mrb[0].mxu0 %v3742
        %v4398 = vpop.f32.mrb[0].mxu0
        %v4399 = vadd.f32 0.0, %v4398
        %v4400 = vpop.f32.mrb[0].mxu0
        %v4401 = vadd.f32 0.0, %v4400
        %4402 = vmatprep.mubr.f32.mxu0 %v3747
        %4403 = vmatmul.mubr.f32.gmra.mrb[0].mxu0 %v3746
        %v4404 = vpop.f32.mrb[0].mxu0
        %v4405 = vadd.f32 0.0, %v4404
        %v4406 = vpop.f32.mrb[0].mxu0
        %v4407 = vadd.f32 0.0, %v4406
        %4408 = vmatprep.mubr.f32.mxu0 %v3751
        %4409 = vmatmul.mubr.f32.gmra.mrb[0].mxu0 %v3750
        %v4410 = vpop.f32.mrb[0].mxu0
        %v4411 = vadd.f32 0.0, %v4410
        %v4412 = vpop.f32.mrb[0].mxu0
        %v4413 = vadd.f32 0.0, %v4412
        %4414 = vmatprep.mubr.f32.mxu0 %v3755
        %4415 = vmatmul.mubr.f32.gmra.mrb[0].mxu0 %v3754
        %v4416 = vpop.f32.mrb[0].mxu0
        %v4417 = vadd.f32 0.0, %v4416
        %v4418 = vpop.f32.mrb[0].mxu0
        %v4419 = vadd.f32 0.0, %v4418
        %4420 = vmatprep.mubr.f32.mxu0 %v3759
        %4421 = vmatmul.mubr.f32.gmra.mrb[0].mxu0 %v3758
        %v4422 = vpop.f32.mrb[0].mxu0
        %v4423 = vadd.f32 0.0, %v4422
        %v4424 = vpop.f32.mrb[0].mxu0
        %v4425 = vadd.f32 0.0, %v4424
        %4426 = vdwg.mxu0
        %4427 = vmatprep.subr.mxu0 %v3237
        %4428 = vmatpush1.msra.mxu0 %v3236
        %4429 = vmatprep.subr.mxu0 %v3253
        %4430 = vmatpush1.msra.mxu0 %v3252
        %4431 = vmatprep.subr.mxu0 %v3269
        %4432 = vmatpush1.msra.mxu0 %v3268
        %4433 = vmatprep.subr.mxu0 %v3285
        %4434 = vmatpush1.msra.mxu0 %v3284
        %4435 = vmatprep.subr.mxu0 %v3301
        %4436 = vmatpush1.msra.mxu0 %v3300
        %4437 = vmatprep.subr.mxu0 %v3317
        %4438 = vmatpush1.msra.mxu0 %v3316
        %4439 = vmatprep.subr.mxu0 %v3333
        %4440 = vmatpush1.msra.mxu0 %v3332
        %4441 = vmatprep.subr.mxu0 %v3349
        %4442 = vmatpush1.msra.mxu0 %v3348
        %4443 = vmatprep.subr.mxu0 %v3365
        %4444 = vmatpush1.msra.mxu0 %v3364
        %4445 = vmatprep.subr.mxu0 %v3381
        %4446 = vmatpush1.msra.mxu0 %v3380
        %4447 = vmatprep.subr.mxu0 %v3397
        %4448 = vmatpush1.msra.mxu0 %v3396
        %4449 = vmatprep.subr.mxu0 %v3413
        %4450 = vmatpush1.msra.mxu0 %v3412
        %4451 = vmatprep.subr.mxu0 %v3429
        %4452 = vmatpush1.msra.mxu0 %v3428
        %4453 = vmatprep.subr.mxu0 %v3445
        %4454 = vmatpush1.msra.mxu0 %v3444
        %4455 = vmatprep.subr.mxu0 %v3461
        %4456 = vmatpush1.msra.mxu0 %v3460
        %4457 = vmatprep.subr.mxu0 %v3477
        %4458 = vmatpush1.msra.mxu0 %v3476
        %4459 = vmatprep.subr.mxu0 %v3493
        %4460 = vmatpush1.msra.mxu0 %v3492
        %4461 = vmatprep.subr.mxu0 %v3509
        %4462 = vmatpush1.msra.mxu0 %v3508
        %4463 = vmatprep.subr.mxu0 %v3525
        %4464 = vmatpush1.msra.mxu0 %v3524
        %4465 = vmatprep.subr.mxu0 %v3541
        %4466 = vmatpush1.msra.mxu0 %v3540
        %4467 = vmatprep.subr.mxu0 %v3557
        %4468 = vmatpush1.msra.mxu0 %v3556
        %4469 = vmatprep.subr.mxu0 %v3573
        %4470 = vmatpush1.msra.mxu0 %v3572
        %4471 = vmatprep.subr.mxu0 %v3589
        %4472 = vmatpush1.msra.mxu0 %v3588
        %4473 = vmatprep.subr.mxu0 %v3605
        %4474 = vmatpush1.msra.mxu0 %v3604
        %4475 = vmatprep.subr.mxu0 %v3621
        %4476 = vmatpush1.msra.mxu0 %v3620
        %4477 = vmatprep.subr.mxu0 %v3637
        %4478 = vmatpush1.msra.mxu0 %v3636
        %4479 = vmatprep.subr.mxu0 %v3653
        %4480 = vmatpush1.msra.mxu0 %v3652
        %4481 = vmatprep.subr.mxu0 %v3669
        %4482 = vmatpush1.msra.mxu0 %v3668
        %4483 = vmatprep.subr.mxu0 %v3685
        %4484 = vmatpush1.msra.mxu0 %v3684
        %4485 = vmatprep.subr.mxu0 %v3701
        %4486 = vmatpush1.msra.mxu0 %v3700
        %4487 = vmatprep.subr.mxu0 %v3717
        %4488 = vmatpush1.msra.mxu0 %v3716
        %4489 = vmatprep.subr.mxu0 %v3733
        %4490 = vmatpush1.msra.mxu0 %v3732
        %4491 = vmatprep.mubr.f32.mxu0 %v3745
        %4492 = vmatmul.mubr.f32.gmra.mrb[0].mxu0 %v3744
        %v4493 = vpop.f32.mrb[0].mxu0
        %v4494 = vadd.f32 %v4399, %v4493
        %v4495 = vpop.f32.mrb[0].mxu0
        %v4496 = vadd.f32 %v4401, %v4495
        %4497 = vmatprep.mubr.f32.mxu0 %v3749
        %4498 = vmatmul.mubr.f32.gmra.mrb[0].mxu0 %v3748
        %v4499 = vpop.f32.mrb[0].mxu0
        %v4500 = vadd.f32 %v4405, %v4499
        %v4501 = vpop.f32.mrb[0].mxu0
        %v4502 = vadd.f32 %v4407, %v4501
        %4503 = vmatprep.mubr.f32.mxu0 %v3753
        %4504 = vmatmul.mubr.f32.gmra.mrb[0].mxu0 %v3752
        %v4505 = vpop.f32.mrb[0].mxu0
        %v4506 = vadd.f32 %v4411, %v4505
        %v4507 = vpop.f32.mrb[0].mxu0
        %v4508 = vadd.f32 %v4413, %v4507
        %4509 = vmatprep.mubr.f32.mxu0 %v3757
        %4510 = vmatmul.mubr.f32.gmra.mrb[0].mxu0 %v3756
        %v4511 = vpop.f32.mrb[0].mxu0
        %v4512 = vadd.f32 %v4417, %v4511
        %v4513 = vpop.f32.mrb[0].mxu0
        %v4514 = vadd.f32 %v4419, %v4513
        %4515 = vmatprep.mubr.f32.mxu0 %v3761
        %4516 = vmatmul.mubr.f32.gmra.mrb[0].mxu0 %v3760
        %v4517 = vpop.f32.mrb[0].mxu0
        %v4518 = vadd.f32 %v4423, %v4517
        %v4519 = vpop.f32.mrb[0].mxu0
        %v4520 = vadd.f32 %v4425, %v4519
        %4521 = vdwg.mxu0
        %4522 = vmatprep.subr.mxu0 %v2727
        %4523 = vmatpush1.msra.mxu0 %v2726
        %4524 = vmatprep.subr.mxu0 %v2743
        %4525 = vmatpush1.msra.mxu0 %v2742
        %4526 = vmatprep.subr.mxu0 %v2759
        %4527 = vmatpush1.msra.mxu0 %v2758
        %4528 = vmatprep.subr.mxu0 %v2775
        %4529 = vmatpush1.msra.mxu0 %v2774
        %4530 = vmatprep.subr.mxu0 %v2791
        %4531 = vmatpush1.msra.mxu0 %v2790
        %4532 = vmatprep.subr.mxu0 %v2807
        %4533 = vmatpush1.msra.mxu0 %v2806
        %4534 = vmatprep.subr.mxu0 %v2823
        %4535 = vmatpush1.msra.mxu0 %v2822
        %4536 = vmatprep.subr.mxu0 %v2839
        %4537 = vmatpush1.msra.mxu0 %v2838
        %4538 = vmatprep.subr.mxu0 %v2855
        %4539 = vmatpush1.msra.mxu0 %v2854
        %4540 = vmatprep.subr.mxu0 %v2871
        %4541 = vmatpush1.msra.mxu0 %v2870
        %4542 = vmatprep.subr.mxu0 %v2887
        %4543 = vmatpush1.msra.mxu0 %v2886
        %4544 = vmatprep.subr.mxu0 %v2903
        %4545 = vmatpush1.msra.mxu0 %v2902
        %4546 = vmatprep.subr.mxu0 %v2919
        %4547 = vmatpush1.msra.mxu0 %v2918
        %4548 = vmatprep.subr.mxu0 %v2935
        %4549 = vmatpush1.msra.mxu0 %v2934
        %4550 = vmatprep.subr.mxu0 %v2951
        %4551 = vmatpush1.msra.mxu0 %v2950
        %4552 = vmatprep.subr.mxu0 %v2967
        %4553 = vmatpush1.msra.mxu0 %v2966
        %4554 = vmatprep.subr.mxu0 %v2983
        %4555 = vmatpush1.msra.mxu0 %v2982
        %4556 = vmatprep.subr.mxu0 %v2999
        %4557 = vmatpush1.msra.mxu0 %v2998
        %4558 = vmatprep.subr.mxu0 %v3015
        %4559 = vmatpush1.msra.mxu0 %v3014
        %4560 = vmatprep.subr.mxu0 %v3031
        %4561 = vmatpush1.msra.mxu0 %v3030
        %4562 = vmatprep.subr.mxu0 %v3047
        %4563 = vmatpush1.msra.mxu0 %v3046
        %4564 = vmatprep.subr.mxu0 %v3063
        %4565 = vmatpush1.msra.mxu0 %v3062
        %4566 = vmatprep.subr.mxu0 %v3079
        %4567 = vmatpush1.msra.mxu0 %v3078
        %4568 = vmatprep.subr.mxu0 %v3095
        %4569 = vmatpush1.msra.mxu0 %v3094
        %4570 = vmatprep.subr.mxu0 %v3111
        %4571 = vmatpush1.msra.mxu0 %v3110
        %4572 = vmatprep.subr.mxu0 %v3127
        %4573 = vmatpush1.msra.mxu0 %v3126
        %4574 = vmatprep.subr.mxu0 %v3143
        %4575 = vmatpush1.msra.mxu0 %v3142
        %4576 = vmatprep.subr.mxu0 %v3159
        %4577 = vmatpush1.msra.mxu0 %v3158
        %4578 = vmatprep.subr.mxu0 %v3175
        %4579 = vmatpush1.msra.mxu0 %v3174
        %4580 = vmatprep.subr.mxu0 %v3191
        %4581 = vmatpush1.msra.mxu0 %v3190
        %4582 = vmatprep.subr.mxu0 %v3207
        %4583 = vmatpush1.msra.mxu0 %v3206
        %4584 = vmatprep.subr.mxu0 %v3223
        %4585 = vmatpush1.msra.mxu0 %v3222
        %4586 = vmatprep.mubr.f32.mxu0 %v3743
        %4587 = vmatmul.mubr.f32.gmra.mrb[0].mxu0 %v3742
        %v4588 = vpop.f32.mrb[0].mxu0
        %v4589 = vadd.f32 0.0, %v4588
        %v4590 = vpop.f32.mrb[0].mxu0
        %v4591 = vadd.f32 0.0, %v4590
        %4592 = vmatprep.mubr.f32.mxu0 %v3747
        %4593 = vmatmul.mubr.f32.gmra.mrb[0].mxu0 %v3746
        %v4594 = vpop.f32.mrb[0].mxu0
        %v4595 = vadd.f32 0.0, %v4594
        %v4596 = vpop.f32.mrb[0].mxu0
        %v4597 = vadd.f32 0.0, %v4596
        %4598 = vmatprep.mubr.f32.mxu0 %v3751
        %4599 = vmatmul.mubr.f32.gmra.mrb[0].mxu0 %v3750
        %v4600 = vpop.f32.mrb[0].mxu0
        %v4601 = vadd.f32 0.0, %v4600
        %v4602 = vpop.f32.mrb[0].mxu0
        %v4603 = vadd.f32 0.0, %v4602
        %4604 = vmatprep.mubr.f32.mxu0 %v3755
        %4605 = vmatmul.mubr.f32.gmra.mrb[0].mxu0 %v3754
        %v4606 = vpop.f32.mrb[0].mxu0
        %v4607 = vadd.f32 0.0, %v4606
        %v4608 = vpop.f32.mrb[0].mxu0
        %v4609 = vadd.f32 0.0, %v4608
        %4610 = vmatprep.mubr.f32.mxu0 %v3759
        %4611 = vmatmul.mubr.f32.gmra.mrb[0].mxu0 %v3758
        %v4612 = vpop.f32.mrb[0].mxu0
        %v4613 = vadd.f32 0.0, %v4612
        %v4614 = vpop.f32.mrb[0].mxu0
        %v4615 = vadd.f32 0.0, %v4614
        %4616 = vdwg.mxu0
        %4617 = vmatprep.subr.mxu0 %v3239
        %4618 = vmatpush1.msra.mxu0 %v3238
        %4619 = vmatprep.subr.mxu0 %v3255
        %4620 = vmatpush1.msra.mxu0 %v3254
        %4621 = vmatprep.subr.mxu0 %v3271
        %4622 = vmatpush1.msra.mxu0 %v3270
        %4623 = vmatprep.subr.mxu0 %v3287
        %4624 = vmatpush1.msra.mxu0 %v3286
        %4625 = vmatprep.subr.mxu0 %v3303
        %4626 = vmatpush1.msra.mxu0 %v3302
        %4627 = vmatprep.subr.mxu0 %v3319
        %4628 = vmatpush1.msra.mxu0 %v3318
        %4629 = vmatprep.subr.mxu0 %v3335
        %4630 = vmatpush1.msra.mxu0 %v3334
        %4631 = vmatprep.subr.mxu0 %v3351
        %4632 = vmatpush1.msra.mxu0 %v3350
        %4633 = vmatprep.subr.mxu0 %v3367
        %4634 = vmatpush1.msra.mxu0 %v3366
        %4635 = vmatprep.subr.mxu0 %v3383
        %4636 = vmatpush1.msra.mxu0 %v3382
        %4637 = vmatprep.subr.mxu0 %v3399
        %4638 = vmatpush1.msra.mxu0 %v3398
        %4639 = vmatprep.subr.mxu0 %v3415
        %4640 = vmatpush1.msra.mxu0 %v3414
        %4641 = vmatprep.subr.mxu0 %v3431
        %4642 = vmatpush1.msra.mxu0 %v3430
        %4643 = vmatprep.subr.mxu0 %v3447
        %4644 = vmatpush1.msra.mxu0 %v3446
        %4645 = vmatprep.subr.mxu0 %v3463
        %4646 = vmatpush1.msra.mxu0 %v3462
        %4647 = vmatprep.subr.mxu0 %v3479
        %4648 = vmatpush1.msra.mxu0 %v3478
        %4649 = vmatprep.subr.mxu0 %v3495
        %4650 = vmatpush1.msra.mxu0 %v3494
        %4651 = vmatprep.subr.mxu0 %v3511
        %4652 = vmatpush1.msra.mxu0 %v3510
        %4653 = vmatprep.subr.mxu0 %v3527
        %4654 = vmatpush1.msra.mxu0 %v3526
        %4655 = vmatprep.subr.mxu0 %v3543
        %4656 = vmatpush1.msra.mxu0 %v3542
        %4657 = vmatprep.subr.mxu0 %v3559
        %4658 = vmatpush1.msra.mxu0 %v3558
        %4659 = vmatprep.subr.mxu0 %v3575
        %4660 = vmatpush1.msra.mxu0 %v3574
        %4661 = vmatprep.subr.mxu0 %v3591
        %4662 = vmatpush1.msra.mxu0 %v3590
        %4663 = vmatprep.subr.mxu0 %v3607
        %4664 = vmatpush1.msra.mxu0 %v3606
        %4665 = vmatprep.subr.mxu0 %v3623
        %4666 = vmatpush1.msra.mxu0 %v3622
        %4667 = vmatprep.subr.mxu0 %v3639
        %4668 = vmatpush1.msra.mxu0 %v3638
        %4669 = vmatprep.subr.mxu0 %v3655
        %4670 = vmatpush1.msra.mxu0 %v3654
        %4671 = vmatprep.subr.mxu0 %v3671
        %4672 = vmatpush1.msra.mxu0 %v3670
        %4673 = vmatprep.subr.mxu0 %v3687
        %4674 = vmatpush1.msra.mxu0 %v3686
        %4675 = vmatprep.subr.mxu0 %v3703
        %4676 = vmatpush1.msra.mxu0 %v3702
        %4677 = vmatprep.subr.mxu0 %v3719
        %4678 = vmatpush1.msra.mxu0 %v3718
        %4679 = vmatprep.subr.mxu0 %v3735
        %4680 = vmatpush1.msra.mxu0 %v3734
        %4681 = vmatprep.mubr.f32.mxu0 %v3745
        %4682 = vmatmul.mubr.f32.gmra.mrb[0].mxu0 %v3744
        %v4683 = vpop.f32.mrb[0].mxu0
        %v4684 = vadd.f32 %v4589, %v4683
        %v4685 = vpop.f32.mrb[0].mxu0
        %v4686 = vadd.f32 %v4591, %v4685
        %4687 = vmatprep.mubr.f32.mxu0 %v3749
        %4688 = vmatmul.mubr.f32.gmra.mrb[0].mxu0 %v3748
        %v4689 = vpop.f32.mrb[0].mxu0
        %v4690 = vadd.f32 %v4595, %v4689
        %v4691 = vpop.f32.mrb[0].mxu0
        %v4692 = vadd.f32 %v4597, %v4691
        %4693 = vmatprep.mubr.f32.mxu0 %v3753
        %4694 = vmatmul.mubr.f32.gmra.mrb[0].mxu0 %v3752
        %v4695 = vpop.f32.mrb[0].mxu0
        %v4696 = vadd.f32 %v4601, %v4695
        %v4697 = vpop.f32.mrb[0].mxu0
        %v4698 = vadd.f32 %v4603, %v4697
        %4699 = vmatprep.mubr.f32.mxu0 %v3757
        %4700 = vmatmul.mubr.f32.gmra.mrb[0].mxu0 %v3756
        %v4701 = vpop.f32.mrb[0].mxu0
        %v4702 = vadd.f32 %v4607, %v4701
        %v4703 = vpop.f32.mrb[0].mxu0
        %v4704 = vadd.f32 %v4609, %v4703
        %4705 = vmatprep.mubr.f32.mxu0 %v3761
        %4706 = vmatmul.mubr.f32.gmra.mrb[0].mxu0 %v3760
        %v4707 = vpop.f32.mrb[0].mxu0
        %v4708 = vadd.f32 %v4613, %v4707
        %v4709 = vpop.f32.mrb[0].mxu0
        %v4710 = vadd.f32 %v4615, %v4709
        %4711 = vdwg.mxu0
        %4712 = vmatprep.subr.mxu0 %v2729
        %4713 = vmatpush1.msra.mxu0 %v2728
        %4714 = vmatprep.subr.mxu0 %v2745
        %4715 = vmatpush1.msra.mxu0 %v2744
        %4716 = vmatprep.subr.mxu0 %v2761
        %4717 = vmatpush1.msra.mxu0 %v2760
        %4718 = vmatprep.subr.mxu0 %v2777
        %4719 = vmatpush1.msra.mxu0 %v2776
        %4720 = vmatprep.subr.mxu0 %v2793
        %4721 = vmatpush1.msra.mxu0 %v2792
        %4722 = vmatprep.subr.mxu0 %v2809
        %4723 = vmatpush1.msra.mxu0 %v2808
        %4724 = vmatprep.subr.mxu0 %v2825
        %4725 = vmatpush1.msra.mxu0 %v2824
        %4726 = vmatprep.subr.mxu0 %v2841
        %4727 = vmatpush1.msra.mxu0 %v2840
        %4728 = vmatprep.subr.mxu0 %v2857
        %4729 = vmatpush1.msra.mxu0 %v2856
        %4730 = vmatprep.subr.mxu0 %v2873
        %4731 = vmatpush1.msra.mxu0 %v2872
        %4732 = vmatprep.subr.mxu0 %v2889
        %4733 = vmatpush1.msra.mxu0 %v2888
        %4734 = vmatprep.subr.mxu0 %v2905
        %4735 = vmatpush1.msra.mxu0 %v2904
        %4736 = vmatprep.subr.mxu0 %v2921
        %4737 = vmatpush1.msra.mxu0 %v2920
        %4738 = vmatprep.subr.mxu0 %v2937
        %4739 = vmatpush1.msra.mxu0 %v2936
        %4740 = vmatprep.subr.mxu0 %v2953
        %4741 = vmatpush1.msra.mxu0 %v2952
        %4742 = vmatprep.subr.mxu0 %v2969
        %4743 = vmatpush1.msra.mxu0 %v2968
        %4744 = vmatprep.subr.mxu0 %v2985
        %4745 = vmatpush1.msra.mxu0 %v2984
        %4746 = vmatprep.subr.mxu0 %v3001
        %4747 = vmatpush1.msra.mxu0 %v3000
        %4748 = vmatprep.subr.mxu0 %v3017
        %4749 = vmatpush1.msra.mxu0 %v3016
        %4750 = vmatprep.subr.mxu0 %v3033
        %4751 = vmatpush1.msra.mxu0 %v3032
        %4752 = vmatprep.subr.mxu0 %v3049
        %4753 = vmatpush1.msra.mxu0 %v3048
        %4754 = vmatprep.subr.mxu0 %v3065
        %4755 = vmatpush1.msra.mxu0 %v3064
        %4756 = vmatprep.subr.mxu0 %v3081
        %4757 = vmatpush1.msra.mxu0 %v3080
        %4758 = vmatprep.subr.mxu0 %v3097
        %4759 = vmatpush1.msra.mxu0 %v3096
        %4760 = vmatprep.subr.mxu0 %v3113
        %4761 = vmatpush1.msra.mxu0 %v3112
        %4762 = vmatprep.subr.mxu0 %v3129
        %4763 = vmatpush1.msra.mxu0 %v3128
        %4764 = vmatprep.subr.mxu0 %v3145
        %4765 = vmatpush1.msra.mxu0 %v3144
        %4766 = vmatprep.subr.mxu0 %v3161
        %4767 = vmatpush1.msra.mxu0 %v3160
        %4768 = vmatprep.subr.mxu0 %v3177
        %4769 = vmatpush1.msra.mxu0 %v3176
        %4770 = vmatprep.subr.mxu0 %v3193
        %4771 = vmatpush1.msra.mxu0 %v3192
        %4772 = vmatprep.subr.mxu0 %v3209
        %4773 = vmatpush1.msra.mxu0 %v3208
        %4774 = vmatprep.subr.mxu0 %v3225
        %4775 = vmatpush1.msra.mxu0 %v3224
        %4776 = vmatprep.mubr.f32.mxu0 %v3743
        %4777 = vmatmul.mubr.f32.gmra.mrb[0].mxu0 %v3742
        %v4778 = vpop.f32.mrb[0].mxu0
        %v4779 = vadd.f32 0.0, %v4778
        %v4780 = vpop.f32.mrb[0].mxu0
        %v4781 = vadd.f32 0.0, %v4780
        %4782 = vmatprep.mubr.f32.mxu0 %v3747
        %4783 = vmatmul.mubr.f32.gmra.mrb[0].mxu0 %v3746
        %v4784 = vpop.f32.mrb[0].mxu0
        %v4785 = vadd.f32 0.0, %v4784
        %v4786 = vpop.f32.mrb[0].mxu0
        %v4787 = vadd.f32 0.0, %v4786
        %4788 = vmatprep.mubr.f32.mxu0 %v3751
        %4789 = vmatmul.mubr.f32.gmra.mrb[0].mxu0 %v3750
        %v4790 = vpop.f32.mrb[0].mxu0
        %v4791 = vadd.f32 0.0, %v4790
        %v4792 = vpop.f32.mrb[0].mxu0
        %v4793 = vadd.f32 0.0, %v4792
        %4794 = vmatprep.mubr.f32.mxu0 %v3755
        %4795 = vmatmul.mubr.f32.gmra.mrb[0].mxu0 %v3754
        %v4796 = vpop.f32.mrb[0].mxu0
        %v4797 = vadd.f32 0.0, %v4796
        %v4798 = vpop.f32.mrb[0].mxu0
        %v4799 = vadd.f32 0.0, %v4798
        %4800 = vmatprep.mubr.f32.mxu0 %v3759
        %4801 = vmatmul.mubr.f32.gmra.mrb[0].mxu0 %v3758
        %v4802 = vpop.f32.mrb[0].mxu0
        %v4803 = vadd.f32 0.0, %v4802
        %v4804 = vpop.f32.mrb[0].mxu0
        %v4805 = vadd.f32 0.0, %v4804
        %4806 = vdwg.mxu0
        %4807 = vmatprep.subr.mxu0 %v3241
        %4808 = vmatpush1.msra.mxu0 %v3240
        %4809 = vmatprep.subr.mxu0 %v3257
        %4810 = vmatpush1.msra.mxu0 %v3256
        %4811 = vmatprep.subr.mxu0 %v3273
        %4812 = vmatpush1.msra.mxu0 %v3272
        %4813 = vmatprep.subr.mxu0 %v3289
        %4814 = vmatpush1.msra.mxu0 %v3288
        %4815 = vmatprep.subr.mxu0 %v3305
        %4816 = vmatpush1.msra.mxu0 %v3304
        %4817 = vmatprep.subr.mxu0 %v3321
        %4818 = vmatpush1.msra.mxu0 %v3320
        %4819 = vmatprep.subr.mxu0 %v3337
        %4820 = vmatpush1.msra.mxu0 %v3336
        %4821 = vmatprep.subr.mxu0 %v3353
        %4822 = vmatpush1.msra.mxu0 %v3352
        %4823 = vmatprep.subr.mxu0 %v3369
        %4824 = vmatpush1.msra.mxu0 %v3368
        %4825 = vmatprep.subr.mxu0 %v3385
        %4826 = vmatpush1.msra.mxu0 %v3384
        %4827 = vmatprep.subr.mxu0 %v3401
        %4828 = vmatpush1.msra.mxu0 %v3400
        %4829 = vmatprep.subr.mxu0 %v3417
        %4830 = vmatpush1.msra.mxu0 %v3416
        %4831 = vmatprep.subr.mxu0 %v3433
        %4832 = vmatpush1.msra.mxu0 %v3432
        %4833 = vmatprep.subr.mxu0 %v3449
        %4834 = vmatpush1.msra.mxu0 %v3448
        %4835 = vmatprep.subr.mxu0 %v3465
        %4836 = vmatpush1.msra.mxu0 %v3464
        %4837 = vmatprep.subr.mxu0 %v3481
        %4838 = vmatpush1.msra.mxu0 %v3480
        %4839 = vmatprep.subr.mxu0 %v3497
        %4840 = vmatpush1.msra.mxu0 %v3496
        %4841 = vmatprep.subr.mxu0 %v3513
        %4842 = vmatpush1.msra.mxu0 %v3512
        %4843 = vmatprep.subr.mxu0 %v3529
        %4844 = vmatpush1.msra.mxu0 %v3528
        %4845 = vmatprep.subr.mxu0 %v3545
        %4846 = vmatpush1.msra.mxu0 %v3544
        %4847 = vmatprep.subr.mxu0 %v3561
        %4848 = vmatpush1.msra.mxu0 %v3560
        %4849 = vmatprep.subr.mxu0 %v3577
        %4850 = vmatpush1.msra.mxu0 %v3576
        %4851 = vmatprep.subr.mxu0 %v3593
        %4852 = vmatpush1.msra.mxu0 %v3592
        %4853 = vmatprep.subr.mxu0 %v3609
        %4854 = vmatpush1.msra.mxu0 %v3608
        %4855 = vmatprep.subr.mxu0 %v3625
        %4856 = vmatpush1.msra.mxu0 %v3624
        %4857 = vmatprep.subr.mxu0 %v3641
        %4858 = vmatpush1.msra.mxu0 %v3640
        %4859 = vmatprep.subr.mxu0 %v3657
        %4860 = vmatpush1.msra.mxu0 %v3656
        %4861 = vmatprep.subr.mxu0 %v3673
        %4862 = vmatpush1.msra.mxu0 %v3672
        %4863 = vmatprep.subr.mxu0 %v3689
        %4864 = vmatpush1.msra.mxu0 %v3688
        %4865 = vmatprep.subr.mxu0 %v3705
        %4866 = vmatpush1.msra.mxu0 %v3704
        %4867 = vmatprep.subr.mxu0 %v3721
        %4868 = vmatpush1.msra.mxu0 %v3720
        %4869 = vmatprep.subr.mxu0 %v3737
        %4870 = vmatpush1.msra.mxu0 %v3736
        %4871 = vmatprep.mubr.f32.mxu0 %v3745
        %4872 = vmatmul.mubr.f32.gmra.mrb[0].mxu0 %v3744
        %v4873 = vpop.f32.mrb[0].mxu0
        %v4874 = vadd.f32 %v4779, %v4873
        %v4875 = vpop.f32.mrb[0].mxu0
        %v4876 = vadd.f32 %v4781, %v4875
        %4877 = vmatprep.mubr.f32.mxu0 %v3749
        %4878 = vmatmul.mubr.f32.gmra.mrb[0].mxu0 %v3748
        %v4879 = vpop.f32.mrb[0].mxu0
        %v4880 = vadd.f32 %v4785, %v4879
        %v4881 = vpop.f32.mrb[0].mxu0
        %v4882 = vadd.f32 %v4787, %v4881
        %4883 = vmatprep.mubr.f32.mxu0 %v3753
        %4884 = vmatmul.mubr.f32.gmra.mrb[0].mxu0 %v3752
        %v4885 = vpop.f32.mrb[0].mxu0
        %v4886 = vadd.f32 %v4791, %v4885
        %v4887 = vpop.f32.mrb[0].mxu0
        %v4888 = vadd.f32 %v4793, %v4887
        %4889 = vmatprep.mubr.f32.mxu0 %v3757
        %4890 = vmatmul.mubr.f32.gmra.mrb[0].mxu0 %v3756
        %v4891 = vpop.f32.mrb[0].mxu0
        %v4892 = vadd.f32 %v4797, %v4891
        %v4893 = vpop.f32.mrb[0].mxu0
        %v4894 = vadd.f32 %v4799, %v4893
        %4895 = vmatprep.mubr.f32.mxu0 %v3761
        %4896 = vmatmul.mubr.f32.gmra.mrb[0].mxu0 %v3760
        %v4897 = vpop.f32.mrb[0].mxu0
        %v4898 = vadd.f32 %v4803, %v4897
        %v4899 = vpop.f32.mrb[0].mxu0
        %v4900 = vadd.f32 %v4805, %v4899
        %4901 = vdwg.mxu0
        %4902 = vmatprep.subr.mxu0 %v2731
        %4903 = vmatpush1.msra.mxu0 %v2730
        %4904 = vmatprep.subr.mxu0 %v2747
        %4905 = vmatpush1.msra.mxu0 %v2746
        %4906 = vmatprep.subr.mxu0 %v2763
        %4907 = vmatpush1.msra.mxu0 %v2762
        %4908 = vmatprep.subr.mxu0 %v2779
        %4909 = vmatpush1.msra.mxu0 %v2778
        %4910 = vmatprep.subr.mxu0 %v2795
        %4911 = vmatpush1.msra.mxu0 %v2794
        %4912 = vmatprep.subr.mxu0 %v2811
        %4913 = vmatpush1.msra.mxu0 %v2810
        %4914 = vmatprep.subr.mxu0 %v2827
        %4915 = vmatpush1.msra.mxu0 %v2826
        %4916 = vmatprep.subr.mxu0 %v2843
        %4917 = vmatpush1.msra.mxu0 %v2842
        %4918 = vmatprep.subr.mxu0 %v2859
        %4919 = vmatpush1.msra.mxu0 %v2858
        %4920 = vmatprep.subr.mxu0 %v2875
        %4921 = vmatpush1.msra.mxu0 %v2874
        %4922 = vmatprep.subr.mxu0 %v2891
        %4923 = vmatpush1.msra.mxu0 %v2890
        %4924 = vmatprep.subr.mxu0 %v2907
        %4925 = vmatpush1.msra.mxu0 %v2906
        %4926 = vmatprep.subr.mxu0 %v2923
        %4927 = vmatpush1.msra.mxu0 %v2922
        %4928 = vmatprep.subr.mxu0 %v2939
        %4929 = vmatpush1.msra.mxu0 %v2938
        %4930 = vmatprep.subr.mxu0 %v2955
        %4931 = vmatpush1.msra.mxu0 %v2954
        %4932 = vmatprep.subr.mxu0 %v2971
        %4933 = vmatpush1.msra.mxu0 %v2970
        %4934 = vmatprep.subr.mxu0 %v2987
        %4935 = vmatpush1.msra.mxu0 %v2986
        %4936 = vmatprep.subr.mxu0 %v3003
        %4937 = vmatpush1.msra.mxu0 %v3002
        %4938 = vmatprep.subr.mxu0 %v3019
        %4939 = vmatpush1.msra.mxu0 %v3018
        %4940 = vmatprep.subr.mxu0 %v3035
        %4941 = vmatpush1.msra.mxu0 %v3034
        %4942 = vmatprep.subr.mxu0 %v3051
        %4943 = vmatpush1.msra.mxu0 %v3050
        %4944 = vmatprep.subr.mxu0 %v3067
        %4945 = vmatpush1.msra.mxu0 %v3066
        %4946 = vmatprep.subr.mxu0 %v3083
        %4947 = vmatpush1.msra.mxu0 %v3082
        %4948 = vmatprep.subr.mxu0 %v3099
        %4949 = vmatpush1.msra.mxu0 %v3098
        %4950 = vmatprep.subr.mxu0 %v3115
        %4951 = vmatpush1.msra.mxu0 %v3114
        %4952 = vmatprep.subr.mxu0 %v3131
        %4953 = vmatpush1.msra.mxu0 %v3130
        %4954 = vmatprep.subr.mxu0 %v3147
        %4955 = vmatpush1.msra.mxu0 %v3146
        %4956 = vmatprep.subr.mxu0 %v3163
        %4957 = vmatpush1.msra.mxu0 %v3162
        %4958 = vmatprep.subr.mxu0 %v3179
        %4959 = vmatpush1.msra.mxu0 %v3178
        %4960 = vmatprep.subr.mxu0 %v3195
        %4961 = vmatpush1.msra.mxu0 %v3194
        %4962 = vmatprep.subr.mxu0 %v3211
        %4963 = vmatpush1.msra.mxu0 %v3210
        %4964 = vmatprep.subr.mxu0 %v3227
        %4965 = vmatpush1.msra.mxu0 %v3226
        %4966 = vmatprep.mubr.f32.mxu0 %v3743
        %4967 = vmatmul.mubr.f32.gmra.mrb[0].mxu0 %v3742
        %v4968 = vpop.f32.mrb[0].mxu0
        %v4969 = vadd.f32 0.0, %v4968
        %v4970 = vpop.f32.mrb[0].mxu0
        %v4971 = vadd.f32 0.0, %v4970
        %4972 = vmatprep.mubr.f32.mxu0 %v3747
        %4973 = vmatmul.mubr.f32.gmra.mrb[0].mxu0 %v3746
        %v4974 = vpop.f32.mrb[0].mxu0
        %v4975 = vadd.f32 0.0, %v4974
        %v4976 = vpop.f32.mrb[0].mxu0
        %v4977 = vadd.f32 0.0, %v4976
        %4978 = vmatprep.mubr.f32.mxu0 %v3751
        %4979 = vmatmul.mubr.f32.gmra.mrb[0].mxu0 %v3750
        %v4980 = vpop.f32.mrb[0].mxu0
        %v4981 = vadd.f32 0.0, %v4980
        %v4982 = vpop.f32.mrb[0].mxu0
        %v4983 = vadd.f32 0.0, %v4982
        %4984 = vmatprep.mubr.f32.mxu0 %v3755
        %4985 = vmatmul.mubr.f32.gmra.mrb[0].mxu0 %v3754
        %v4986 = vpop.f32.mrb[0].mxu0
        %v4987 = vadd.f32 0.0, %v4986
        %v4988 = vpop.f32.mrb[0].mxu0
        %v4989 = vadd.f32 0.0, %v4988
        %4990 = vmatprep.mubr.f32.mxu0 %v3759
        %4991 = vmatmul.mubr.f32.gmra.mrb[0].mxu0 %v3758
        %v4992 = vpop.f32.mrb[0].mxu0
        %v4993 = vadd.f32 0.0, %v4992
        %v4994 = vpop.f32.mrb[0].mxu0
        %v4995 = vadd.f32 0.0, %v4994
        %4996 = vdwg.mxu0
        %4997 = vmatprep.subr.mxu0 %v3243
        %4998 = vmatpush1.msra.mxu0 %v3242
        %4999 = vmatprep.subr.mxu0 %v3259
        %5000 = vmatpush1.msra.mxu0 %v3258
        %5001 = vmatprep.subr.mxu0 %v3275
        %5002 = vmatpush1.msra.mxu0 %v3274
        %5003 = vmatprep.subr.mxu0 %v3291
        %5004 = vmatpush1.msra.mxu0 %v3290
        %5005 = vmatprep.subr.mxu0 %v3307
        %5006 = vmatpush1.msra.mxu0 %v3306
        %5007 = vmatprep.subr.mxu0 %v3323
        %5008 = vmatpush1.msra.mxu0 %v3322
        %5009 = vmatprep.subr.mxu0 %v3339
        %5010 = vmatpush1.msra.mxu0 %v3338
        %5011 = vmatprep.subr.mxu0 %v3355
        %5012 = vmatpush1.msra.mxu0 %v3354
        %5013 = vmatprep.subr.mxu0 %v3371
        %5014 = vmatpush1.msra.mxu0 %v3370
        %5015 = vmatprep.subr.mxu0 %v3387
        %5016 = vmatpush1.msra.mxu0 %v3386
        %5017 = vmatprep.subr.mxu0 %v3403
        %5018 = vmatpush1.msra.mxu0 %v3402
        %5019 = vmatprep.subr.mxu0 %v3419
        %5020 = vmatpush1.msra.mxu0 %v3418
        %5021 = vmatprep.subr.mxu0 %v3435
        %5022 = vmatpush1.msra.mxu0 %v3434
        %5023 = vmatprep.subr.mxu0 %v3451
        %5024 = vmatpush1.msra.mxu0 %v3450
        %5025 = vmatprep.subr.mxu0 %v3467
        %5026 = vmatpush1.msra.mxu0 %v3466
        %5027 = vmatprep.subr.mxu0 %v3483
        %5028 = vmatpush1.msra.mxu0 %v3482
        %5029 = vmatprep.subr.mxu0 %v3499
        %5030 = vmatpush1.msra.mxu0 %v3498
        %5031 = vmatprep.subr.mxu0 %v3515
        %5032 = vmatpush1.msra.mxu0 %v3514
        %5033 = vmatprep.subr.mxu0 %v3531
        %5034 = vmatpush1.msra.mxu0 %v3530
        %5035 = vmatprep.subr.mxu0 %v3547
        %5036 = vmatpush1.msra.mxu0 %v3546
        %5037 = vmatprep.subr.mxu0 %v3563
        %5038 = vmatpush1.msra.mxu0 %v3562
        %5039 = vmatprep.subr.mxu0 %v3579
        %5040 = vmatpush1.msra.mxu0 %v3578
        %5041 = vmatprep.subr.mxu0 %v3595
        %5042 = vmatpush1.msra.mxu0 %v3594
        %5043 = vmatprep.subr.mxu0 %v3611
        %5044 = vmatpush1.msra.mxu0 %v3610
        %5045 = vmatprep.subr.mxu0 %v3627
        %5046 = vmatpush1.msra.mxu0 %v3626
        %5047 = vmatprep.subr.mxu0 %v3643
        %5048 = vmatpush1.msra.mxu0 %v3642
        %5049 = vmatprep.subr.mxu0 %v3659
        %5050 = vmatpush1.msra.mxu0 %v3658
        %5051 = vmatprep.subr.mxu0 %v3675
        %5052 = vmatpush1.msra.mxu0 %v3674
        %5053 = vmatprep.subr.mxu0 %v3691
        %5054 = vmatpush1.msra.mxu0 %v3690
        %5055 = vmatprep.subr.mxu0 %v3707
        %5056 = vmatpush1.msra.mxu0 %v3706
        %5057 = vmatprep.subr.mxu0 %v3723
        %5058 = vmatpush1.msra.mxu0 %v3722
        %5059 = vmatprep.subr.mxu0 %v3739
        %5060 = vmatpush1.msra.mxu0 %v3738
        %5061 = vmatprep.mubr.f32.mxu0 %v3745
        %5062 = vmatmul.mubr.f32.gmra.mrb[0].mxu0 %v3744
        %v5063 = vpop.f32.mrb[0].mxu0
        %v5064 = vadd.f32 %v4969, %v5063
        %v5065 = vpop.f32.mrb[0].mxu0
        %v5066 = vadd.f32 %v4971, %v5065
        %5067 = vmatprep.mubr.f32.mxu0 %v3749
        %5068 = vmatmul.mubr.f32.gmra.mrb[0].mxu0 %v3748
        %v5069 = vpop.f32.mrb[0].mxu0
        %v5070 = vadd.f32 %v4975, %v5069
        %v5071 = vpop.f32.mrb[0].mxu0
        %v5072 = vadd.f32 %v4977, %v5071
        %5073 = vmatprep.mubr.f32.mxu0 %v3753
        %5074 = vmatmul.mubr.f32.gmra.mrb[0].mxu0 %v3752
        %v5075 = vpop.f32.mrb[0].mxu0
        %v5076 = vadd.f32 %v4981, %v5075
        %v5077 = vpop.f32.mrb[0].mxu0
        %v5078 = vadd.f32 %v4983, %v5077
        %5079 = vmatprep.mubr.f32.mxu0 %v3757
        %5080 = vmatmul.mubr.f32.gmra.mrb[0].mxu0 %v3756
        %v5081 = vpop.f32.mrb[0].mxu0
        %v5082 = vadd.f32 %v4987, %v5081
        %v5083 = vpop.f32.mrb[0].mxu0
        %v5084 = vadd.f32 %v4989, %v5083
        %5085 = vmatprep.mubr.f32.mxu0 %v3761
        %5086 = vmatmul.mubr.f32.gmra.mrb[0].mxu0 %v3760
        %v5087 = vpop.f32.mrb[0].mxu0
        %v5088 = vadd.f32 %v4993, %v5087
        %v5089 = vpop.f32.mrb[0].mxu0
        %v5090 = vadd.f32 %v4995, %v5089
        %5091 = vdwg.mxu0
        %5092 = vmatprep.subr.mxu0 %v2733
        %5093 = vmatpush1.msra.mxu0 %v2732
        %5094 = vmatprep.subr.mxu0 %v2749
        %5095 = vmatpush1.msra.mxu0 %v2748
        %5096 = vmatprep.subr.mxu0 %v2765
        %5097 = vmatpush1.msra.mxu0 %v2764
        %5098 = vmatprep.subr.mxu0 %v2781
        %5099 = vmatpush1.msra.mxu0 %v2780
        %5100 = vmatprep.subr.mxu0 %v2797
        %5101 = vmatpush1.msra.mxu0 %v2796
        %5102 = vmatprep.subr.mxu0 %v2813
        %5103 = vmatpush1.msra.mxu0 %v2812
        %5104 = vmatprep.subr.mxu0 %v2829
        %5105 = vmatpush1.msra.mxu0 %v2828
        %5106 = vmatprep.subr.mxu0 %v2845
        %5107 = vmatpush1.msra.mxu0 %v2844
        %5108 = vmatprep.subr.mxu0 %v2861
        %5109 = vmatpush1.msra.mxu0 %v2860
        %5110 = vmatprep.subr.mxu0 %v2877
        %5111 = vmatpush1.msra.mxu0 %v2876
        %5112 = vmatprep.subr.mxu0 %v2893
        %5113 = vmatpush1.msra.mxu0 %v2892
        %5114 = vmatprep.subr.mxu0 %v2909
        %5115 = vmatpush1.msra.mxu0 %v2908
        %5116 = vmatprep.subr.mxu0 %v2925
        %5117 = vmatpush1.msra.mxu0 %v2924
        %5118 = vmatprep.subr.mxu0 %v2941
        %5119 = vmatpush1.msra.mxu0 %v2940
        %5120 = vmatprep.subr.mxu0 %v2957
        %5121 = vmatpush1.msra.mxu0 %v2956
        %5122 = vmatprep.subr.mxu0 %v2973
        %5123 = vmatpush1.msra.mxu0 %v2972
        %5124 = vmatprep.subr.mxu0 %v2989
        %5125 = vmatpush1.msra.mxu0 %v2988
        %5126 = vmatprep.subr.mxu0 %v3005
        %5127 = vmatpush1.msra.mxu0 %v3004
        %5128 = vmatprep.subr.mxu0 %v3021
        %5129 = vmatpush1.msra.mxu0 %v3020
        %5130 = vmatprep.subr.mxu0 %v3037
        %5131 = vmatpush1.msra.mxu0 %v3036
        %5132 = vmatprep.subr.mxu0 %v3053
        %5133 = vmatpush1.msra.mxu0 %v3052
        %5134 = vmatprep.subr.mxu0 %v3069
        %5135 = vmatpush1.msra.mxu0 %v3068
        %5136 = vmatprep.subr.mxu0 %v3085
        %5137 = vmatpush1.msra.mxu0 %v3084
        %5138 = vmatprep.subr.mxu0 %v3101
        %5139 = vmatpush1.msra.mxu0 %v3100
        %5140 = vmatprep.subr.mxu0 %v3117
        %5141 = vmatpush1.msra.mxu0 %v3116
        %5142 = vmatprep.subr.mxu0 %v3133
        %5143 = vmatpush1.msra.mxu0 %v3132
        %5144 = vmatprep.subr.mxu0 %v3149
        %5145 = vmatpush1.msra.mxu0 %v3148
        %5146 = vmatprep.subr.mxu0 %v3165
        %5147 = vmatpush1.msra.mxu0 %v3164
        %5148 = vmatprep.subr.mxu0 %v3181
        %5149 = vmatpush1.msra.mxu0 %v3180
        %5150 = vmatprep.subr.mxu0 %v3197
        %5151 = vmatpush1.msra.mxu0 %v3196
        %5152 = vmatprep.subr.mxu0 %v3213
        %5153 = vmatpush1.msra.mxu0 %v3212
        %5154 = vmatprep.subr.mxu0 %v3229
        %5155 = vmatpush1.msra.mxu0 %v3228
        %5156 = vmatprep.mubr.f32.mxu0 %v3743
        %5157 = vmatmul.mubr.f32.gmra.mrb[0].mxu0 %v3742
        %v5158 = vpop.f32.mrb[0].mxu0
        %v5159 = vadd.f32 0.0, %v5158
        %v5160 = vpop.f32.mrb[0].mxu0
        %v5161 = vadd.f32 0.0, %v5160
        %5162 = vmatprep.mubr.f32.mxu0 %v3747
        %5163 = vmatmul.mubr.f32.gmra.mrb[0].mxu0 %v3746
        %v5164 = vpop.f32.mrb[0].mxu0
        %v5165 = vadd.f32 0.0, %v5164
        %v5166 = vpop.f32.mrb[0].mxu0
        %v5167 = vadd.f32 0.0, %v5166
        %5168 = vmatprep.mubr.f32.mxu0 %v3751
        %5169 = vmatmul.mubr.f32.gmra.mrb[0].mxu0 %v3750
        %v5170 = vpop.f32.mrb[0].mxu0
        %v5171 = vadd.f32 0.0, %v5170
        %v5172 = vpop.f32.mrb[0].mxu0
        %v5173 = vadd.f32 0.0, %v5172
        %5174 = vmatprep.mubr.f32.mxu0 %v3755
        %5175 = vmatmul.mubr.f32.gmra.mrb[0].mxu0 %v3754
        %v5176 = vpop.f32.mrb[0].mxu0
        %v5177 = vadd.f32 0.0, %v5176
        %v5178 = vpop.f32.mrb[0].mxu0
        %v5179 = vadd.f32 0.0, %v5178
        %5180 = vmatprep.mubr.f32.mxu0 %v3759
        %5181 = vmatmul.mubr.f32.gmra.mrb[0].mxu0 %v3758
        %v5182 = vpop.f32.mrb[0].mxu0
        %v5183 = vadd.f32 0.0, %v5182
        %v5184 = vpop.f32.mrb[0].mxu0
        %v5185 = vadd.f32 0.0, %v5184
        %5186 = vdwg.mxu0
        %5187 = vmatprep.subr.mxu0 %v3245
        %5188 = vmatpush1.msra.mxu0 %v3244
        %5189 = vmatprep.subr.mxu0 %v3261
        %5190 = vmatpush1.msra.mxu0 %v3260
        %5191 = vmatprep.subr.mxu0 %v3277
        %5192 = vmatpush1.msra.mxu0 %v3276
        %5193 = vmatprep.subr.mxu0 %v3293
        %5194 = vmatpush1.msra.mxu0 %v3292
        %5195 = vmatprep.subr.mxu0 %v3309
        %5196 = vmatpush1.msra.mxu0 %v3308
        %5197 = vmatprep.subr.mxu0 %v3325
        %5198 = vmatpush1.msra.mxu0 %v3324
        %5199 = vmatprep.subr.mxu0 %v3341
        %5200 = vmatpush1.msra.mxu0 %v3340
        %5201 = vmatprep.subr.mxu0 %v3357
        %5202 = vmatpush1.msra.mxu0 %v3356
        %5203 = vmatprep.subr.mxu0 %v3373
        %5204 = vmatpush1.msra.mxu0 %v3372
        %5205 = vmatprep.subr.mxu0 %v3389
        %5206 = vmatpush1.msra.mxu0 %v3388
        %5207 = vmatprep.subr.mxu0 %v3405
        %5208 = vmatpush1.msra.mxu0 %v3404
        %5209 = vmatprep.subr.mxu0 %v3421
        %5210 = vmatpush1.msra.mxu0 %v3420
        %5211 = vmatprep.subr.mxu0 %v3437
        %5212 = vmatpush1.msra.mxu0 %v3436
        %5213 = vmatprep.subr.mxu0 %v3453
        %5214 = vmatpush1.msra.mxu0 %v3452
        %5215 = vmatprep.subr.mxu0 %v3469
        %5216 = vmatpush1.msra.mxu0 %v3468
        %5217 = vmatprep.subr.mxu0 %v3485
        %5218 = vmatpush1.msra.mxu0 %v3484
        %5219 = vmatprep.subr.mxu0 %v3501
        %5220 = vmatpush1.msra.mxu0 %v3500
        %5221 = vmatprep.subr.mxu0 %v3517
        %5222 = vmatpush1.msra.mxu0 %v3516
        %5223 = vmatprep.subr.mxu0 %v3533
        %5224 = vmatpush1.msra.mxu0 %v3532
        %5225 = vmatprep.subr.mxu0 %v3549
        %5226 = vmatpush1.msra.mxu0 %v3548
        %5227 = vmatprep.subr.mxu0 %v3565
        %5228 = vmatpush1.msra.mxu0 %v3564
        %5229 = vmatprep.subr.mxu0 %v3581
        %5230 = vmatpush1.msra.mxu0 %v3580
        %5231 = vmatprep.subr.mxu0 %v3597
        %5232 = vmatpush1.msra.mxu0 %v3596
        %5233 = vmatprep.subr.mxu0 %v3613
        %5234 = vmatpush1.msra.mxu0 %v3612
        %5235 = vmatprep.subr.mxu0 %v3629
        %5236 = vmatpush1.msra.mxu0 %v3628
        %5237 = vmatprep.subr.mxu0 %v3645
        %5238 = vmatpush1.msra.mxu0 %v3644
        %5239 = vmatprep.subr.mxu0 %v3661
        %5240 = vmatpush1.msra.mxu0 %v3660
        %5241 = vmatprep.subr.mxu0 %v3677
        %5242 = vmatpush1.msra.mxu0 %v3676
        %5243 = vmatprep.subr.mxu0 %v3693
        %5244 = vmatpush1.msra.mxu0 %v3692
        %5245 = vmatprep.subr.mxu0 %v3709
        %5246 = vmatpush1.msra.mxu0 %v3708
        %5247 = vmatprep.subr.mxu0 %v3725
        %5248 = vmatpush1.msra.mxu0 %v3724
        %5249 = vmatprep.subr.mxu0 %v3741
        %5250 = vmatpush1.msra.mxu0 %v3740
        %5251 = vmatprep.mubr.f32.mxu0 %v3745
        %5252 = vmatmul.mubr.f32.gmra.mrb[0].mxu0 %v3744
        %v5253 = vpop.f32.mrb[0].mxu0
        %v5254 = vadd.f32 %v5159, %v5253
        %v5255 = vpop.f32.mrb[0].mxu0
        %v5256 = vadd.f32 %v5161, %v5255
        %5257 = vmatprep.mubr.f32.mxu0 %v3749
        %5258 = vmatmul.mubr.f32.gmra.mrb[0].mxu0 %v3748
        %v5259 = vpop.f32.mrb[0].mxu0
        %v5260 = vadd.f32 %v5165, %v5259
        %v5261 = vpop.f32.mrb[0].mxu0
        %v5262 = vadd.f32 %v5167, %v5261
        %5263 = vmatprep.mubr.f32.mxu0 %v3753
        %5264 = vmatmul.mubr.f32.gmra.mrb[0].mxu0 %v3752
        %v5265 = vpop.f32.mrb[0].mxu0
        %v5266 = vadd.f32 %v5171, %v5265
        %v5267 = vpop.f32.mrb[0].mxu0
        %v5268 = vadd.f32 %v5173, %v5267
        %5269 = vmatprep.mubr.f32.mxu0 %v3757
        %5270 = vmatmul.mubr.f32.gmra.mrb[0].mxu0 %v3756
        %v5271 = vpop.f32.mrb[0].mxu0
        %v5272 = vadd.f32 %v5177, %v5271
        %v5273 = vpop.f32.mrb[0].mxu0
        %v5274 = vadd.f32 %v5179, %v5273
        %5275 = vmatprep.mubr.f32.mxu0 %v3761
        %5276 = vmatmul.mubr.f32.gmra.mrb[0].mxu0 %v3760
        %v5277 = vpop.f32.mrb[0].mxu0
        %v5278 = vadd.f32 %v5183, %v5277
        %v5279 = vpop.f32.mrb[0].mxu0
        %v5280 = vadd.f32 %v5185, %v5279
        %5281 = vdwg.mxu0
        %p5282 = scmp.eq.s32.totalorder %s31, 0
        // Predicated region
        $region45: #{tpu_custom_call.1} parent=31 // pred_check
          %p5283 = pneg %p5282
        $region46: #{tpu_custom_call.1} parent=31 // pred_check_branch
          %5285 = sbr.rel (%p5283) target = $region48
        $region47: #{tpu_custom_call.1} parent=31 // pred_region
          %5286 = vst [vmem:[%s279] sm:$0xff] 0.0
          %5287 = vst [vmem:[%s279 + $0x8] sm:$0xff] 0.0
          %5288 = vst [vmem:[%s279 + $0x10] sm:$0xff] 0.0
          %5289 = vst [vmem:[%s279 + $0x18] sm:$0xff] 0.0
          %5290 = vst [vmem:[%s279 + $0x20] sm:$0xff] 0.0
          %5291 = vst [vmem:[%s279 + $0x28] sm:$0xff] 0.0
          %5292 = vst [vmem:[%s279 + $0x30] sm:$0xff] 0.0
          %5293 = vst [vmem:[%s279 + $0x38] sm:$0xff] 0.0
          %5294 = vst [vmem:[%s279 + $0x40] sm:$0xff] 0.0
          %5295 = vst [vmem:[%s279 + $0x48] sm:$0xff] 0.0
          %5296 = vst [vmem:[%s279 + $0x50] sm:$0xff] 0.0
          %5297 = vst [vmem:[%s279 + $0x58] sm:$0xff] 0.0
          %5298 = vst [vmem:[%s279 + $0x60] sm:$0xff] 0.0
          %5299 = vst [vmem:[%s279 + $0x68] sm:$0xff] 0.0
          %5300 = vst [vmem:[%s279 + $0x70] sm:$0xff] 0.0
          %5301 = vst [vmem:[%s279 + $0x78] sm:$0xff] 0.0
          %5302 = vst [vmem:[%s279 + $0x80] sm:$0xff] 0.0
          %5303 = vst [vmem:[%s279 + $0x88] sm:$0xff] 0.0
          %5304 = vst [vmem:[%s279 + $0x90] sm:$0xff] 0.0
          %5305 = vst [vmem:[%s279 + $0x98] sm:$0xff] 0.0
          %5306 = vst [vmem:[%s279 + $0xa0] sm:$0xff] 0.0
          %5307 = vst [vmem:[%s279 + $0xa8] sm:$0xff] 0.0
          %5308 = vst [vmem:[%s279 + $0xb0] sm:$0xff] 0.0
          %5309 = vst [vmem:[%s279 + $0xb8] sm:$0xff] 0.0
          %5310 = vst [vmem:[%s279 + $0xc0] sm:$0xff] 0.0
          %5311 = vst [vmem:[%s279 + $0xc8] sm:$0xff] 0.0
          %5312 = vst [vmem:[%s279 + $0xd0] sm:$0xff] 0.0
          %5313 = vst [vmem:[%s279 + $0xd8] sm:$0xff] 0.0
          %5314 = vst [vmem:[%s279 + $0xe0] sm:$0xff] 0.0
          %5315 = vst [vmem:[%s279 + $0xe8] sm:$0xff] 0.0
          %5316 = vst [vmem:[%s279 + $0xf0] sm:$0xff] 0.0
          %5317 = vst [vmem:[%s279 + $0xf8] sm:$0xff] 0.0
          %5318 = vst [vmem:[%s279 + $0x100] sm:$0xff] 0.0
          %5319 = vst [vmem:[%s279 + $0x108] sm:$0xff] 0.0
          %5320 = vst [vmem:[%s279 + $0x110] sm:$0xff] 0.0
          %5321 = vst [vmem:[%s279 + $0x118] sm:$0xff] 0.0
          %5322 = vst [vmem:[%s279 + $0x120] sm:$0xff] 0.0
          %5323 = vst [vmem:[%s279 + $0x128] sm:$0xff] 0.0
          %5324 = vst [vmem:[%s279 + $0x130] sm:$0xff] 0.0
          %5325 = vst [vmem:[%s279 + $0x138] sm:$0xff] 0.0
          %5326 = vst [vmem:[%s279 + $0x140] sm:$0xff] 0.0
          %5327 = vst [vmem:[%s279 + $0x148] sm:$0xff] 0.0
          %5328 = vst [vmem:[%s279 + $0x150] sm:$0xff] 0.0
          %5329 = vst [vmem:[%s279 + $0x158] sm:$0xff] 0.0
          %5330 = vst [vmem:[%s279 + $0x160] sm:$0xff] 0.0
          %5331 = vst [vmem:[%s279 + $0x168] sm:$0xff] 0.0
          %5332 = vst [vmem:[%s279 + $0x170] sm:$0xff] 0.0
          %5333 = vst [vmem:[%s279 + $0x178] sm:$0xff] 0.0
          %5334 = vst [vmem:[%s279 + $0x180] sm:$0xff] 0.0
          %5335 = vst [vmem:[%s279 + $0x188] sm:$0xff] 0.0
          %5336 = vst [vmem:[%s279 + $0x190] sm:$0xff] 0.0
          %5337 = vst [vmem:[%s279 + $0x198] sm:$0xff] 0.0
          %5338 = vst [vmem:[%s279 + $0x1a0] sm:$0xff] 0.0
          %5339 = vst [vmem:[%s279 + $0x1a8] sm:$0xff] 0.0
          %5340 = vst [vmem:[%s279 + $0x1b0] sm:$0xff] 0.0
          %5341 = vst [vmem:[%s279 + $0x1b8] sm:$0xff] 0.0
          %5342 = vst [vmem:[%s279 + $0x1c0] sm:$0xff] 0.0
          %5343 = vst [vmem:[%s279 + $0x1c8] sm:$0xff] 0.0
          %5344 = vst [vmem:[%s279 + $0x1d0] sm:$0xff] 0.0
          %5345 = vst [vmem:[%s279 + $0x1d8] sm:$0xff] 0.0
          %5346 = vst [vmem:[%s279 + $0x1e0] sm:$0xff] 0.0
          %5347 = vst [vmem:[%s279 + $0x1e8] sm:$0xff] 0.0
          %5348 = vst [vmem:[%s279 + $0x1f0] sm:$0xff] 0.0
          %5349 = vst [vmem:[%s279 + $0x1f8] sm:$0xff] 0.0
          %5350 = vst [vmem:[%s279 + $0x200] sm:$0xff] 0.0
          %5351 = vst [vmem:[%s279 + $0x208] sm:$0xff] 0.0
          %5352 = vst [vmem:[%s279 + $0x210] sm:$0xff] 0.0
          %5353 = vst [vmem:[%s279 + $0x218] sm:$0xff] 0.0
          %5354 = vst [vmem:[%s279 + $0x220] sm:$0xff] 0.0
          %5355 = vst [vmem:[%s279 + $0x228] sm:$0xff] 0.0
          %5356 = vst [vmem:[%s279 + $0x230] sm:$0xff] 0.0
          %5357 = vst [vmem:[%s279 + $0x238] sm:$0xff] 0.0
          %5358 = vst [vmem:[%s279 + $0x240] sm:$0xff] 0.0
          %5359 = vst [vmem:[%s279 + $0x248] sm:$0xff] 0.0
          %5360 = vst [vmem:[%s279 + $0x250] sm:$0xff] 0.0
          %5361 = vst [vmem:[%s279 + $0x258] sm:$0xff] 0.0
          %5362 = vst [vmem:[%s279 + $0x260] sm:$0xff] 0.0
          %5363 = vst [vmem:[%s279 + $0x268] sm:$0xff] 0.0
          %5364 = vst [vmem:[%s279 + $0x270] sm:$0xff] 0.0
          %5365 = vst [vmem:[%s279 + $0x278] sm:$0xff] 0.0
          %v5366 = vcvt.s32.f32 %v315
          %v5367 = vcvt.s32.f32 %v316
          %v5368 = vcvt.s32.f32 %v317
          %v5369 = vcvt.s32.f32 %v318
          %v5370 = vcvt.s32.f32 %v319
          %v5371 = vcvt.s32.f32 %v320
          %v5372 = vcvt.s32.f32 %v321
          %v5373 = vcvt.s32.f32 %v322
          %v5374 = vsub.f32 %v307, %v5366
          %v5375 = vsub.f32 %v308, %v5367
          %v5376 = vsub.f32 %v309, %v5368
          %v5377 = vsub.f32 %v310, %v5369
          %v5378 = vsub.f32 %v311, %v5370
          %v5379 = vsub.f32 %v312, %v5371
          %v5380 = vsub.f32 %v313, %v5372
          %v5381 = vsub.f32 %v314, %v5373
          %v5382 = vld [vmem:[#allocation5] sm:$0x77]
          %v5383 = vld [vmem:[#allocation5 + $0x8] sm:$0x77]
          %v5384 = vld [vmem:[#allocation5 + $0x10] sm:$0x77]
          %v5385 = vld [vmem:[#allocation5 + $0x18] sm:$0x77]
          %v5386 = vld [vmem:[#allocation5 + $0x20] sm:$0x77]
          %v5387 = vld [vmem:[#allocation5 + $0x28] sm:$0x77]
          %v5388 = vld [vmem:[#allocation5 + $0x30] sm:$0x77]
          %v5389 = vld [vmem:[#allocation5 + $0x38] sm:$0x77]
          %v5398 = vrot.slane %v5382, 7
          %v5399 = vrot.slane %v5383, 7
          %v5400 = vrot.slane %v5384, 7
          %v5401 = vrot.slane %v5385, 7
          %v5402 = vrot.slane %v5386, 7
          %v5403 = vrot.slane %v5387, 7
          %v5404 = vrot.slane %v5388, 7
          %v5405 = vrot.slane %v5389, 7
          %v5414 = vadd.f32 %v5374, %v5398
          %v5415 = vadd.f32 %v5375, %v5399
          %v5416 = vadd.f32 %v5376, %v5400
          %v5417 = vadd.f32 %v5377, %v5401
          %v5418 = vadd.f32 %v5378, %v5402
          %v5419 = vadd.f32 %v5379, %v5403
          %v5420 = vadd.f32 %v5380, %v5404
          %v5421 = vadd.f32 %v5381, %v5405
          %v5430 = vrot.slane %v5414, 5
          %v5431 = vrot.slane %v5430, 4
          %v5432 = vrot.slane %v5415, 5
          %v5433 = vrot.slane %v5432, 4
          %v5434 = vrot.slane %v5416, 5
          %v5435 = vrot.slane %v5434, 4
          %v5436 = vrot.slane %v5417, 5
          %v5437 = vrot.slane %v5436, 4
          %v5438 = vrot.slane %v5418, 5
          %v5439 = vrot.slane %v5438, 4
          %v5440 = vrot.slane %v5419, 5
          %v5441 = vrot.slane %v5440, 4
          %v5442 = vrot.slane %v5420, 5
          %v5443 = vrot.slane %v5442, 4
          %v5444 = vrot.slane %v5421, 5
          %v5445 = vrot.slane %v5444, 4
          %5454 = vst [vmem:[%s286] sm:$0x77] %v5431
          %5455 = vst [vmem:[%s286 + $0x8] sm:$0x77] %v5433
          %5456 = vst [vmem:[%s286 + $0x10] sm:$0x77] %v5435
          %5457 = vst [vmem:[%s286 + $0x18] sm:$0x77] %v5437
          %5458 = vst [vmem:[%s286 + $0x20] sm:$0x77] %v5439
          %5459 = vst [vmem:[%s286 + $0x28] sm:$0x77] %v5441
          %5460 = vst [vmem:[%s286 + $0x30] sm:$0x77] %v5443
          %5461 = vst [vmem:[%s286 + $0x38] sm:$0x77] %v5445
        $region48: #{tpu_custom_call.1} parent=31 // pred_fallthru
          _
        %v5462 = vld [vmem:[%s279] sm:$0xff]
        %v5463 = vld [vmem:[%s279 + $0x8] sm:$0xff]
        %v5464 = vld [vmem:[%s279 + $0x10] sm:$0xff]
        %v5465 = vld [vmem:[%s279 + $0x18] sm:$0xff]
        %v5466 = vld [vmem:[%s279 + $0x20] sm:$0xff]
        %v5467 = vld [vmem:[%s279 + $0x28] sm:$0xff]
        %v5468 = vld [vmem:[%s279 + $0x30] sm:$0xff]
        %v5469 = vld [vmem:[%s279 + $0x38] sm:$0xff]
        %v5470 = vld [vmem:[%s279 + $0x40] sm:$0xff]
        %v5471 = vld [vmem:[%s279 + $0x48] sm:$0xff]
        %v5472 = vld [vmem:[%s279 + $0x50] sm:$0xff]
        %v5473 = vld [vmem:[%s279 + $0x58] sm:$0xff]
        %v5474 = vld [vmem:[%s279 + $0x60] sm:$0xff]
        %v5475 = vld [vmem:[%s279 + $0x68] sm:$0xff]
        %v5476 = vld [vmem:[%s279 + $0x70] sm:$0xff]
        %v5477 = vld [vmem:[%s279 + $0x78] sm:$0xff]
        %v5478 = vld [vmem:[%s279 + $0x80] sm:$0xff]
        %v5479 = vld [vmem:[%s279 + $0x88] sm:$0xff]
        %v5480 = vld [vmem:[%s279 + $0x90] sm:$0xff]
        %v5481 = vld [vmem:[%s279 + $0x98] sm:$0xff]
        %v5482 = vld [vmem:[%s279 + $0xa0] sm:$0xff]
        %v5483 = vld [vmem:[%s279 + $0xa8] sm:$0xff]
        %v5484 = vld [vmem:[%s279 + $0xb0] sm:$0xff]
        %v5485 = vld [vmem:[%s279 + $0xb8] sm:$0xff]
        %v5486 = vld [vmem:[%s279 + $0xc0] sm:$0xff]
        %v5487 = vld [vmem:[%s279 + $0xc8] sm:$0xff]
        %v5488 = vld [vmem:[%s279 + $0xd0] sm:$0xff]
        %v5489 = vld [vmem:[%s279 + $0xd8] sm:$0xff]
        %v5490 = vld [vmem:[%s279 + $0xe0] sm:$0xff]
        %v5491 = vld [vmem:[%s279 + $0xe8] sm:$0xff]
        %v5492 = vld [vmem:[%s279 + $0xf0] sm:$0xff]
        %v5493 = vld [vmem:[%s279 + $0xf8] sm:$0xff]
        %v5494 = vld [vmem:[%s279 + $0x100] sm:$0xff]
        %v5495 = vld [vmem:[%s279 + $0x108] sm:$0xff]
        %v5496 = vld [vmem:[%s279 + $0x110] sm:$0xff]
        %v5497 = vld [vmem:[%s279 + $0x118] sm:$0xff]
        %v5498 = vld [vmem:[%s279 + $0x120] sm:$0xff]
        %v5499 = vld [vmem:[%s279 + $0x128] sm:$0xff]
        %v5500 = vld [vmem:[%s279 + $0x130] sm:$0xff]
        %v5501 = vld [vmem:[%s279 + $0x138] sm:$0xff]
        %v5502 = vld [vmem:[%s279 + $0x140] sm:$0xff]
        %v5503 = vld [vmem:[%s279 + $0x148] sm:$0xff]
        %v5504 = vld [vmem:[%s279 + $0x150] sm:$0xff]
        %v5505 = vld [vmem:[%s279 + $0x158] sm:$0xff]
        %v5506 = vld [vmem:[%s279 + $0x160] sm:$0xff]
        %v5507 = vld [vmem:[%s279 + $0x168] sm:$0xff]
        %v5508 = vld [vmem:[%s279 + $0x170] sm:$0xff]
        %v5509 = vld [vmem:[%s279 + $0x178] sm:$0xff]
        %v5510 = vld [vmem:[%s279 + $0x180] sm:$0xff]
        %v5511 = vld [vmem:[%s279 + $0x188] sm:$0xff]
        %v5512 = vld [vmem:[%s279 + $0x190] sm:$0xff]
        %v5513 = vld [vmem:[%s279 + $0x198] sm:$0xff]
        %v5514 = vld [vmem:[%s279 + $0x1a0] sm:$0xff]
        %v5515 = vld [vmem:[%s279 + $0x1a8] sm:$0xff]
        %v5516 = vld [vmem:[%s279 + $0x1b0] sm:$0xff]
        %v5517 = vld [vmem:[%s279 + $0x1b8] sm:$0xff]
        %v5518 = vld [vmem:[%s279 + $0x1c0] sm:$0xff]
        %v5519 = vld [vmem:[%s279 + $0x1c8] sm:$0xff]
        %v5520 = vld [vmem:[%s279 + $0x1d0] sm:$0xff]
        %v5521 = vld [vmem:[%s279 + $0x1d8] sm:$0xff]
        %v5522 = vld [vmem:[%s279 + $0x1e0] sm:$0xff]
        %v5523 = vld [vmem:[%s279 + $0x1e8] sm:$0xff]
        %v5524 = vld [vmem:[%s279 + $0x1f0] sm:$0xff]
        %v5525 = vld [vmem:[%s279 + $0x1f8] sm:$0xff]
        %v5526 = vld [vmem:[%s279 + $0x200] sm:$0xff]
        %v5527 = vld [vmem:[%s279 + $0x208] sm:$0xff]
        %v5528 = vld [vmem:[%s279 + $0x210] sm:$0xff]
        %v5529 = vld [vmem:[%s279 + $0x218] sm:$0xff]
        %v5530 = vld [vmem:[%s279 + $0x220] sm:$0xff]
        %v5531 = vld [vmem:[%s279 + $0x228] sm:$0xff]
        %v5532 = vld [vmem:[%s279 + $0x230] sm:$0xff]
        %v5533 = vld [vmem:[%s279 + $0x238] sm:$0xff]
        %v5534 = vld [vmem:[%s279 + $0x240] sm:$0xff]
        %v5535 = vld [vmem:[%s279 + $0x248] sm:$0xff]
        %v5536 = vld [vmem:[%s279 + $0x250] sm:$0xff]
        %v5537 = vld [vmem:[%s279 + $0x258] sm:$0xff]
        %v5538 = vld [vmem:[%s279 + $0x260] sm:$0xff]
        %v5539 = vld [vmem:[%s279 + $0x268] sm:$0xff]
        %v5540 = vld [vmem:[%s279 + $0x270] sm:$0xff]
        %v5541 = vld [vmem:[%s279 + $0x278] sm:$0xff]
        %v5542 = vadd.f32 %v5462, %v3924
        %v5543 = vadd.f32 %v5463, %v3926
        %v5544 = vadd.f32 %v5464, %v4114
        %v5545 = vadd.f32 %v5465, %v4116
        %v5546 = vadd.f32 %v5466, %v4304
        %v5547 = vadd.f32 %v5467, %v4306
        %v5548 = vadd.f32 %v5468, %v4494
        %v5549 = vadd.f32 %v5469, %v4496
        %v5550 = vadd.f32 %v5470, %v4684
        %v5551 = vadd.f32 %v5471, %v4686
        %v5552 = vadd.f32 %v5472, %v4874
        %v5553 = vadd.f32 %v5473, %v4876
        %v5554 = vadd.f32 %v5474, %v5064
        %v5555 = vadd.f32 %v5475, %v5066
        %v5556 = vadd.f32 %v5476, %v5254
        %v5557 = vadd.f32 %v5477, %v5256
        %v5558 = vadd.f32 %v5478, %v3930
        %v5559 = vadd.f32 %v5479, %v3932
        %v5560 = vadd.f32 %v5480, %v4120
        %v5561 = vadd.f32 %v5481, %v4122
        %v5562 = vadd.f32 %v5482, %v4310
        %v5563 = vadd.f32 %v5483, %v4312
        %v5564 = vadd.f32 %v5484, %v4500
        %v5565 = vadd.f32 %v5485, %v4502
        %v5566 = vadd.f32 %v5486, %v4690
        %v5567 = vadd.f32 %v5487, %v4692
        %v5568 = vadd.f32 %v5488, %v4880
        %v5569 = vadd.f32 %v5489, %v4882
        %v5570 = vadd.f32 %v5490, %v5070
        %v5571 = vadd.f32 %v5491, %v5072
        %v5572 = vadd.f32 %v5492, %v5260
        %v5573 = vadd.f32 %v5493, %v5262
        %v5574 = vadd.f32 %v5494, %v3936
        %v5575 = vadd.f32 %v5495, %v3938
        %v5576 = vadd.f32 %v5496, %v4126
        %v5577 = vadd.f32 %v5497, %v4128
        %v5578 = vadd.f32 %v5498, %v4316
        %v5579 = vadd.f32 %v5499, %v4318
        %v5580 = vadd.f32 %v5500, %v4506
        %v5581 = vadd.f32 %v5501, %v4508
        %v5582 = vadd.f32 %v5502, %v4696
        %v5583 = vadd.f32 %v5503, %v4698
        %v5584 = vadd.f32 %v5504, %v4886
        %v5585 = vadd.f32 %v5505, %v4888
        %v5586 = vadd.f32 %v5506, %v5076
        %v5587 = vadd.f32 %v5507, %v5078
        %v5588 = vadd.f32 %v5508, %v5266
        %v5589 = vadd.f32 %v5509, %v5268
        %v5590 = vadd.f32 %v5510, %v3942
        %v5591 = vadd.f32 %v5511, %v3944
        %v5592 = vadd.f32 %v5512, %v4132
        %v5593 = vadd.f32 %v5513, %v4134
        %v5594 = vadd.f32 %v5514, %v4322
        %v5595 = vadd.f32 %v5515, %v4324
        %v5596 = vadd.f32 %v5516, %v4512
        %v5597 = vadd.f32 %v5517, %v4514
        %v5598 = vadd.f32 %v5518, %v4702
        %v5599 = vadd.f32 %v5519, %v4704
        %v5600 = vadd.f32 %v5520, %v4892
        %v5601 = vadd.f32 %v5521, %v4894
        %v5602 = vadd.f32 %v5522, %v5082
        %v5603 = vadd.f32 %v5523, %v5084
        %v5604 = vadd.f32 %v5524, %v5272
        %v5605 = vadd.f32 %v5525, %v5274
        %v5606 = vadd.f32 %v5526, %v3948
        %v5607 = vadd.f32 %v5527, %v3950
        %v5608 = vadd.f32 %v5528, %v4138
        %v5609 = vadd.f32 %v5529, %v4140
        %v5610 = vadd.f32 %v5530, %v4328
        %v5611 = vadd.f32 %v5531, %v4330
        %v5612 = vadd.f32 %v5532, %v4518
        %v5613 = vadd.f32 %v5533, %v4520
        %v5614 = vadd.f32 %v5534, %v4708
        %v5615 = vadd.f32 %v5535, %v4710
        %v5616 = vadd.f32 %v5536, %v4898
        %v5617 = vadd.f32 %v5537, %v4900
        %v5618 = vadd.f32 %v5538, %v5088
        %v5619 = vadd.f32 %v5539, %v5090
        %v5620 = vadd.f32 %v5540, %v5278
        %v5621 = vadd.f32 %v5541, %v5280
        %5622 = vst [vmem:[%s279] sm:$0xff] %v5542
        %5623 = vst [vmem:[%s279 + $0x8] sm:$0xff] %v5543
        %5624 = vst [vmem:[%s279 + $0x10] sm:$0xff] %v5544
        %5625 = vst [vmem:[%s279 + $0x18] sm:$0xff] %v5545
        %5626 = vst [vmem:[%s279 + $0x20] sm:$0xff] %v5546
        %5627 = vst [vmem:[%s279 + $0x28] sm:$0xff] %v5547
        %5628 = vst [vmem:[%s279 + $0x30] sm:$0xff] %v5548
        %5629 = vst [vmem:[%s279 + $0x38] sm:$0xff] %v5549
        %5630 = vst [vmem:[%s279 + $0x40] sm:$0xff] %v5550
        %5631 = vst [vmem:[%s279 + $0x48] sm:$0xff] %v5551
        %5632 = vst [vmem:[%s279 + $0x50] sm:$0xff] %v5552
        %5633 = vst [vmem:[%s279 + $0x58] sm:$0xff] %v5553
        %5634 = vst [vmem:[%s279 + $0x60] sm:$0xff] %v5554
        %5635 = vst [vmem:[%s279 + $0x68] sm:$0xff] %v5555
        %5636 = vst [vmem:[%s279 + $0x70] sm:$0xff] %v5556
        %5637 = vst [vmem:[%s279 + $0x78] sm:$0xff] %v5557
        %5638 = vst [vmem:[%s279 + $0x80] sm:$0xff] %v5558
        %5639 = vst [vmem:[%s279 + $0x88] sm:$0xff] %v5559
        %5640 = vst [vmem:[%s279 + $0x90] sm:$0xff] %v5560
        %5641 = vst [vmem:[%s279 + $0x98] sm:$0xff] %v5561
        %5642 = vst [vmem:[%s279 + $0xa0] sm:$0xff] %v5562
        %5643 = vst [vmem:[%s279 + $0xa8] sm:$0xff] %v5563
        %5644 = vst [vmem:[%s279 + $0xb0] sm:$0xff] %v5564
        %5645 = vst [vmem:[%s279 + $0xb8] sm:$0xff] %v5565
        %5646 = vst [vmem:[%s279 + $0xc0] sm:$0xff] %v5566
        %5647 = vst [vmem:[%s279 + $0xc8] sm:$0xff] %v5567
        %5648 = vst [vmem:[%s279 + $0xd0] sm:$0xff] %v5568
        %5649 = vst [vmem:[%s279 + $0xd8] sm:$0xff] %v5569
        %5650 = vst [vmem:[%s279 + $0xe0] sm:$0xff] %v5570
        %5651 = vst [vmem:[%s279 + $0xe8] sm:$0xff] %v5571
        %5652 = vst [vmem:[%s279 + $0xf0] sm:$0xff] %v5572
        %5653 = vst [vmem:[%s279 + $0xf8] sm:$0xff] %v5573
        %5654 = vst [vmem:[%s279 + $0x100] sm:$0xff] %v5574
        %5655 = vst [vmem:[%s279 + $0x108] sm:$0xff] %v5575
        %5656 = vst [vmem:[%s279 + $0x110] sm:$0xff] %v5576
        %5657 = vst [vmem:[%s279 + $0x118] sm:$0xff] %v5577
        %5658 = vst [vmem:[%s279 + $0x120] sm:$0xff] %v5578
        %5659 = vst [vmem:[%s279 + $0x128] sm:$0xff] %v5579
        %5660 = vst [vmem:[%s279 + $0x130] sm:$0xff] %v5580
        %5661 = vst [vmem:[%s279 + $0x138] sm:$0xff] %v5581
        %5662 = vst [vmem:[%s279 + $0x140] sm:$0xff] %v5582
        %5663 = vst [vmem:[%s279 + $0x148] sm:$0xff] %v5583
        %5664 = vst [vmem:[%s279 + $0x150] sm:$0xff] %v5584
        %5665 = vst [vmem:[%s279 + $0x158] sm:$0xff] %v5585
        %5666 = vst [vmem:[%s279 + $0x160] sm:$0xff] %v5586
        %5667 = vst [vmem:[%s279 + $0x168] sm:$0xff] %v5587
        %5668 = vst [vmem:[%s279 + $0x170] sm:$0xff] %v5588
        %5669 = vst [vmem:[%s279 + $0x178] sm:$0xff] %v5589
        %5670 = vst [vmem:[%s279 + $0x180] sm:$0xff] %v5590
        %5671 = vst [vmem:[%s279 + $0x188] sm:$0xff] %v5591
        %5672 = vst [vmem:[%s279 + $0x190] sm:$0xff] %v5592
        %5673 = vst [vmem:[%s279 + $0x198] sm:$0xff] %v5593
        %5674 = vst [vmem:[%s279 + $0x1a0] sm:$0xff] %v5594
        %5675 = vst [vmem:[%s279 + $0x1a8] sm:$0xff] %v5595
        %5676 = vst [vmem:[%s279 + $0x1b0] sm:$0xff] %v5596
        %5677 = vst [vmem:[%s279 + $0x1b8] sm:$0xff] %v5597
        %5678 = vst [vmem:[%s279 + $0x1c0] sm:$0xff] %v5598
        %5679 = vst [vmem:[%s279 + $0x1c8] sm:$0xff] %v5599
        %5680 = vst [vmem:[%s279 + $0x1d0] sm:$0xff] %v5600
        %5681 = vst [vmem:[%s279 + $0x1d8] sm:$0xff] %v5601
        %5682 = vst [vmem:[%s279 + $0x1e0] sm:$0xff] %v5602
        %5683 = vst [vmem:[%s279 + $0x1e8] sm:$0xff] %v5603
        %5684 = vst [vmem:[%s279 + $0x1f0] sm:$0xff] %v5604
        %5685 = vst [vmem:[%s279 + $0x1f8] sm:$0xff] %v5605
        %5686 = vst [vmem:[%s279 + $0x200] sm:$0xff] %v5606
        %5687 = vst [vmem:[%s279 + $0x208] sm:$0xff] %v5607
        %5688 = vst [vmem:[%s279 + $0x210] sm:$0xff] %v5608
        %5689 = vst [vmem:[%s279 + $0x218] sm:$0xff] %v5609
        %5690 = vst [vmem:[%s279 + $0x220] sm:$0xff] %v5610
        %5691 = vst [vmem:[%s279 + $0x228] sm:$0xff] %v5611
        %5692 = vst [vmem:[%s279 + $0x230] sm:$0xff] %v5612
        %5693 = vst [vmem:[%s279 + $0x238] sm:$0xff] %v5613
        %5694 = vst [vmem:[%s279 + $0x240] sm:$0xff] %v5614
        %5695 = vst [vmem:[%s279 + $0x248] sm:$0xff] %v5615
        %5696 = vst [vmem:[%s279 + $0x250] sm:$0xff] %v5616
        %5697 = vst [vmem:[%s279 + $0x258] sm:$0xff] %v5617
        %5698 = vst [vmem:[%s279 + $0x260] sm:$0xff] %v5618
        %5699 = vst [vmem:[%s279 + $0x268] sm:$0xff] %v5619
        %5700 = vst [vmem:[%s279 + $0x270] sm:$0xff] %v5620
        %5701 = vst [vmem:[%s279 + $0x278] sm:$0xff] %v5621
        %s5702 = sand.u32 %s119, 1
        %s5703 = scalar_lea.sflag [#allocation4], %s5702
        %s5704 = sand.u32 %s119, 1
        %s5705 = smul.addr %s5704, 640
        %s5706 = scalar_lea.vmem [#allocation8], %s5705
        %s5707 = sand.u32 %s145, 1
        %s5708 = scalar_lea.sflag [#allocation10], %s5707
        %s5709 = sand.u32 %s145, 1
        %s5710 = smul.addr %s5709, 64
        %s5711 = scalar_lea.vmem [#allocation9], %s5710
        // Predicated region
        $region49: #{tpu_custom_call.1} parent=31 // pred_check
          %p5712 = pneg %p129
        $region50: #{tpu_custom_call.1} parent=31 // pred_check_branch
          %5714 = sbr.rel (%p5712) target = $region52
        $region51: #{tpu_custom_call.1} parent=31 // pred_region
          %s5715 = smul.u32 16, %s30
          %s5717 = ssub.s32 10240, 10240
          %5718 = vsyncadd %s5703, %s5717
          %s5719 = smul.addr %s5715, 128
          %s5720 = scalar_lea.hbm %s3, %s5719
          %s5721 = sshll.u32 %s5706, 4
          %s5722 = int_to_ptr.vmem [resolvable:$true] %s5721
          %5727 = dma.vmem_to_hbm [thread:$0]  %s5722, 10240, %s5720, %s5703, 2048, 4096, 128
        $region52: #{tpu_custom_call.1} parent=31 // pred_fallthru
          _
        // Predicated region
        $region53: #{tpu_custom_call.1} parent=31 // pred_check
          %p5728 = pneg %p155
        $region54: #{tpu_custom_call.1} parent=31 // pred_check_branch
          %5730 = sbr.rel (%p5728) target = $region56
        $region55: #{tpu_custom_call.1} parent=31 // pred_region
          %s5731 = smul.u32 16, %s30
          %s5733 = ssub.s32 1024, 1024
          %5734 = vsyncadd %s5708, %s5733
          %s5735 = smul.addr %s5731, 64
          %s5736 = scalar_lea.hbm %s4, %s5735
          %s5738 = sshll.u32 %s5711, 4
          %s5739 = int_to_ptr.vmem [resolvable:$true] %s5738
          %5741 = dma.vmem_to_hbm [thread:$0]  %s5739, 1024, %s5736, %s5708
        $region56: #{tpu_custom_call.1} parent=31 // pred_fallthru
          _
      $region32: #{tpu_custom_call.1} parent=5 // pred_fallthru
        _
      %p5742 = scmp.le.s32.totalorder 2, %s21
      // Predicated region
      $region57: #{tpu_custom_call.1} parent=5 // pred_check
        %p5743 = pneg %p5742
      $region58: #{tpu_custom_call.1} parent=5 // pred_check_branch
        %5745 = sbr.rel (%p5743) target = $region60
      $region59: #{tpu_custom_call.1} parent=5 // pred_region
        %s5746 = ssub.s32 %s21, 2
        // Predicated region
        $region61: #{tpu_custom_call.1} parent=59 // pred_check
          %p5747 = pneg %p135
        $region62: #{tpu_custom_call.1} parent=59 // pred_check_branch
          %5749 = sbr.rel (%p5747) target = $region64
        $region63: #{tpu_custom_call.1} parent=59 // pred_region
          %s5750 = sand.u32 %s120, 1
          %s5751 = scalar_lea.sflag [#allocation4], %s5750
          %s5752 = sand.u32 %s120, 1
          %s5753 = smul.addr %s5752, 640
          %s5754 = scalar_lea.vmem [#allocation8], %s5753
          %5755 = dma.done %s5751, 10240
        $region64: #{tpu_custom_call.1} parent=59 // pred_fallthru
          _
        // Predicated region
        $region65: #{tpu_custom_call.1} parent=59 // pred_check
          %p5756 = pneg %p161
        $region66: #{tpu_custom_call.1} parent=59 // pred_check_branch
          %5758 = sbr.rel (%p5756) target = $region68
        $region67: #{tpu_custom_call.1} parent=59 // pred_region
          %s5759 = sand.u32 %s146, 1
          %s5760 = scalar_lea.sflag [#allocation10], %s5759
          %s5761 = sand.u32 %s146, 1
          %s5762 = smul.addr %s5761, 64
          %s5763 = scalar_lea.vmem [#allocation9], %s5762
          %5764 = dma.done %s5760, 1024
        $region68: #{tpu_custom_call.1} parent=59 // pred_fallthru
          _
      $region60: #{tpu_custom_call.1} parent=5 // pred_fallthru
        _
    $region6: #{tpu_custom_call.1} parent=1 // loop_footer
      %s25 = sadd.s32 1, %s21
    $region7: #{tpu_custom_call.1} parent=1 // loop_footer_branch
      %20 = sbr.rel target = $region3
    $region8: #{tpu_custom_call.1} parent=1 // loop_exit
      _
    %5765 = vsyncpa [#allocation3], 1
    %s5766 = scalar_lea.sflag [#allocation3], 1
    %5767 = vsyncpa %s5766, 1
    %5768 = vsyncpa [#allocation6], 1
    %5769 = vsyncpa [#allocation4], 1
    %s5770 = scalar_lea.sflag [#allocation4], 1
    %5771 = vsyncpa %s5770, 1
    %5772 = vsyncpa [#allocation10], 1
    %s5773 = scalar_lea.sflag [#allocation10], 1
    %5774 = vsyncpa %s5773, 1

</llo_original>
